<compile_context>
chip_gen: v7x
topology: tpu7x:2x2x1
jax: 0.10.0
libtpu: 0.0.40
codegen_flags: <defaults>
</compile_context>

<pallas_src>
import functools

import jax
import jax.numpy as jnp
from jax.experimental import pallas as pl
from jax.experimental.pallas import tpu as pltpu

_VMEM_LIMIT = 32 * 1024 * 1024        # safe on v5e/v6e/v7x (raises v5e's 16 MiB default)
_XW_RESIDENT_BYTES = 6 * 1024 * 1024  # single-copy budget for keeping XW resident in VMEM


def _round_up(x, m):
    return ((x + m - 1) // m) * m


# ---------------------------------------------------------------------------
# Pallas kernels
# ---------------------------------------------------------------------------
def _xw_kernel(x_ref, w_ref, o_ref):
    # Row tile of X (bf16) times the full (small) weight, f32 accumulate.
    o_ref[...] = jnp.dot(
        x_ref[...], w_ref[...], preferred_element_type=jnp.float32
    ).astype(o_ref.dtype)


def _accumulate_block(cols_ref, cnt_ref, a_ref, xw_ref, acc_ref, *, tk, xw_resident):
    """Shared body: acc += A_block @ XW_block, skipping all-zero A blocks."""
    i = pl.program_id(0)
    k = pl.program_id(1)

    @pl.when(k == 0)
    def _():
        acc_ref[...] = jnp.zeros_like(acc_ref)

    # Padded schedule slots (k >= cnt) point at the previously fetched block
    # (no re-DMA) and are skipped here.
    @pl.when(k < cnt_ref[i])
    def _():
        if xw_resident:
            src = cols_ref[i * pl.num_programs(1) + k]
            start = pl.multiple_of(src * tk, tk)
            xw_blk = xw_ref[pl.ds(start, tk), :]
        else:
            xw_blk = xw_ref[...]
        acc_ref[...] += jnp.dot(
            a_ref[...], xw_blk, preferred_element_type=jnp.float32
        )


def _agg_relu_w2_kernel(cols_ref, cnt_ref, a_ref, xw_ref, b_ref, w2_ref, o_ref,
                        acc_ref, *, tk, xw_resident):
    # Layer 1: relu(A @ XW1 + b1) fused with the next feature transform,
    # directly emitting XW2 = H1 @ W2^T in bf16 (H1 never touches HBM).
    _accumulate_block(cols_ref, cnt_ref, a_ref, xw_ref, acc_ref,
                      tk=tk, xw_resident=xw_resident)

    @pl.when(pl.program_id(1) == pl.num_programs(1) - 1)
    def _():
        h1 = jnp.maximum(acc_ref[...] + b_ref[...], 0.0).astype(jnp.bfloat16)
        o_ref[...] = jnp.dot(
            h1, w2_ref[...], preferred_element_type=jnp.float32
        ).astype(o_ref.dtype)


def _agg_relu_mlp_lsm_kernel(cols_ref, cnt_ref, a_ref, xw_ref, b_ref, w3_ref, b3_ref,
                             o_ref, acc_ref, *, tk, xw_resident, num_classes):
    # Layer 2: relu(A @ XW2 + b2), fused classifier (bf16 operands, f32 acc)
    # and masked log_softmax epilogue on the finalized row tile.
    _accumulate_block(cols_ref, cnt_ref, a_ref, xw_ref, acc_ref,
                      tk=tk, xw_resident=xw_resident)

    @pl.when(pl.program_id(1) == pl.num_programs(1) - 1)
    def _():
        h2 = jnp.maximum(acc_ref[...] + b_ref[...], 0.0).astype(jnp.bfloat16)
        z = jnp.dot(h2, w3_ref[...], preferred_element_type=jnp.float32) + b3_ref[...]
        # Padded class columns must not contribute to the softmax denominator.
        # (-1e30 is safe because z stays f32.)
        col = jax.lax.broadcasted_iota(jnp.int32, z.shape, 1)
        zm = jnp.where(col < num_classes, z, jnp.float32(-1e30))
        m = jnp.max(zm, axis=-1, keepdims=True)
        e = jnp.exp(zm - m)
        lse = jnp.log(jnp.sum(e, axis=-1, keepdims=True)) + m
        o_ref[...] = z - lse


# ---------------------------------------------------------------------------
# Pallas wrappers
# ---------------------------------------------------------------------------
def matmul_xw(x, w_t, *, tm):
    """X @ W^T with X [N_pad, F_pad] bf16, W^T [F_pad, H_pad] bf16 -> bf16."""
    n_pad, f_pad = x.shape
    h_pad = w_t.shape[1]
    return pl.pallas_call(
        _xw_kernel,
        out_shape=jax.ShapeDtypeStruct((n_pad, h_pad), jnp.bfloat16),
        grid_spec=pltpu.PrefetchScalarGridSpec(
            num_scalar_prefetch=0,
            grid=(n_pad // tm,),
            in_specs=[
                pl.BlockSpec((tm, f_pad), lambda i: (i, 0)),
                pl.BlockSpec((f_pad, h_pad), lambda i: (0, 0)),
            ],
            out_specs=pl.BlockSpec((tm, h_pad), lambda i: (i, 0)),
        ),
        compiler_params=pltpu.CompilerParams(
            dimension_semantics=("parallel",),
            vmem_limit_bytes=_VMEM_LIMIT,
        ),
        cost_estimate=pl.CostEstimate(
            flops=int(2 * n_pad * f_pad * h_pad),
            transcendentals=0,
            bytes_accessed=int(x.size * 2 + w_t.size * 2 + n_pad * h_pad * 2),
        ),
    )(x, w_t)


def gcn_layer_fused_w2(cols, counts, a_mix, xw, b1, w2, *, tm, tk, xw_resident):
    """(relu(A @ XW1 + b1)) @ W2^T -> bf16 [N_pad, H_pad] (block-sparse A)."""
    n_pad = a_mix.shape[0]
    h_pad = xw.shape[1]
    n_rb, n_kb = n_pad // tm, n_pad // tk
    kernel = functools.partial(_agg_relu_w2_kernel, tk=tk, xw_resident=xw_resident)

    a_spec = pl.BlockSpec((tm, tk), lambda i, k, cr, ct: (i, cr[i * n_kb + k]))
    if xw_resident:
        xw_spec = pl.BlockSpec((n_pad, h_pad), lambda i, k, cr, ct: (0, 0))
    else:
        xw_spec = pl.BlockSpec((tk, h_pad), lambda i, k, cr, ct: (cr[i * n_kb + k], 0))

    return pl.pallas_call(
        kernel,
        out_shape=jax.ShapeDtypeStruct((n_pad, h_pad), jnp.bfloat16),
        grid_spec=pltpu.PrefetchScalarGridSpec(
            num_scalar_prefetch=2,
            grid=(n_rb, n_kb),
            in_specs=[
                a_spec,
                xw_spec,
                pl.BlockSpec((1, h_pad), lambda i, k, cr, ct: (0, 0)),
                pl.BlockSpec((h_pad, h_pad), lambda i, k, cr, ct: (0, 0)),
            ],
            out_specs=pl.BlockSpec((tm, h_pad), lambda i, k, cr, ct: (i, 0)),
            scratch_shapes=[pltpu.VMEM((tm, h_pad), jnp.float32)],
        ),
        compiler_params=pltpu.CompilerParams(
            dimension_semantics=("parallel", "arbitrary"),
            vmem_limit_bytes=_VMEM_LIMIT,
        ),
        cost_estimate=pl.CostEstimate(
            flops=int(2 * n_pad * n_pad * h_pad + 2 * n_pad * h_pad * h_pad),
            transcendentals=0,
            bytes_accessed=int(a_mix.size * 2 + xw.size * 2 + n_pad * h_pad * 2),
        ),
    )(cols, counts, a_mix, xw, b1, w2)


def gcn_classifier_layer(cols, counts, a_mix, xw, b2, w3, b3, *,
                         num_classes, tm, tk, xw_resident):
    """log_softmax(relu(A @ XW2 + b2) @ W3^T + b3) -> f32 [N_pad, C_pad]."""
    n_pad = a_mix.shape[0]
    h_pad = xw.shape[1]
    c_pad = w3.shape[1]
    n_rb, n_kb = n_pad // tm, n_pad // tk
    kernel = functools.partial(_agg_relu_mlp_lsm_kernel, tk=tk,
                               xw_resident=xw_resident, num_classes=num_classes)

    a_spec = pl.BlockSpec((tm, tk), lambda i, k, cr, ct: (i, cr[i * n_kb + k]))
    if xw_resident:
        xw_spec = pl.BlockSpec((n_pad, h_pad), lambda i, k, cr, ct: (0, 0))
    else:
        xw_spec = pl.BlockSpec((tk, h_pad), lambda i, k, cr, ct: (cr[i * n_kb + k], 0))

    return pl.pallas_call(
        kernel,
        out_shape=jax.ShapeDtypeStruct((n_pad, c_pad), jnp.float32),
        grid_spec=pltpu.PrefetchScalarGridSpec(
            num_scalar_prefetch=2,
            grid=(n_rb, n_kb),
            in_specs=[
                a_spec,
                xw_spec,
                pl.BlockSpec((1, h_pad), lambda i, k, cr, ct: (0, 0)),
                pl.BlockSpec((h_pad, c_pad), lambda i, k, cr, ct: (0, 0)),
                pl.BlockSpec((1, c_pad), lambda i, k, cr, ct: (0, 0)),
            ],
            out_specs=pl.BlockSpec((tm, c_pad), lambda i, k, cr, ct: (i, 0)),
            scratch_shapes=[pltpu.VMEM((tm, h_pad), jnp.float32)],
        ),
        compiler_params=pltpu.CompilerParams(
            dimension_semantics=("parallel", "arbitrary"),
            vmem_limit_bytes=_VMEM_LIMIT,
        ),
        cost_estimate=pl.CostEstimate(
            flops=int(2 * n_pad * n_pad * h_pad + 2 * n_pad * h_pad * c_pad),
            transcendentals=int(n_pad * c_pad),
            bytes_accessed=int(a_mix.size * 2 + xw.size * 2 + n_pad * c_pad * 4),
        ),
    )(cols, counts, a_mix, xw, b2, w3, b3)


# ---------------------------------------------------------------------------
# Glue: edge list -> dense mixed adjacency (matches gcn_norm / GCNK.forward)
# ---------------------------------------------------------------------------
def build_mixed_adjacency(x, edge_index, eps, n_pad, tm, tk):
    """edge_index: [2, E] int32, assumed free of self-loops (self-loops are
    appended, matching remove_self_loops+add_self_loops / add_remaining_self_loops).

    Returns (A_pad bf16 [n_pad, n_pad], block nonzero mask [n_pad//tm, n_pad//tk])."""
    n = x.shape[0]
    row, col = edge_index[0], edge_index[1]
    self_idx = jnp.arange(n, dtype=row.dtype)
    row = jnp.concatenate([row, self_idx])   # source
    col = jnp.concatenate([col, self_idx])   # target

    xf = x.astype(jnp.float32)

    # --- per-edge weights of A1: gcn_norm with edge_weight = 1 ---------------
    ones = jnp.ones(row.shape, jnp.float32)
    deg1 = jnp.zeros((n,), jnp.float32).at[col].add(ones)
    dinv1 = deg1 ** -0.5
    dinv1 = jnp.where(jnp.isinf(dinv1), 0.0, dinv1)  # masked_fill_(== inf, 0)
    w1 = dinv1[row] * dinv1[col]

    # --- per-edge weights of A2: kernel weights Q[e] = <x[row], x[col]> ------
    # Note: like PyTorch, only inf (deg == 0) is masked; a negative kernel
    # degree would produce NaN in both implementations.
    q = jnp.sum(xf[row] * xf[col], axis=-1)
    degk = jnp.zeros((n,), jnp.float32).at[col].add(q)
    dinvk = degk ** -0.5
    dinvk = jnp.where(jnp.isinf(dinvk), 0.0, dinvk)
    wk = dinvk[row] * q * dinvk[col]

    # --- fused mix: single scatter-add of eps*w1 + (1-eps)*wk into the -------
    # --- pre-padded buffer, cast to bf16 once (no separate pad copy). --------
    we = eps * w1 + (1.0 - eps) * wk
    a_pad = (
        jnp.zeros((n_pad, n_pad), jnp.float32).at[col, row].add(we)  # A[target, source]
    ).astype(jnp.bfloat16)

    # Block-level occupancy derived directly from the edge list (superset of
    # the nonzero (tm, tk) blocks of A) — cheap, no extra N^2 pass.
    n_rb, n_kb = n_pad // tm, n_pad // tk
    blk_mask = jnp.zeros((n_rb, n_kb), dtype=bool).at[col // tm, row // tk].set(True)
    return a_pad, blk_mask


def _compact_block_schedule(blk_mask):
    """Per row tile: non-empty source-block columns compacted to the front;
    padded slots repeat the last valid block (so the pipeline issues no DMA)."""
    n_rb, n_kb = blk_mask.shape
    counts = jnp.sum(blk_mask, axis=1).astype(jnp.int32)
    # stable argsort puts True (non-empty) columns first, in ascending order
    order = jnp.argsort((~blk_mask).astype(jnp.int32), axis=1).astype(jnp.int32)
    slot = jnp.arange(n_kb, dtype=jnp.int32)[None, :]
    last = jnp.maximum(counts - 1, 0)[:, None]
    pad_col = jnp.take_along_axis(order, last, axis=1)
    cols = jnp.where(slot < counts[:, None], order, pad_col).astype(jnp.int32)
    return cols.reshape(-1), counts   # flattened (SMEM-friendly 1D layout)


# ---------------------------------------------------------------------------
# GCNK forward (eval mode)
# ---------------------------------------------------------------------------
@functools.partial(jax.jit, static_argnames=("eps",))
def gcnk_forward(params, x, edge_index, eps=0.5):
    n, f = x.shape
    h = params["w1_t"].shape[1]
    c = params["w3_t"].shape[1]

    # Lane-dense padding (multiples of 128).
    f_pad = _round_up(f, 128)
    h_pad = _round_up(h, 128)
    c_pad = _round_up(c, 128)

    # Tile choice for the N x N aggregation: as large as possible (amortize the
    # ~0.35us grid-step overhead), while keeping >= 2 row blocks so the
    # "parallel" axis can shard across v7x's two TensorCores.
    n_pad = _round_up(n, 256)
    tm = 1024
    while n_pad % tm != 0:
        tm //= 2
    if n_pad // tm < 2 and tm > 128:
        tm //= 2
    tk = tm
    n_pad = _round_up(n_pad, tm)

    # Keep XW fully VMEM-resident when it fits (single HBM read instead of one
    # per row tile); otherwise stream per-block.
    xw_resident = (n_pad * h_pad * 2) <= _XW_RESIDENT_BYTES

    # Mixed adjacency built in f32 straight into the padded buffer, cast to
    # bf16 once, plus a block-occupancy mask for block-sparse skipping.
    a_mix, blk_mask = build_mixed_adjacency(x, edge_index, eps, n_pad, tm, tk)
    cols, counts = _compact_block_schedule(blk_mask)

    x_p = jnp.pad(
        x.astype(jnp.float32), ((0, n_pad - n), (0, f_pad - f))
    ).astype(jnp.bfloat16)

    w1 = jnp.pad(params["w1_t"], ((0, f_pad - f), (0, h_pad - h))).astype(jnp.bfloat16)
    b1 = jnp.pad(params["b1"], (0, h_pad - h)).reshape(1, h_pad).astype(jnp.float32)
    w2 = jnp.pad(params["w2_t"], ((0, h_pad - h), (0, h_pad - h))).astype(jnp.bfloat16)
    b2 = jnp.pad(params["b2"], (0, h_pad - h)).reshape(1, h_pad).astype(jnp.float32)
    w3 = jnp.pad(params["w3_t"], ((0, h_pad - h), (0, c_pad - c))).astype(jnp.bfloat16)
    b3 = jnp.pad(params["b3"], (0, c_pad - c)).reshape(1, c_pad).astype(jnp.float32)

    # conv1 feature transform
    xw1 = matmul_xw(x_p, w1, tm=tm)
    # conv1 aggregation + ReLU, fused with H1 @ W2^T (emits XW2 directly).
    # TODO(synk): F.dropout(p=0.5) is identity in eval mode; training-mode dropout not implemented.
    xw2 = gcn_layer_fused_w2(cols, counts, a_mix, xw1, b1, w2,
                             tm=tm, tk=tk, xw_resident=xw_resident)
    # conv2 aggregation + ReLU + MLP classifier + log_softmax (fused epilogue)
    out_p = gcn_classifier_layer(cols, counts, a_mix, xw2, b2, w3, b3,
                                 num_classes=c, tm=tm, tk=tk, xw_resident=xw_resident)
    return out_p[:n, :c]


def init_params(key, in_channels, hidden_channels, out_channels):
    k1, k2, k3, k4 = jax.random.split(key, 4)

    def glorot(k, fan_in, fan_out):
        lim = jnp.sqrt(6.0 / (fan_in + fan_out))
        # stored already transposed as [in, out] for x @ W^T
        return jax.random.uniform(k, (fan_in, fan_out), jnp.float32, -lim, lim)

    bound3 = 1.0 / jnp.sqrt(jnp.float32(hidden_channels))
    return {
        # GCNConv.lin : glorot init, bias zero-initialized
        "w1_t": glorot(k1, in_channels, hidden_channels),
        "b1": jnp.zeros((hidden_channels,), jnp.float32),
        "w2_t": glorot(k2, hidden_channels, hidden_channels),
        "b2": jnp.zeros((hidden_channels,), jnp.float32),
        # MLPClassifier nn.Linear : uniform init (deterministic stand-in)
        "w3_t": glorot(k3, hidden_channels, out_channels),
        "b3": jax.random.uniform(k4, (out_channels,), jnp.float32, -bound3, bound3),
    }


# ---------------------------------------------------------------------------
if __name__ == "__main__":
    key = jax.random.PRNGKey(0)
    kx, ke1, ke2, kp = jax.random.split(key, 4)

    num_nodes = 64
    in_channels = 32
    hidden_channels = 32
    out_channels = 8
    num_edges = 256

    # non-negative features (so kernel weights Q > 0, as in binary bag-of-words)
    x = jax.random.uniform(kx, (num_nodes, in_channels), jnp.float32)

    # random directed edges with no self-loops
    src = jax.random.randint(ke1, (num_edges,), 0, num_nodes, dtype=jnp.int32)
    off = jax.random.randint(ke2, (num_edges,), 1, num_nodes, dtype=jnp.int32)
    dst = (src + off) % num_nodes
    edge_index = jnp.stack([src, dst], axis=0)

    params = init_params(kp, in_channels, hidden_channels, out_channels)

    out = gcnk_forward(params, x, edge_index, eps=0.5)
    out = jax.block_until_ready(out)

    assert out.shape == (num_nodes, out_channels)
    assert bool(jnp.all(jnp.isfinite(out)))
    # rows of log_softmax must exp-sum to 1
    assert bool(jnp.allclose(jnp.sum(jnp.exp(out), axis=1), 1.0, atol=1e-4))

    print("KERNEL_OK")
</pallas_src>

<mosaic_0001>
module attributes {stable_mosaic.version = 11 : i64} {
  func.func private @main(%arg0: i32) attributes {dimension_semantics = [#tpu.dimension_semantics<core_parallel>], iteration_bounds = array<i64: 2>, tpu.core_type = #tpu.core_type<sc_scalar_subcore>, window_params = []} {
    return
  }
}

module attributes {stable_mosaic.version = 11 : i64} {
  func.func private @main(%arg0: i32) attributes {dimension_semantics = [#tpu.dimension_semantics<core_parallel>], iteration_bounds = array<i64: 2>, tpu.core_type = #tpu.core_type<sc_scalar_subcore>, window_params = []} {
    return
  }
}

module attributes {stable_mosaic.version = 11 : i64} {
  func.func @_xw_kernel(%arg0: i32, %arg1: memref<128x128xbf16, #tpu.memory_space<vmem>>, %arg2: memref<128x128xbf16, #tpu.memory_space<vmem>>, %arg3: memref<128x128xbf16, #tpu.memory_space<vmem>>) attributes {dimension_semantics = [#tpu.dimension_semantics<parallel>], iteration_bounds = array<i64: 2>, scalar_prefetch = 0 : i64, scratch_operands = 0 : i64, tpu.core_type = #tpu.core_type<tc>, window_params = [{transform_indices = @transform_0, window_bounds = array<i64: 128, 128>}, {pipeline_mode = #tpu.pipeline_mode<synchronous>, transform_indices = @transform_1, window_bounds = array<i64: 128, 128>}, {transform_indices = @transform_2, window_bounds = array<i64: 128, 128>}]} {
    %c0 = arith.constant 0 : index
    %c0_0 = arith.constant 0 : index
    %0 = vector.load %arg1[%c0, %c0_0] : memref<128x128xbf16, #tpu.memory_space<vmem>>, vector<128x128xbf16>
    %c0_1 = arith.constant 0 : index
    %c0_2 = arith.constant 0 : index
    %1 = vector.load %arg2[%c0_1, %c0_2] : memref<128x128xbf16, #tpu.memory_space<vmem>>, vector<128x128xbf16>
    %cst = arith.constant dense<0.000000e+00> : vector<128x128xf32>
    %2 = tpu.matmul %0, %1, %cst {dimension_numbers = #tpu.dot_dimension_numbers<[1], [0], [0], [1], [0, 0, 1, 1], [], []>} : vector<128x128xbf16>, vector<128x128xbf16>, vector<128x128xf32> -> vector<128x128xf32>
    %3 = arith.truncf %2 : vector<128x128xf32> to vector<128x128xbf16>
    %c0_3 = arith.constant 0 : index
    %c0_4 = arith.constant 0 : index
    %4 = vector.load %arg3[%c0_3, %c0_4] : memref<128x128xbf16, #tpu.memory_space<vmem>>, vector<128x128xbf16>
    tpu.vector_store %arg3[%c0_3, %c0_4], %3 {strides = array<i32>} : memref<128x128xbf16, #tpu.memory_space<vmem>>, vector<128x128xbf16>,
    return
  }
  func.func @transform_0(%arg0: i32) -> (i32, i32) {
    %c0_i32 = arith.constant 0 : i32
    %c0_i32_0 = arith.constant 0 : i32
    return %arg0, %c0_i32 : i32, i32
  }
  func.func @transform_1(%arg0: i32) -> (i32, i32) {
    %c0_i32 = arith.constant 0 : i32
    %c0_i32_0 = arith.constant 0 : i32
    %c0_i32_1 = arith.constant 0 : i32
    return %c0_i32, %c0_i32_0 : i32, i32
  }
  func.func @transform_2(%arg0: i32) -> (i32, i32) {
    %c0_i32 = arith.constant 0 : i32
    %c0_i32_0 = arith.constant 0 : i32
    return %arg0, %c0_i32 : i32, i32
  }
}

module attributes {stable_mosaic.version = 11 : i64} {
  func.func @_agg_relu_w2_kernel(%arg0: i32, %arg1: i32, %arg2: memref<4xi32, #tpu.memory_space<smem>>, %arg3: memref<2xi32, #tpu.memory_space<smem>>, %arg4: memref<128x128xbf16, #tpu.memory_space<vmem>>, %arg5: memref<256x128xbf16, #tpu.memory_space<vmem>>, %arg6: memref<1x128xf32, #tpu.memory_space<vmem>>, %arg7: memref<128x128xbf16, #tpu.memory_space<vmem>>, %arg8: memref<128x128xbf16, #tpu.memory_space<vmem>>, %arg9: memref<128x128xf32, #tpu.memory_space<vmem>>) attributes {dimension_semantics = [#tpu.dimension_semantics<parallel>, #tpu.dimension_semantics<arbitrary>], iteration_bounds = array<i64: 2, 2>, scalar_prefetch = 2 : i64, scratch_operands = 1 : i64, tpu.core_type = #tpu.core_type<tc>, window_params = [{transform_indices = @transform_0, window_bounds = array<i64: 128, 128>}, {pipeline_mode = #tpu.pipeline_mode<synchronous>, transform_indices = @transform_1, window_bounds = array<i64: 256, 128>}, {pipeline_mode = #tpu.pipeline_mode<synchronous>, transform_indices = @transform_2, window_bounds = array<i64: 1, 128>}, {pipeline_mode = #tpu.pipeline_mode<synchronous>, transform_indices = @transform_3, window_bounds = array<i64: 128, 128>}, {transform_indices = @transform_4, window_bounds = array<i64: 128, 128>}]} {
    %c0_i32 = arith.constant 0 : i32
    %0 = arith.cmpi eq, %arg1, %c0_i32 : i32
    %1 = arith.extui %0 : i1 to i32
    %c0_i32_0 = arith.constant 0 : i32
    %2 = arith.cmpi ne, %1, %c0_i32_0 : i32
    scf.if %2 {
      %cst = arith.constant 0.000000e+00 : f32
      %11 = vector.broadcast %cst : f32 to vector<128x128xf32>
      %c0 = arith.constant 0 : index
      %c0_3 = arith.constant 0 : index
      %12 = vector.load %arg9[%c0, %c0_3] : memref<128x128xf32, #tpu.memory_space<vmem>>, vector<128x128xf32>
      tpu.vector_store %arg9[%c0, %c0_3], %11 {strides = array<i32>} : memref<128x128xf32, #tpu.memory_space<vmem>>, vector<128x128xf32>,
    } else {
    }
    %3 = arith.index_cast %arg0 : i32 to index
    %4 = memref.load %arg3[%3] : memref<2xi32, #tpu.memory_space<smem>>
    %5 = arith.cmpi slt, %arg1, %4 : i32
    %6 = arith.extui %5 : i1 to i32
    %c0_i32_1 = arith.constant 0 : i32
    %7 = arith.cmpi ne, %6, %c0_i32_1 : i32
    scf.if %7 {
      %c2_i32 = arith.constant 2 : i32
      %11 = arith.muli %arg0, %c2_i32 : i32
      %12 = arith.addi %11, %arg1 : i32
      %13 = arith.index_cast %12 : i32 to index
      %14 = memref.load %arg2[%13] : memref<4xi32, #tpu.memory_space<smem>>
      %c128_i32 = arith.constant 128 : i32
      %15 = arith.muli %14, %c128_i32 : i32
      %16 = tpu.assume_multiple %15, 128 : i32
      %17 = arith.index_cast %16 : i32 to index
      %c0 = arith.constant 0 : index
      %18 = vector.load %arg5[%17, %c0] : memref<256x128xbf16, #tpu.memory_space<vmem>>, vector<128x128xbf16>
      %c0_3 = arith.constant 0 : index
      %c0_4 = arith.constant 0 : index
      %19 = vector.load %arg9[%c0_3, %c0_4] : memref<128x128xf32, #tpu.memory_space<vmem>>, vector<128x128xf32>
      %c0_5 = arith.constant 0 : index
      %c0_6 = arith.constant 0 : index
      %20 = vector.load %arg4[%c0_5, %c0_6] : memref<128x128xbf16, #tpu.memory_space<vmem>>, vector<128x128xbf16>
      %cst = arith.constant dense<0.000000e+00> : vector<128x128xf32>
      %21 = tpu.matmul %20, %18, %cst {dimension_numbers = #tpu.dot_dimension_numbers<[1], [0], [0], [1], [0, 0, 1, 1], [], []>} : vector<128x128xbf16>, vector<128x128xbf16>, vector<128x128xf32> -> vector<128x128xf32>
      %22 = arith.addf %19, %21 : vector<128x128xf32>
      %c0_7 = arith.constant 0 : index
      %c0_8 = arith.constant 0 : index
      %23 = vector.load %arg9[%c0_7, %c0_8] : memref<128x128xf32, #tpu.memory_space<vmem>>, vector<128x128xf32>
      tpu.vector_store %arg9[%c0_7, %c0_8], %22 {strides = array<i32>} : memref<128x128xf32, #tpu.memory_space<vmem>>, vector<128x128xf32>,
    } else {
    }
    %c1_i32 = arith.constant 1 : i32
    %8 = arith.cmpi eq, %arg1, %c1_i32 : i32
    %9 = arith.extui %8 : i1 to i32
    %c0_i32_2 = arith.constant 0 : i32
    %10 = arith.cmpi ne, %9, %c0_i32_2 : i32
    scf.if %10 {
      %c0 = arith.constant 0 : index
      %c0_3 = arith.constant 0 : index
      %11 = vector.load %arg9[%c0, %c0_3] : memref<128x128xf32, #tpu.memory_space<vmem>>, vector<128x128xf32>
      %c0_4 = arith.constant 0 : index
      %c0_5 = arith.constant 0 : index
      %12 = vector.load %arg6[%c0_4, %c0_5] : memref<1x128xf32, #tpu.memory_space<vmem>>, vector<1x128xf32>
      %13 = vector.broadcast %12 : vector<1x128xf32> to vector<128x128xf32>
      %14 = arith.addf %11, %13 : vector<128x128xf32>
      %cst = arith.constant 0.000000e+00 : f32
      %15 = vector.broadcast %cst : f32 to vector<128x128xf32>
      %16 = arith.maximumf %14, %15 : vector<128x128xf32>
      %17 = arith.truncf %16 : vector<128x128xf32> to vector<128x128xbf16>
      %c0_6 = arith.constant 0 : index
      %c0_7 = arith.constant 0 : index
      %18 = vector.load %arg7[%c0_6, %c0_7] : memref<128x128xbf16, #tpu.memory_space<vmem>>, vector<128x128xbf16>
      %cst_8 = arith.constant dense<0.000000e+00> : vector<128x128xf32>
      %19 = tpu.matmul %17, %18, %cst_8 {dimension_numbers = #tpu.dot_dimension_numbers<[1], [0], [0], [1], [0, 0, 1, 1], [], []>} : vector<128x128xbf16>, vector<128x128xbf16>, vector<128x128xf32> -> vector<128x128xf32>
      %20 = arith.truncf %19 : vector<128x128xf32> to vector<128x128xbf16>
      %c0_9 = arith.constant 0 : index
      %c0_10 = arith.constant 0 : index
      %21 = vector.load %arg8[%c0_9, %c0_10] : memref<128x128xbf16, #tpu.memory_space<vmem>>, vector<128x128xbf16>
      tpu.vector_store %arg8[%c0_9, %c0_10], %20 {strides = array<i32>} : memref<128x128xbf16, #tpu.memory_space<vmem>>, vector<128x128xbf16>,
    } else {
    }
    return
  }
  func.func @transform_0(%arg0: i32, %arg1: i32, %arg2: memref<4xi32, #tpu.memory_space<smem>>, %arg3: memref<2xi32, #tpu.memory_space<smem>>) -> (i32, i32) {
    %c2_i32 = arith.constant 2 : i32
    %0 = arith.muli %arg0, %c2_i32 : i32
    %1 = arith.addi %0, %arg1 : i32
    %2 = arith.index_cast %1 : i32 to index
    %3 = memref.load %arg2[%2] : memref<4xi32, #tpu.memory_space<smem>>
    %c0_i32 = arith.constant 0 : i32
    return %arg0, %3 : i32, i32
  }
  func.func @transform_1(%arg0: i32, %arg1: i32, %arg2: memref<4xi32, #tpu.memory_space<smem>>, %arg3: memref<2xi32, #tpu.memory_space<smem>>) -> (i32, i32) {
    %c0_i32 = arith.constant 0 : i32
    %c0_i32_0 = arith.constant 0 : i32
    %c0_i32_1 = arith.constant 0 : i32
    return %c0_i32, %c0_i32_0 : i32, i32
  }
  func.func @transform_2(%arg0: i32, %arg1: i32, %arg2: memref<4xi32, #tpu.memory_space<smem>>, %arg3: memref<2xi32, #tpu.memory_space<smem>>) -> (i32, i32) {
    %c0_i32 = arith.constant 0 : i32
    %c0_i32_0 = arith.constant 0 : i32
    %c0_i32_1 = arith.constant 0 : i32
    return %c0_i32, %c0_i32_0 : i32, i32
  }
  func.func @transform_3(%arg0: i32, %arg1: i32, %arg2: memref<4xi32, #tpu.memory_space<smem>>, %arg3: memref<2xi32, #tpu.memory_space<smem>>) -> (i32, i32) {
    %c0_i32 = arith.constant 0 : i32
    %c0_i32_0 = arith.constant 0 : i32
    %c0_i32_1 = arith.constant 0 : i32
    return %c0_i32, %c0_i32_0 : i32, i32
  }
  func.func @transform_4(%arg0: i32, %arg1: i32, %arg2: memref<4xi32, #tpu.memory_space<smem>>, %arg3: memref<2xi32, #tpu.memory_space<smem>>) -> (i32, i32) {
    %c0_i32 = arith.constant 0 : i32
    %c0_i32_0 = arith.constant 0 : i32
    return %arg0, %c0_i32 : i32, i32
  }
}

module attributes {stable_mosaic.version = 11 : i64} {
  func.func @_agg_relu_mlp_lsm_kernel(%arg0: i32, %arg1: i32, %arg2: memref<4xi32, #tpu.memory_space<smem>>, %arg3: memref<2xi32, #tpu.memory_space<smem>>, %arg4: memref<128x128xbf16, #tpu.memory_space<vmem>>, %arg5: memref<256x128xbf16, #tpu.memory_space<vmem>>, %arg6: memref<1x128xf32, #tpu.memory_space<vmem>>, %arg7: memref<128x128xbf16, #tpu.memory_space<vmem>>, %arg8: memref<1x128xf32, #tpu.memory_space<vmem>>, %arg9: memref<128x128xf32, #tpu.memory_space<vmem>>, %arg10: memref<128x128xf32, #tpu.memory_space<vmem>>) attributes {dimension_semantics = [#tpu.dimension_semantics<parallel>, #tpu.dimension_semantics<arbitrary>], iteration_bounds = array<i64: 2, 2>, scalar_prefetch = 2 : i64, scratch_operands = 1 : i64, tpu.core_type = #tpu.core_type<tc>, window_params = [{transform_indices = @transform_0, window_bounds = array<i64: 128, 128>}, {pipeline_mode = #tpu.pipeline_mode<synchronous>, transform_indices = @transform_1, window_bounds = array<i64: 256, 128>}, {pipeline_mode = #tpu.pipeline_mode<synchronous>, transform_indices = @transform_2, window_bounds = array<i64: 1, 128>}, {pipeline_mode = #tpu.pipeline_mode<synchronous>, transform_indices = @transform_3, window_bounds = array<i64: 128, 128>}, {pipeline_mode = #tpu.pipeline_mode<synchronous>, transform_indices = @transform_4, window_bounds = array<i64: 1, 128>}, {transform_indices = @transform_5, window_bounds = array<i64: 128, 128>}]} {
    %c0_i32 = arith.constant 0 : i32
    %0 = arith.cmpi eq, %arg1, %c0_i32 : i32
    %1 = arith.extui %0 : i1 to i32
    %c0_i32_0 = arith.constant 0 : i32
    %2 = arith.cmpi ne, %1, %c0_i32_0 : i32
    scf.if %2 {
      %cst = arith.constant 0.000000e+00 : f32
      %11 = vector.broadcast %cst : f32 to vector<128x128xf32>
      %c0 = arith.constant 0 : index
      %c0_3 = arith.constant 0 : index
      %12 = vector.load %arg10[%c0, %c0_3] : memref<128x128xf32, #tpu.memory_space<vmem>>, vector<128x128xf32>
      tpu.vector_store %arg10[%c0, %c0_3], %11 {strides = array<i32>} : memref<128x128xf32, #tpu.memory_space<vmem>>, vector<128x128xf32>,
    } else {
    }
    %3 = arith.index_cast %arg0 : i32 to index
    %4 = memref.load %arg3[%3] : memref<2xi32, #tpu.memory_space<smem>>
    %5 = arith.cmpi slt, %arg1, %4 : i32
    %6 = arith.extui %5 : i1 to i32
    %c0_i32_1 = arith.constant 0 : i32
    %7 = arith.cmpi ne, %6, %c0_i32_1 : i32
    scf.if %7 {
      %c2_i32 = arith.constant 2 : i32
      %11 = arith.muli %arg0, %c2_i32 : i32
      %12 = arith.addi %11, %arg1 : i32
      %13 = arith.index_cast %12 : i32 to index
      %14 = memref.load %arg2[%13] : memref<4xi32, #tpu.memory_space<smem>>
      %c128_i32 = arith.constant 128 : i32
      %15 = arith.muli %14, %c128_i32 : i32
      %16 = tpu.assume_multiple %15, 128 : i32
      %17 = arith.index_cast %16 : i32 to index
      %c0 = arith.constant 0 : index
      %18 = vector.load %arg5[%17, %c0] : memref<256x128xbf16, #tpu.memory_space<vmem>>, vector<128x128xbf16>
      %c0_3 = arith.constant 0 : index
      %c0_4 = arith.constant 0 : index
      %19 = vector.load %arg10[%c0_3, %c0_4] : memref<128x128xf32, #tpu.memory_space<vmem>>, vector<128x128xf32>
      %c0_5 = arith.constant 0 : index
      %c0_6 = arith.constant 0 : index
      %20 = vector.load %arg4[%c0_5, %c0_6] : memref<128x128xbf16, #tpu.memory_space<vmem>>, vector<128x128xbf16>
      %cst = arith.constant dense<0.000000e+00> : vector<128x128xf32>
      %21 = tpu.matmul %20, %18, %cst {dimension_numbers = #tpu.dot_dimension_numbers<[1], [0], [0], [1], [0, 0, 1, 1], [], []>} : vector<128x128xbf16>, vector<128x128xbf16>, vector<128x128xf32> -> vector<128x128xf32>
      %22 = arith.addf %19, %21 : vector<128x128xf32>
      %c0_7 = arith.constant 0 : index
      %c0_8 = arith.constant 0 : index
      %23 = vector.load %arg10[%c0_7, %c0_8] : memref<128x128xf32, #tpu.memory_space<vmem>>, vector<128x128xf32>
      tpu.vector_store %arg10[%c0_7, %c0_8], %22 {strides = array<i32>} : memref<128x128xf32, #tpu.memory_space<vmem>>, vector<128x128xf32>,
    } else {
    }
    %c1_i32 = arith.constant 1 : i32
    %8 = arith.cmpi eq, %arg1, %c1_i32 : i32
    %9 = arith.extui %8 : i1 to i32
    %c0_i32_2 = arith.constant 0 : i32
    %10 = arith.cmpi ne, %9, %c0_i32_2 : i32
    scf.if %10 {
      %c0 = arith.constant 0 : index
      %c0_3 = arith.constant 0 : index
      %11 = vector.load %arg10[%c0, %c0_3] : memref<128x128xf32, #tpu.memory_space<vmem>>, vector<128x128xf32>
      %c0_4 = arith.constant 0 : index
      %c0_5 = arith.constant 0 : index
      %12 = vector.load %arg6[%c0_4, %c0_5] : memref<1x128xf32, #tpu.memory_space<vmem>>, vector<1x128xf32>
      %13 = vector.broadcast %12 : vector<1x128xf32> to vector<128x128xf32>
      %14 = arith.addf %11, %13 : vector<128x128xf32>
      %cst = arith.constant 0.000000e+00 : f32
      %15 = vector.broadcast %cst : f32 to vector<128x128xf32>
      %16 = arith.maximumf %14, %15 : vector<128x128xf32>
      %17 = arith.truncf %16 : vector<128x128xf32> to vector<128x128xbf16>
      %c0_6 = arith.constant 0 : index
      %c0_7 = arith.constant 0 : index
      %18 = vector.load %arg7[%c0_6, %c0_7] : memref<128x128xbf16, #tpu.memory_space<vmem>>, vector<128x128xbf16>
      %cst_8 = arith.constant dense<0.000000e+00> : vector<128x128xf32>
      %19 = tpu.matmul %17, %18, %cst_8 {dimension_numbers = #tpu.dot_dimension_numbers<[1], [0], [0], [1], [0, 0, 1, 1], [], []>} : vector<128x128xbf16>, vector<128x128xbf16>, vector<128x128xf32> -> vector<128x128xf32>
      %c0_9 = arith.constant 0 : index
      %c0_10 = arith.constant 0 : index
      %20 = vector.load %arg8[%c0_9, %c0_10] : memref<1x128xf32, #tpu.memory_space<vmem>>, vector<1x128xf32>
      %21 = vector.broadcast %20 : vector<1x128xf32> to vector<128x128xf32>
      %22 = arith.addf %19, %21 : vector<128x128xf32>
      %23 = tpu.iota {dimensions = array<i32: 1>} : vector<128x128xi32>
      %c8_i32 = arith.constant 8 : i32
      %24 = vector.broadcast %c8_i32 : i32 to vector<128x128xi32>
      %25 = arith.cmpi slt, %23, %24 : vector<128x128xi32>
      %cst_11 = arith.constant -1.000000e+30 : f32
      %26 = vector.broadcast %cst_11 : f32 to vector<128x128xf32>
      %27 = arith.select %25, %22, %26 : vector<128x128xi1>, vector<128x128xf32>
      %cst_12 = arith.constant dense<0xFF800000> : vector<128xf32>
      %28 = vector.multi_reduction <maximumf>, %27, %cst_12 [1] : vector<128x128xf32> to vector<128xf32>
      %29 = vector.shape_cast %28 : vector<128xf32> to vector<128x1xf32>
      %30 = vector.broadcast %29 : vector<128x1xf32> to vector<128x128xf32>
      %31 = arith.subf %27, %30 : vector<128x128xf32>
      %32 = math.exp %31 : vector<128x128xf32>
      %cst_13 = arith.constant dense<0.000000e+00> : vector<128xf32>
      %33 = vector.multi_reduction <add>, %32, %cst_13 [1] : vector<128x128xf32> to vector<128xf32>
      %34 = vector.shape_cast %33 : vector<128xf32> to vector<128x1xf32>
      %35 = math.log %34 : vector<128x1xf32>
      %36 = arith.addf %35, %29 : vector<128x1xf32>
      %37 = vector.broadcast %36 : vector<128x1xf32> to vector<128x128xf32>
      %38 = arith.subf %22, %37 : vector<128x128xf32>
      %c0_14 = arith.constant 0 : index
      %c0_15 = arith.constant 0 : index
      %39 = vector.load %arg9[%c0_14, %c0_15] : memref<128x128xf32, #tpu.memory_space<vmem>>, vector<128x128xf32>
      tpu.vector_store %arg9[%c0_14, %c0_15], %38 {strides = array<i32>} : memref<128x128xf32, #tpu.memory_space<vmem>>, vector<128x128xf32>,
    } else {
    }
    return
  }
  func.func @transform_0(%arg0: i32, %arg1: i32, %arg2: memref<4xi32, #tpu.memory_space<smem>>, %arg3: memref<2xi32, #tpu.memory_space<smem>>) -> (i32, i32) {
    %c2_i32 = arith.constant 2 : i32
    %0 = arith.muli %arg0, %c2_i32 : i32
    %1 = arith.addi %0, %arg1 : i32
    %2 = arith.index_cast %1 : i32 to index
    %3 = memref.load %arg2[%2] : memref<4xi32, #tpu.memory_space<smem>>
    %c0_i32 = arith.constant 0 : i32
    return %arg0, %3 : i32, i32
  }
  func.func @transform_1(%arg0: i32, %arg1: i32, %arg2: memref<4xi32, #tpu.memory_space<smem>>, %arg3: memref<2xi32, #tpu.memory_space<smem>>) -> (i32, i32) {
    %c0_i32 = arith.constant 0 : i32
    %c0_i32_0 = arith.constant 0 : i32
    %c0_i32_1 = arith.constant 0 : i32
    return %c0_i32, %c0_i32_0 : i32, i32
  }
  func.func @transform_2(%arg0: i32, %arg1: i32, %arg2: memref<4xi32, #tpu.memory_space<smem>>, %arg3: memref<2xi32, #tpu.memory_space<smem>>) -> (i32, i32) {
    %c0_i32 = arith.constant 0 : i32
    %c0_i32_0 = arith.constant 0 : i32
    %c0_i32_1 = arith.constant 0 : i32
    return %c0_i32, %c0_i32_0 : i32, i32
  }
  func.func @transform_3(%arg0: i32, %arg1: i32, %arg2: memref<4xi32, #tpu.memory_space<smem>>, %arg3: memref<2xi32, #tpu.memory_space<smem>>) -> (i32, i32) {
    %c0_i32 = arith.constant 0 : i32
    %c0_i32_0 = arith.constant 0 : i32
    %c0_i32_1 = arith.constant 0 : i32
    return %c0_i32, %c0_i32_0 : i32, i32
  }
  func.func @transform_4(%arg0: i32, %arg1: i32, %arg2: memref<4xi32, #tpu.memory_space<smem>>, %arg3: memref<2xi32, #tpu.memory_space<smem>>) -> (i32, i32) {
    %c0_i32 = arith.constant 0 : i32
    %c0_i32_0 = arith.constant 0 : i32
    %c0_i32_1 = arith.constant 0 : i32
    return %c0_i32, %c0_i32_0 : i32, i32
  }
  func.func @transform_5(%arg0: i32, %arg1: i32, %arg2: memref<4xi32, #tpu.memory_space<smem>>, %arg3: memref<2xi32, #tpu.memory_space<smem>>) -> (i32, i32) {
    %c0_i32 = arith.constant 0 : i32
    %c0_i32_0 = arith.constant 0 : i32
    return %arg0, %c0_i32 : i32, i32
  }
}

</mosaic_0001>

<llo_original>
// kernel: gcnk_forward.3
$region0: #{gcnk_forward.3}
  #allocation0 [shape = 'u32[]', space=smem, size = 0x4, offset = 0x4, fixed_abs, tag = 'smem constant byte address 0x4 - core index']
  #allocation1 [shape = 'u32[144,128]{1,0:T(1,128)}', space=vmem, size = 0x12000, scoped, tag = 'internal scratch']
  %s0 = inlined_call_operand.vmem [shape: bf16[256,128], index: 0, kind: input, shape index: {}]
  %s1 = inlined_call_operand.vmem [shape: bf16[128,128], index: 1, kind: input, shape index: {}]
  %s2 = inlined_call_operand.vmem [shape: bf16[256,128], index: 2, kind: output, shape index: {}]
  %s3 = sld [smem:[#allocation0]]
  $region41: #{gcnk_forward.3} parent=0
    _
  %s5 = ssub.s32 1, %s3
  %s6 = scalar_select 0, %s5, %s3
  loop: start=0, step=1, limit=4
  $region2: #{gcnk_forward.3} parent=0 // loop_pre_header
    _
  $region3: #{gcnk_forward.3} parent=0 // loop_header
    %s8 = sphi 0, %s12
    %p9 = scmp.ge.s32.totalorder %s8, 4
    %s18 = sphi 0, %s20
    %s21 = sphi 0, %s18
    %s22 = sphi 0, %s21
    %s38 = sphi 0, %s22
    %s42 = sphi 0, %s42
    %s44 = sphi 0, %s42
    %s45 = sphi 0, %s44
    %s59 = sphi 0, %s45
    %s65 = sphi 0, %s67
    %s68 = sphi 0, %s65
    %s69 = sphi 0, %s68
    %s85 = sphi 0, %s69
  $region4: #{gcnk_forward.3} parent=0 // loop_header_branch
    %11 = sbr.rel (%p9) target = $region8
  $region5: #{gcnk_forward.3} parent=0 // loop_body
    %s13 = ssub.s32 %s8, 1
    %s14 = ssub.s32 %s8, 2
    %s15 = sadd.s32 %s8, 1
    %s16 = ssub.s32 %s8, %s15
    %p17 = scmp.eq.s32.totalorder %s16, 0
    %s19 = sadd.s32 %s18, 1
    %s20 = scalar_select %p17, %s18, %s19
    %p23 = pneg %p17
    %p24 = scmp.eq.s32.totalorder %s8, 1
    %p25 = por %p23, %p24
    %p26 = scmp.ne.s32.totalorder %s18, %s21
    %p27 = scmp.eq.s32.totalorder %s8, 0
    %p28 = por %p26, %p27
    %p29 = scmp.ne.s32.totalorder %s18, %s21
    %p30 = scmp.eq.s32.totalorder %s13, 1
    %p31 = por %p29, %p30
    %p32 = scmp.ne.s32.totalorder %s21, %s22
    %p33 = scmp.eq.s32.totalorder %s13, 0
    %p34 = por %p32, %p33
    %p35 = scmp.ne.s32.totalorder %s21, %s22
    %p36 = scmp.eq.s32.totalorder %s14, 1
    %p37 = por %p35, %p36
    %p39 = scmp.ne.s32.totalorder %s22, %s38
    %p40 = scmp.eq.s32.totalorder %s14, 0
    %p41 = por %p39, %p40
    %s43 = sadd.s32 %s42, 1
    %p46 = scmp.eq.s32.totalorder %s8, 1
    %p47 = scmp.ne.s32.totalorder %s42, %s44
    %p48 = scmp.eq.s32.totalorder %s8, 0
    %p49 = por %p47, %p48
    %p50 = scmp.ne.s32.totalorder %s42, %s44
    %p51 = scmp.eq.s32.totalorder %s13, 1
    %p52 = por %p50, %p51
    %p53 = scmp.ne.s32.totalorder %s44, %s45
    %p54 = scmp.eq.s32.totalorder %s13, 0
    %p55 = por %p53, %p54
    %p56 = scmp.ne.s32.totalorder %s44, %s45
    %p57 = scmp.eq.s32.totalorder %s14, 1
    %p58 = por %p56, %p57
    %p60 = scmp.ne.s32.totalorder %s45, %s59
    %p61 = scmp.eq.s32.totalorder %s14, 0
    %p62 = por %p60, %p61
    %s63 = ssub.s32 %s8, %s15
    %p64 = scmp.eq.s32.totalorder %s63, 0
    %s66 = sadd.s32 %s65, 1
    %s67 = scalar_select %p64, %s65, %s66
    %p70 = pneg %p64
    %p71 = scmp.eq.s32.totalorder %s8, 1
    %p72 = por %p70, %p71
    %p73 = scmp.ne.s32.totalorder %s65, %s68
    %p74 = scmp.eq.s32.totalorder %s8, 0
    %p75 = por %p73, %p74
    %p76 = scmp.ne.s32.totalorder %s65, %s68
    %p77 = scmp.eq.s32.totalorder %s13, 1
    %p78 = por %p76, %p77
    %p79 = scmp.ne.s32.totalorder %s68, %s69
    %p80 = scmp.eq.s32.totalorder %s13, 0
    %p81 = por %p79, %p80
    %p82 = scmp.ne.s32.totalorder %s68, %s69
    %p83 = scmp.eq.s32.totalorder %s14, 1
    %p84 = por %p82, %p83
    %p86 = scmp.ne.s32.totalorder %s69, %s85
    %p87 = scmp.eq.s32.totalorder %s14, 0
    %p88 = por %p86, %p87
    %p89 = scmp.le.s32.totalorder 1, %s8
    %p90 = scmp.lt.s32.totalorder %s8, 3
    %p91 = pnand %p89, %p90
    %p92 = pneg %p91
    // Predicated region
    $region9: #{gcnk_forward.3} parent=5 // pred_check
      _
    $region10: #{gcnk_forward.3} parent=5 // pred_check_branch
      %94 = sbr.rel (%p91) target = $region12
    $region11: #{gcnk_forward.3} parent=5 // pred_region
      %s95 = ssub.s32 %s8, 1
      // Predicated region
      $region13: #{gcnk_forward.3} parent=11 // pred_check
        %p96 = pneg %p55
      $region14: #{gcnk_forward.3} parent=11 // pred_check_branch
        %98 = sbr.rel (%p96) target = $region16
      $region15: #{gcnk_forward.3} parent=11 // pred_region
        _
      $region16: #{gcnk_forward.3} parent=11 // pred_fallthru
        _
    $region12: #{gcnk_forward.3} parent=5 // pred_fallthru
      _
    %p99 = scmp.lt.s32.totalorder %s8, 2
    // Predicated region
    $region17: #{gcnk_forward.3} parent=5 // pred_check
      %p100 = pneg %p99
    $region18: #{gcnk_forward.3} parent=5 // pred_check_branch
      %102 = sbr.rel (%p100) target = $region20
    $region19: #{gcnk_forward.3} parent=5 // pred_region
      // Predicated region
      $region21: #{gcnk_forward.3} parent=19 // pred_check
        %p103 = pneg %p28
      $region22: #{gcnk_forward.3} parent=19 // pred_check_branch
        %105 = sbr.rel (%p103) target = $region24
      $region23: #{gcnk_forward.3} parent=19 // pred_region
        %s106 = smul.u32 16, %s8
        %p107 = scmp.lt.s32.totalorder %s106, 31
        %s108 = scalar_select %p107, %s106, 31
        %s109 = smul.addr %s108, 4
        %s110 = scalar_lea.vmem %s0, %s109
        %s111 = smul.u32 16, %s8
      $region24: #{gcnk_forward.3} parent=19 // pred_fallthru
        _
    $region20: #{gcnk_forward.3} parent=5 // pred_fallthru
      _
    %p112 = scmp.le.s32.totalorder 1, %s8
    %p113 = scmp.lt.s32.totalorder %s8, 3
    %p114 = pnand %p112, %p113
    %p115 = pneg %p114
    // Predicated region
    $region25: #{gcnk_forward.3} parent=5 // pred_check
      _
    $region26: #{gcnk_forward.3} parent=5 // pred_check_branch
      %117 = sbr.rel (%p114) target = $region28
    $region27: #{gcnk_forward.3} parent=5 // pred_region
      %s118 = ssub.s32 %s8, 1
      %s119 = smul.u32 16, %s13
      %p120 = scmp.lt.s32.totalorder %s119, 31
      %s121 = scalar_select %p120, %s119, 31
      %s122 = smul.addr %s121, 4
      %s123 = scalar_lea.vmem %s0, %s122
      %p124 = pneg %p34
      %p125 = pneg %p31
      %p126 = pneg %p55
      %p127 = pneg %p52
      %p128 = pneg %p81
      %p129 = pneg %p78
      %s130 = smul.u32 16, %s13
      %p131 = scmp.lt.s32.totalorder %s130, 31
      %s132 = scalar_select %p131, %s130, 31
      %s133 = smul.addr %s132, 4
      %s134 = scalar_lea.vmem %s2, %s133
      %s135 = smul.u32 16, %s13
      %p136 = scmp.lt.s32.totalorder %s135, 31
      %s137 = scalar_select %p136, %s135, 31
      %s138 = smul.addr %s137, 4
      %s139 = scalar_lea.vmem %s0, %s138
      %s140 = smul.u32 16, %s13
      %s141 = smul.u32 16, %s13
      %p142 = scmp.lt.s32.totalorder %s141, 31
      %s143 = scalar_select %p142, %s141, 31
      %s144 = smul.addr %s143, 4
      %s145 = scalar_lea.vmem %s2, %s144
      %s146 = smul.u32 16, %s13
      %v148 = vld [vmem:[%s139] sm:$0xf]
      %v149 = vld [vmem:[%s139 + $0x4] sm:$0xf]
      %v150 = vld [vmem:[%s139 + $0x8] sm:$0xf]
      %v151 = vld [vmem:[%s139 + $0xc] sm:$0xf]
      %v152 = vld [vmem:[%s139 + $0x10] sm:$0xf]
      %v153 = vld [vmem:[%s139 + $0x14] sm:$0xf]
      %v154 = vld [vmem:[%s139 + $0x18] sm:$0xf]
      %v155 = vld [vmem:[%s139 + $0x1c] sm:$0xf]
      %v156 = vld [vmem:[%s139 + $0x20] sm:$0xf]
      %v157 = vld [vmem:[%s139 + $0x24] sm:$0xf]
      %v158 = vld [vmem:[%s139 + $0x28] sm:$0xf]
      %v159 = vld [vmem:[%s139 + $0x2c] sm:$0xf]
      %v160 = vld [vmem:[%s139 + $0x30] sm:$0xf]
      %v161 = vld [vmem:[%s139 + $0x34] sm:$0xf]
      %v162 = vld [vmem:[%s139 + $0x38] sm:$0xf]
      %v163 = vld [vmem:[%s139 + $0x3c] sm:$0xf]
      %v164 = vld [vmem:[%s1] sm:$0xf]
      %v165 = vld [vmem:[%s1 + $0x4] sm:$0xf]
      %v166 = vld [vmem:[%s1 + $0x8] sm:$0xf]
      %v167 = vld [vmem:[%s1 + $0xc] sm:$0xf]
      %v168 = vld [vmem:[%s1 + $0x10] sm:$0xf]
      %v169 = vld [vmem:[%s1 + $0x14] sm:$0xf]
      %v170 = vld [vmem:[%s1 + $0x18] sm:$0xf]
      %v171 = vld [vmem:[%s1 + $0x1c] sm:$0xf]
      %v172 = vld [vmem:[%s1 + $0x20] sm:$0xf]
      %v173 = vld [vmem:[%s1 + $0x24] sm:$0xf]
      %v174 = vld [vmem:[%s1 + $0x28] sm:$0xf]
      %v175 = vld [vmem:[%s1 + $0x2c] sm:$0xf]
      %v176 = vld [vmem:[%s1 + $0x30] sm:$0xf]
      %v177 = vld [vmem:[%s1 + $0x34] sm:$0xf]
      %v178 = vld [vmem:[%s1 + $0x38] sm:$0xf]
      %v179 = vld [vmem:[%s1 + $0x3c] sm:$0xf]
      %v196 = vunpack.c.l.b16 %v148
      %v197 = vunpack.c.l.b16 %v149
      %v198 = vunpack.c.l.b16 %v150
      %v199 = vunpack.c.l.b16 %v151
      %v200 = vunpack.c.l.b16 %v152
      %v201 = vunpack.c.l.b16 %v153
      %v202 = vunpack.c.l.b16 %v154
      %v203 = vunpack.c.l.b16 %v155
      %v204 = vunpack.c.l.b16 %v156
      %v205 = vunpack.c.l.b16 %v157
      %v206 = vunpack.c.l.b16 %v158
      %v207 = vunpack.c.l.b16 %v159
      %v208 = vunpack.c.l.b16 %v160
      %v209 = vunpack.c.l.b16 %v161
      %v210 = vunpack.c.l.b16 %v162
      %v211 = vunpack.c.l.b16 %v163
      %v212 = vpack.c.b16 %v197, %v196
      %v213 = vpack.c.b16 %v199, %v198
      %v214 = vpack.c.b16 %v201, %v200
      %v215 = vpack.c.b16 %v203, %v202
      %v216 = vpack.c.b16 %v205, %v204
      %v217 = vpack.c.b16 %v207, %v206
      %v218 = vpack.c.b16 %v209, %v208
      %v219 = vpack.c.b16 %v211, %v210
      %v244 = vunpack.c.l.b16 %v164
      %v245 = vunpack.c.l.b16 %v165
      %v246 = vunpack.c.l.b16 %v166
      %v247 = vunpack.c.l.b16 %v167
      %v248 = vunpack.c.l.b16 %v168
      %v249 = vunpack.c.l.b16 %v169
      %v250 = vunpack.c.l.b16 %v170
      %v251 = vunpack.c.l.b16 %v171
      %v252 = vunpack.c.l.b16 %v172
      %v253 = vunpack.c.l.b16 %v173
      %v254 = vunpack.c.l.b16 %v174
      %v255 = vunpack.c.l.b16 %v175
      %v256 = vunpack.c.l.b16 %v176
      %v257 = vunpack.c.l.b16 %v177
      %v258 = vunpack.c.l.b16 %v178
      %v259 = vunpack.c.l.b16 %v179
      %v260 = vpack.c.b16 %v245, %v244
      %v261 = vpack.c.b16 %v247, %v246
      %v262 = vpack.c.b16 %v249, %v248
      %v263 = vpack.c.b16 %v251, %v250
      %v264 = vpack.c.b16 %v253, %v252
      %v265 = vpack.c.b16 %v255, %v254
      %v266 = vpack.c.b16 %v257, %v256
      %v267 = vpack.c.b16 %v259, %v258
      %276 = vmatprep.subr.bf16.mxu0 0
      %277 = vmatpush1.bf16.msra.mxu0 %v260
      %278 = vmatprep.subr.bf16.mxu0 0
      %279 = vmatpush1.bf16.msra.mxu0 %v261
      %280 = vmatprep.subr.bf16.mxu0 0
      %281 = vmatpush1.bf16.msra.mxu0 %v262
      %282 = vmatprep.subr.bf16.mxu0 0
      %283 = vmatpush1.bf16.msra.mxu0 %v263
      %284 = vmatprep.subr.bf16.mxu0 0
      %285 = vmatpush1.bf16.msra.mxu0 %v264
      %286 = vmatprep.subr.bf16.mxu0 0
      %287 = vmatpush1.bf16.msra.mxu0 %v265
      %288 = vmatprep.subr.bf16.mxu0 0
      %289 = vmatpush1.bf16.msra.mxu0 %v266
      %290 = vmatprep.subr.bf16.mxu0 0
      %291 = vmatpush1.bf16.msra.mxu0 %v267
      %292 = vmatprep.subr.bf16.mxu0 0
      %293 = vmatpush1.bf16.msra.mxu0 0
      %294 = vmatprep.subr.bf16.mxu0 0
      %295 = vmatpush1.bf16.msra.mxu0 0
      %296 = vmatprep.subr.bf16.mxu0 0
      %297 = vmatpush1.bf16.msra.mxu0 0
      %298 = vmatprep.subr.bf16.mxu0 0
      %299 = vmatpush1.bf16.msra.mxu0 0
      %300 = vmatprep.subr.bf16.mxu0 0
      %301 = vmatpush1.bf16.msra.mxu0 0
      %302 = vmatprep.subr.bf16.mxu0 0
      %303 = vmatpush1.bf16.msra.mxu0 0
      %304 = vmatprep.subr.bf16.mxu0 0
      %305 = vmatpush1.bf16.msra.mxu0 0
      %306 = vmatprep.subr.bf16.mxu0 0
      %307 = vmatpush1.bf16.msra.mxu0 0
      %308 = vmatprep.mubr.bf16.mxu0 0
      %309 = vmatmul.mubr.bf16.gmra.mrb[0].mxu0 %v212
      %v310 = vpop.f32.mrb[0].mxu0
      %v311 = vadd.f32 0.0, %v310
      %v312 = vpop.f32.mrb[0].mxu0
      %v313 = vpop.f32.mrb[0].mxu0
      %v314 = vadd.f32 0.0, %v313
      %v315 = vpop.f32.mrb[0].mxu0
      %316 = vmatprep.mubr.bf16.mxu0 0
      %317 = vmatmul.mubr.bf16.gmra.mrb[0].mxu0 %v213
      %v318 = vpop.f32.mrb[0].mxu0
      %v319 = vadd.f32 0.0, %v318
      %v320 = vpop.f32.mrb[0].mxu0
      %v321 = vpop.f32.mrb[0].mxu0
      %v322 = vadd.f32 0.0, %v321
      %v323 = vpop.f32.mrb[0].mxu0
      %324 = vmatprep.mubr.bf16.mxu0 0
      %325 = vmatmul.mubr.bf16.gmra.mrb[0].mxu0 %v214
      %v326 = vpop.f32.mrb[0].mxu0
      %v327 = vadd.f32 0.0, %v326
      %v328 = vpop.f32.mrb[0].mxu0
      %v329 = vpop.f32.mrb[0].mxu0
      %v330 = vadd.f32 0.0, %v329
      %v331 = vpop.f32.mrb[0].mxu0
      %332 = vmatprep.mubr.bf16.mxu0 0
      %333 = vmatmul.mubr.bf16.gmra.mrb[0].mxu0 %v215
      %v334 = vpop.f32.mrb[0].mxu0
      %v335 = vadd.f32 0.0, %v334
      %v336 = vpop.f32.mrb[0].mxu0
      %v337 = vpop.f32.mrb[0].mxu0
      %v338 = vadd.f32 0.0, %v337
      %v339 = vpop.f32.mrb[0].mxu0
      %340 = vmatprep.mubr.bf16.mxu0 0
      %341 = vmatmul.mubr.bf16.gmra.mrb[0].mxu0 %v216
      %v342 = vpop.f32.mrb[0].mxu0
      %v343 = vadd.f32 0.0, %v342
      %v344 = vpop.f32.mrb[0].mxu0
      %v345 = vpop.f32.mrb[0].mxu0
      %v346 = vadd.f32 0.0, %v345
      %v347 = vpop.f32.mrb[0].mxu0
      %348 = vmatprep.mubr.bf16.mxu0 0
      %349 = vmatmul.mubr.bf16.gmra.mrb[0].mxu0 %v217
      %v350 = vpop.f32.mrb[0].mxu0
      %v351 = vadd.f32 0.0, %v350
      %v352 = vpop.f32.mrb[0].mxu0
      %v353 = vpop.f32.mrb[0].mxu0
      %v354 = vadd.f32 0.0, %v353
      %v355 = vpop.f32.mrb[0].mxu0
      %356 = vmatprep.mubr.bf16.mxu0 0
      %357 = vmatmul.mubr.bf16.gmra.mrb[0].mxu0 %v218
      %v358 = vpop.f32.mrb[0].mxu0
      %v359 = vadd.f32 0.0, %v358
      %v360 = vpop.f32.mrb[0].mxu0
      %v361 = vpop.f32.mrb[0].mxu0
      %v362 = vadd.f32 0.0, %v361
      %v363 = vpop.f32.mrb[0].mxu0
      %364 = vmatprep.mubr.bf16.mxu0 0
      %365 = vmatmul.mubr.bf16.gmra.mrb[0].mxu0 %v219
      %v366 = vpop.f32.mrb[0].mxu0
      %v367 = vadd.f32 0.0, %v366
      %v368 = vpop.f32.mrb[0].mxu0
      %v369 = vpop.f32.mrb[0].mxu0
      %v370 = vadd.f32 0.0, %v369
      %v371 = vpop.f32.mrb[0].mxu0
      %372 = vdwg.mxu0
      %v373 = vpack.c.bf16 %v314, %v311
      %v374 = vpack.c.bf16 %v322, %v319
      %v375 = vpack.c.bf16 %v330, %v327
      %v376 = vpack.c.bf16 %v338, %v335
      %v377 = vpack.c.bf16 %v346, %v343
      %v378 = vpack.c.bf16 %v354, %v351
      %v379 = vpack.c.bf16 %v362, %v359
      %v380 = vpack.c.bf16 %v370, %v367
      %v389 = vunpack.c.l.b16 %v373
      %v390 = vunpack.c.h.b16 %v373
      %v391 = vunpack.c.l.b16 %v374
      %v392 = vunpack.c.h.b16 %v374
      %v393 = vunpack.c.l.b16 %v375
      %v394 = vunpack.c.h.b16 %v375
      %v395 = vunpack.c.l.b16 %v376
      %v396 = vunpack.c.h.b16 %v376
      %v397 = vunpack.c.l.b16 %v377
      %v398 = vunpack.c.h.b16 %v377
      %v399 = vunpack.c.l.b16 %v378
      %v400 = vunpack.c.h.b16 %v378
      %v401 = vunpack.c.l.b16 %v379
      %v402 = vunpack.c.h.b16 %v379
      %v403 = vunpack.c.l.b16 %v380
      %v404 = vunpack.c.h.b16 %v380
      %v405 = vpack.c.b16 %v389, %v389
      %v406 = vpack.c.b16 %v390, %v390
      %v407 = vpack.c.b16 %v391, %v391
      %v408 = vpack.c.b16 %v392, %v392
      %v409 = vpack.c.b16 %v393, %v393
      %v410 = vpack.c.b16 %v394, %v394
      %v411 = vpack.c.b16 %v395, %v395
      %v412 = vpack.c.b16 %v396, %v396
      %v413 = vpack.c.b16 %v397, %v397
      %v414 = vpack.c.b16 %v398, %v398
      %v415 = vpack.c.b16 %v399, %v399
      %v416 = vpack.c.b16 %v400, %v400
      %v417 = vpack.c.b16 %v401, %v401
      %v418 = vpack.c.b16 %v402, %v402
      %v419 = vpack.c.b16 %v403, %v403
      %v420 = vpack.c.b16 %v404, %v404
      %437 = vst [vmem:[%s145] sm:$0xf] %v405
      %438 = vst [vmem:[%s145 + $0x4] sm:$0xf] %v406
      %439 = vst [vmem:[%s145 + $0x8] sm:$0xf] %v407
      %440 = vst [vmem:[%s145 + $0xc] sm:$0xf] %v408
      %441 = vst [vmem:[%s145 + $0x10] sm:$0xf] %v409
      %442 = vst [vmem:[%s145 + $0x14] sm:$0xf] %v410
      %443 = vst [vmem:[%s145 + $0x18] sm:$0xf] %v411
      %444 = vst [vmem:[%s145 + $0x1c] sm:$0xf] %v412
      %445 = vst [vmem:[%s145 + $0x20] sm:$0xf] %v413
      %446 = vst [vmem:[%s145 + $0x24] sm:$0xf] %v414
      %447 = vst [vmem:[%s145 + $0x28] sm:$0xf] %v415
      %448 = vst [vmem:[%s145 + $0x2c] sm:$0xf] %v416
      %449 = vst [vmem:[%s145 + $0x30] sm:$0xf] %v417
      %450 = vst [vmem:[%s145 + $0x34] sm:$0xf] %v418
      %451 = vst [vmem:[%s145 + $0x38] sm:$0xf] %v419
      %452 = vst [vmem:[%s145 + $0x3c] sm:$0xf] %v420
      %s453 = smul.u32 16, %s13
      %p454 = scmp.lt.s32.totalorder %s453, 31
      %s455 = scalar_select %p454, %s453, 31
      %s456 = smul.addr %s455, 4
      %s457 = scalar_lea.vmem %s2, %s456
      // Predicated region
      $region29: #{gcnk_forward.3} parent=27 // pred_check
        %p458 = pneg %p78
      $region30: #{gcnk_forward.3} parent=27 // pred_check_branch
        %460 = sbr.rel (%p458) target = $region32
      $region31: #{gcnk_forward.3} parent=27 // pred_region
        %s461 = smul.u32 16, %s13
      $region32: #{gcnk_forward.3} parent=27 // pred_fallthru
        _
    $region28: #{gcnk_forward.3} parent=5 // pred_fallthru
      _
    %p462 = scmp.le.s32.totalorder 2, %s8
    // Predicated region
    $region33: #{gcnk_forward.3} parent=5 // pred_check
      %p463 = pneg %p462
    $region34: #{gcnk_forward.3} parent=5 // pred_check_branch
      %465 = sbr.rel (%p463) target = $region36
    $region35: #{gcnk_forward.3} parent=5 // pred_region
      %s466 = ssub.s32 %s8, 2
      // Predicated region
      $region37: #{gcnk_forward.3} parent=35 // pred_check
        %p467 = pneg %p84
      $region38: #{gcnk_forward.3} parent=35 // pred_check_branch
        %469 = sbr.rel (%p467) target = $region40
      $region39: #{gcnk_forward.3} parent=35 // pred_region
        %s470 = smul.u32 16, %s14
        %p471 = scmp.lt.s32.totalorder %s470, 31
        %s472 = scalar_select %p471, %s470, 31
        %s473 = smul.addr %s472, 4
        %s474 = scalar_lea.vmem %s2, %s473
      $region40: #{gcnk_forward.3} parent=35 // pred_fallthru
        _
    $region36: #{gcnk_forward.3} parent=5 // pred_fallthru
      _
  $region6: #{gcnk_forward.3} parent=0 // loop_footer
    %s12 = sadd.s32 1, %s8
  $region7: #{gcnk_forward.3} parent=0 // loop_footer_branch
    %7 = sbr.rel target = $region3
  $region8: #{gcnk_forward.3} parent=0 // loop_exit
    _

// kernel: gcnk_forward.4
$region0: #{gcnk_forward.4}
  #allocation0 [shape = 'u32[]', space=smem, size = 0x4, offset = 0x4, fixed_abs, tag = 'smem constant byte address 0x4 - core index']
  #allocation1 [shape = 'u32[144,128]{1,0:T(1,128)}', space=vmem, size = 0x12000, scoped, tag = 'internal scratch']
  #allocation2 [shape = 'f32[128,128]{1,0:T(8,128)}', space=vmem, size = 0x10000, scoped, tag = 'scratch operand']
  #allocation3 [shape = 's32[1]{0}', space=sflag, size = 0x4, scoped, tag = 'scoped memory for gcnk_forward.4']
  #allocation4 [shape = 'u8[512]{0}', space=smem, size = 0x200, scoped, tag = 'prefetched SMEM operand 0']
  #allocation5 [shape = 'u8[512]{0}', space=smem, size = 0x200, scoped, tag = 'prefetched SMEM operand 1']
  %s0 = inlined_call_operand.vmem [shape: s32[4], index: 0, kind: input, shape index: {}]
  %s1 = inlined_call_operand.vmem [shape: s32[2], index: 1, kind: input, shape index: {}]
  %s2 = inlined_call_operand.vmem [shape: bf16[256,256], index: 2, kind: input, shape index: {}]
  %s3 = inlined_call_operand.vmem [shape: bf16[256,128], index: 3, kind: input, shape index: {}]
  %s4 = inlined_call_operand.vmem [shape: f32[1,128], index: 4, kind: input, shape index: {}]
  %s5 = inlined_call_operand.vmem [shape: bf16[128,128], index: 5, kind: input, shape index: {}]
  %s6 = inlined_call_operand.vmem [shape: bf16[256,128], index: 6, kind: output, shape index: {}]
  %s7 = sld [smem:[#allocation0]]
  $region102: #{gcnk_forward.4} parent=0
    _
  %s9 = ssub.s32 1, %s7
  %s10 = scalar_select 0, %s9, %s7
  %s11 = sshll.u32 %s0, 4
  %s12 = int_to_ptr.vmem [resolvable:$true] %s11
  %14 = dma.vmem_to_smem %s12, 16, [#allocation4], [#allocation3]
  %s15 = sshll.u32 %s1, 4
  %s16 = int_to_ptr.vmem [resolvable:$true] %s15
  %18 = dma.vmem_to_smem %s16, 16, [#allocation5], [#allocation3]
  %19 = dma.done [#allocation3], 32
  %20 = sfence
  $region1: #{gcnk_forward.4} parent=0
    #allocation6 [shape = 'u8[65536]{0}', space=vmem, size = 0x10000, scoped, tag = 'input window, operand 2']
    loop: start=0, step=1, limit=6
    $region2: #{gcnk_forward.4} parent=1 // loop_pre_header
      _
    $region3: #{gcnk_forward.4} parent=1 // loop_header
      %s22 = sphi 0, %s26
      %p23 = scmp.ge.s32.totalorder %s22, 6
      %s29 = sphi 0, %s41
      %s30 = sphi 0, %s37
      %s31 = sphi 0, %s29
      %s32 = sphi 0, %s30
      %s33 = sphi 0, %s31
      %s34 = sphi 0, %s32
      %s52 = sphi 0, %s54
      %s55 = sphi 0, %s52
      %s56 = sphi 0, %s55
      %s72 = sphi 0, %s56
      %s76 = sphi 0, %s76
      %s78 = sphi 0, %s76
      %s79 = sphi 0, %s78
      %s93 = sphi 0, %s79
      %s97 = sphi 0, %s97
      %s99 = sphi 0, %s97
      %s100 = sphi 0, %s99
      %s114 = sphi 0, %s100
      %s118 = sphi 0, %s118
      %s120 = sphi 0, %s118
      %s121 = sphi 0, %s120
      %s135 = sphi 0, %s121
      %s141 = sphi 0, %s143
      %s144 = sphi 0, %s141
      %s145 = sphi 0, %s144
      %s161 = sphi 0, %s145
    $region4: #{gcnk_forward.4} parent=1 // loop_header_branch
      %25 = sbr.rel (%p23) target = $region8
    $region5: #{gcnk_forward.4} parent=1 // loop_body
      %s27 = ssub.s32 %s22, 1
      %s28 = ssub.s32 %s22, 2
      %s35 = sadd.s32 1, %s30
      %p36 = scmp.ge.s32.totalorder %s35, 2
      %s37 = scalar_select %p36, 0, %s35
      %s38 = sadd.s32 1, %s29
      %s39 = scalar_select %p36, %s38, %s29
      %p40 = scmp.ge.s32.totalorder %s39, 2
      %s41 = scalar_select %p40, 0, %s39
      %s42 = smul.u32 %s29, 2
      %s43 = sadd.s32 %s42, %s30
      %s44 = sld [smem:[#allocation4 + %s43]]
      %s45 = smul.u32 %s41, 2
      %s46 = sadd.s32 %s45, %s37
      %s47 = sld [smem:[#allocation4 + %s46]]
      %s48 = ssub.s32 %s29, %s41
      %s49 = ssub.s32 %s44, %s47
      %s50 = sor.u32 %s48, %s49
      %p51 = scmp.eq.s32.totalorder %s50, 0
      %s53 = sadd.s32 %s52, 1
      %s54 = scalar_select %p51, %s52, %s53
      %p57 = pneg %p51
      %p58 = scmp.eq.s32.totalorder %s22, 3
      %p59 = por %p57, %p58
      %p60 = scmp.ne.s32.totalorder %s52, %s55
      %p61 = scmp.eq.s32.totalorder %s22, 0
      %p62 = por %p60, %p61
      %p63 = scmp.ne.s32.totalorder %s52, %s55
      %p64 = scmp.eq.s32.totalorder %s27, 3
      %p65 = por %p63, %p64
      %p66 = scmp.ne.s32.totalorder %s55, %s56
      %p67 = scmp.eq.s32.totalorder %s27, 0
      %p68 = por %p66, %p67
      %p69 = scmp.ne.s32.totalorder %s55, %s56
      %p70 = scmp.eq.s32.totalorder %s28, 3
      %p71 = por %p69, %p70
      %p73 = scmp.ne.s32.totalorder %s56, %s72
      %p74 = scmp.eq.s32.totalorder %s28, 0
      %p75 = por %p73, %p74
      %s77 = sadd.s32 %s76, 1
      %p80 = scmp.eq.s32.totalorder %s22, 3
      %p81 = scmp.ne.s32.totalorder %s76, %s78
      %p82 = scmp.eq.s32.totalorder %s22, 0
      %p83 = por %p81, %p82
      %p84 = scmp.ne.s32.totalorder %s76, %s78
      %p85 = scmp.eq.s32.totalorder %s27, 3
      %p86 = por %p84, %p85
      %p87 = scmp.ne.s32.totalorder %s78, %s79
      %p88 = scmp.eq.s32.totalorder %s27, 0
      %p89 = por %p87, %p88
      %p90 = scmp.ne.s32.totalorder %s78, %s79
      %p91 = scmp.eq.s32.totalorder %s28, 3
      %p92 = por %p90, %p91
      %p94 = scmp.ne.s32.totalorder %s79, %s93
      %p95 = scmp.eq.s32.totalorder %s28, 0
      %p96 = por %p94, %p95
      %s98 = sadd.s32 %s97, 1
      %p101 = scmp.eq.s32.totalorder %s22, 3
      %p102 = scmp.ne.s32.totalorder %s97, %s99
      %p103 = scmp.eq.s32.totalorder %s22, 0
      %p104 = por %p102, %p103
      %p105 = scmp.ne.s32.totalorder %s97, %s99
      %p106 = scmp.eq.s32.totalorder %s27, 3
      %p107 = por %p105, %p106
      %p108 = scmp.ne.s32.totalorder %s99, %s100
      %p109 = scmp.eq.s32.totalorder %s27, 0
      %p110 = por %p108, %p109
      %p111 = scmp.ne.s32.totalorder %s99, %s100
      %p112 = scmp.eq.s32.totalorder %s28, 3
      %p113 = por %p111, %p112
      %p115 = scmp.ne.s32.totalorder %s100, %s114
      %p116 = scmp.eq.s32.totalorder %s28, 0
      %p117 = por %p115, %p116
      %s119 = sadd.s32 %s118, 1
      %p122 = scmp.eq.s32.totalorder %s22, 3
      %p123 = scmp.ne.s32.totalorder %s118, %s120
      %p124 = scmp.eq.s32.totalorder %s22, 0
      %p125 = por %p123, %p124
      %p126 = scmp.ne.s32.totalorder %s118, %s120
      %p127 = scmp.eq.s32.totalorder %s27, 3
      %p128 = por %p126, %p127
      %p129 = scmp.ne.s32.totalorder %s120, %s121
      %p130 = scmp.eq.s32.totalorder %s27, 0
      %p131 = por %p129, %p130
      %p132 = scmp.ne.s32.totalorder %s120, %s121
      %p133 = scmp.eq.s32.totalorder %s28, 3
      %p134 = por %p132, %p133
      %p136 = scmp.ne.s32.totalorder %s121, %s135
      %p137 = scmp.eq.s32.totalorder %s28, 0
      %p138 = por %p136, %p137
      %s139 = ssub.s32 %s29, %s41
      %p140 = scmp.eq.s32.totalorder %s139, 0
      %s142 = sadd.s32 %s141, 1
      %s143 = scalar_select %p140, %s141, %s142
      %p146 = pneg %p140
      %p147 = scmp.eq.s32.totalorder %s22, 3
      %p148 = por %p146, %p147
      %p149 = scmp.ne.s32.totalorder %s141, %s144
      %p150 = scmp.eq.s32.totalorder %s22, 0
      %p151 = por %p149, %p150
      %p152 = scmp.ne.s32.totalorder %s141, %s144
      %p153 = scmp.eq.s32.totalorder %s27, 3
      %p154 = por %p152, %p153
      %p155 = scmp.ne.s32.totalorder %s144, %s145
      %p156 = scmp.eq.s32.totalorder %s27, 0
      %p157 = por %p155, %p156
      %p158 = scmp.ne.s32.totalorder %s144, %s145
      %p159 = scmp.eq.s32.totalorder %s28, 3
      %p160 = por %p158, %p159
      %p162 = scmp.ne.s32.totalorder %s145, %s161
      %p163 = scmp.eq.s32.totalorder %s28, 0
      %p164 = por %p162, %p163
      %p165 = scmp.le.s32.totalorder 1, %s22
      %p166 = scmp.lt.s32.totalorder %s22, 5
      %p167 = pnand %p165, %p166
      %p168 = pneg %p167
      // Predicated region
      $region9: #{gcnk_forward.4} parent=5 // pred_check
        _
      $region10: #{gcnk_forward.4} parent=5 // pred_check_branch
        %170 = sbr.rel (%p167) target = $region12
      $region11: #{gcnk_forward.4} parent=5 // pred_region
        %s171 = ssub.s32 %s22, 1
        // Predicated region
        $region13: #{gcnk_forward.4} parent=11 // pred_check
          %p172 = pneg %p89
        $region14: #{gcnk_forward.4} parent=11 // pred_check_branch
          %174 = sbr.rel (%p172) target = $region16
        $region15: #{gcnk_forward.4} parent=11 // pred_region
          _
        $region16: #{gcnk_forward.4} parent=11 // pred_fallthru
          _
        // Predicated region
        $region17: #{gcnk_forward.4} parent=11 // pred_check
          %p175 = pneg %p110
        $region18: #{gcnk_forward.4} parent=11 // pred_check_branch
          %177 = sbr.rel (%p175) target = $region20
        $region19: #{gcnk_forward.4} parent=11 // pred_region
          _
        $region20: #{gcnk_forward.4} parent=11 // pred_fallthru
          _
        // Predicated region
        $region21: #{gcnk_forward.4} parent=11 // pred_check
          %p178 = pneg %p131
        $region22: #{gcnk_forward.4} parent=11 // pred_check_branch
          %180 = sbr.rel (%p178) target = $region24
        $region23: #{gcnk_forward.4} parent=11 // pred_region
          _
        $region24: #{gcnk_forward.4} parent=11 // pred_fallthru
          _
      $region12: #{gcnk_forward.4} parent=5 // pred_fallthru
        _
      %p181 = scmp.lt.s32.totalorder %s22, 4
      // Predicated region
      $region25: #{gcnk_forward.4} parent=5 // pred_check
        %p182 = pneg %p181
      $region26: #{gcnk_forward.4} parent=5 // pred_check_branch
        %184 = sbr.rel (%p182) target = $region28
      $region27: #{gcnk_forward.4} parent=5 // pred_region
        // Predicated region
        $region29: #{gcnk_forward.4} parent=27 // pred_check
          %p185 = pneg %p62
        $region30: #{gcnk_forward.4} parent=27 // pred_check_branch
          %187 = sbr.rel (%p185) target = $region32
        $region31: #{gcnk_forward.4} parent=27 // pred_region
          %s188 = sand.u32 %s52, 1
          %s189 = sand.u32 %s52, 1
          %s190 = smul.addr %s189, 64
          %s191 = scalar_lea.vmem [#allocation6], %s190
          %s192 = smul.u32 %s29, 2
          %s193 = sadd.s32 %s192, %s30
          %s194 = sld [smem:[#allocation4 + %s193]]
          %s195 = smul.u32 16, %s29
          %s196 = smul.addr %s195, 2
          %s197 = sadd.s32 %s194, %s196
          %s198 = smul.addr %s197, 4
          %s199 = scalar_lea.vmem %s2, %s198
          // Predicated region
          $region33: #{gcnk_forward.4} parent=31 // pred_check
            _
          $region34: #{gcnk_forward.4} parent=31 // pred_check_branch
            %201 = sbr.rel (0) target = $region36
          $region35: #{gcnk_forward.4} parent=31 // pred_region
            // Predicated region
            $region37: #{gcnk_forward.4} parent=35 // pred_check
              _
            $region38: #{gcnk_forward.4} parent=35 // pred_check_branch
              %203 = sbr.rel target = $region40
            $region39: #{gcnk_forward.4} parent=35 // pred_region
              // Predicated region
              $region52: #{gcnk_forward.4} parent=39 // pred_check
                _
              $region53: #{gcnk_forward.4} parent=39 // pred_check_branch
                %248 = sbr.rel (0) target = $region55
              $region54: #{gcnk_forward.4} parent=39 // pred_region
                loop: start=0, step=1, limit=1
                $region56: #{gcnk_forward.4} parent=54 // loop_pre_header
                  _
                $region57: #{gcnk_forward.4} parent=54 // loop_header
                  %s250 = sphi 0, %s254
                  %p251 = scmp.ge.s32.totalorder %s250, 1
                  %s255 = sphi %s199, %s199
                  %s256 = sphi %s191, %s191
                $region58: #{gcnk_forward.4} parent=54 // loop_header_branch
                  %253 = sbr.rel (%p251) target = $region62
                $region59: #{gcnk_forward.4} parent=54 // loop_body
                  _
                $region60: #{gcnk_forward.4} parent=54 // loop_footer
                  %s254 = sadd.s32 1, %s250
                $region61: #{gcnk_forward.4} parent=54 // loop_footer_branch
                  %249 = sbr.rel target = $region57
                $region62: #{gcnk_forward.4} parent=54 // loop_exit
                  _
                loop: start=0, step=1, limit=1
                $region63: #{gcnk_forward.4} parent=54 // loop_pre_header
                  _
                $region64: #{gcnk_forward.4} parent=54 // loop_header
                  %s259 = sphi 0, %s263
                  %p260 = scmp.ge.s32.totalorder %s259, 1
                  %s264 = sphi %s199, %s199
                  %s265 = sphi %s191, %s191
                $region65: #{gcnk_forward.4} parent=54 // loop_header_branch
                  %262 = sbr.rel (%p260) target = $region69
                $region66: #{gcnk_forward.4} parent=54 // loop_body
                  %v266 = vld [vmem:[%s264] sm:$0xf]
                  %267 = vst [vmem:[%s265] sm:$0xf] %v266
                  %v268 = vld [vmem:[%s264 + $0x8] sm:$0xf]
                  %269 = vst [vmem:[%s265 + $0x4] sm:$0xf] %v268
                  %v270 = vld [vmem:[%s264 + $0x10] sm:$0xf]
                  %271 = vst [vmem:[%s265 + $0x8] sm:$0xf] %v270
                  %v272 = vld [vmem:[%s264 + $0x18] sm:$0xf]
                  %273 = vst [vmem:[%s265 + $0xc] sm:$0xf] %v272
                  %v274 = vld [vmem:[%s264 + $0x20] sm:$0xf]
                  %275 = vst [vmem:[%s265 + $0x10] sm:$0xf] %v274
                  %v276 = vld [vmem:[%s264 + $0x28] sm:$0xf]
                  %277 = vst [vmem:[%s265 + $0x14] sm:$0xf] %v276
                  %v278 = vld [vmem:[%s264 + $0x30] sm:$0xf]
                  %279 = vst [vmem:[%s265 + $0x18] sm:$0xf] %v278
                  %v280 = vld [vmem:[%s264 + $0x38] sm:$0xf]
                  %281 = vst [vmem:[%s265 + $0x1c] sm:$0xf] %v280
                  %v282 = vld [vmem:[%s264 + $0x40] sm:$0xf]
                  %283 = vst [vmem:[%s265 + $0x20] sm:$0xf] %v282
                  %v284 = vld [vmem:[%s264 + $0x48] sm:$0xf]
                  %285 = vst [vmem:[%s265 + $0x24] sm:$0xf] %v284
                  %v286 = vld [vmem:[%s264 + $0x50] sm:$0xf]
                  %287 = vst [vmem:[%s265 + $0x28] sm:$0xf] %v286
                  %v288 = vld [vmem:[%s264 + $0x58] sm:$0xf]
                  %289 = vst [vmem:[%s265 + $0x2c] sm:$0xf] %v288
                  %v290 = vld [vmem:[%s264 + $0x60] sm:$0xf]
                  %291 = vst [vmem:[%s265 + $0x30] sm:$0xf] %v290
                  %v292 = vld [vmem:[%s264 + $0x68] sm:$0xf]
                  %293 = vst [vmem:[%s265 + $0x34] sm:$0xf] %v292
                  %v294 = vld [vmem:[%s264 + $0x70] sm:$0xf]
                  %295 = vst [vmem:[%s265 + $0x38] sm:$0xf] %v294
                  %v296 = vld [vmem:[%s264 + $0x78] sm:$0xf]
                  %297 = vst [vmem:[%s265 + $0x3c] sm:$0xf] %v296
                $region67: #{gcnk_forward.4} parent=54 // loop_footer
                  %s263 = sadd.s32 1, %s259
                $region68: #{gcnk_forward.4} parent=54 // loop_footer_branch
                  %258 = sbr.rel target = $region64
                $region69: #{gcnk_forward.4} parent=54 // loop_exit
                  _
              $region55: #{gcnk_forward.4} parent=39 // pred_fallthru
                _
            $region40: #{gcnk_forward.4} parent=35 // pred_fallthru
              _
            // Predicated region
            $region41: #{gcnk_forward.4} parent=35 // pred_check
              _
            $region42: #{gcnk_forward.4} parent=35 // pred_check_branch
              %205 = sbr.rel (0) target = $region44
            $region43: #{gcnk_forward.4} parent=35 // pred_region
              loop: start=0, step=1, limit=1
              $region45: #{gcnk_forward.4} parent=43 // loop_pre_header
                _
              $region46: #{gcnk_forward.4} parent=43 // loop_header
                %s208 = sphi 0, %s212
                %p209 = scmp.ge.s32.totalorder %s208, 1
                %s213 = sphi %s199, %s199
                %s214 = sphi %s191, %s191
              $region47: #{gcnk_forward.4} parent=43 // loop_header_branch
                %211 = sbr.rel (%p209) target = $region51
              $region48: #{gcnk_forward.4} parent=43 // loop_body
                %v215 = vld [vmem:[%s213] sm:$0xf]
                %216 = vst [vmem:[%s214] sm:$0xf] %v215
                %v217 = vld [vmem:[%s213 + $0x8] sm:$0xf]
                %218 = vst [vmem:[%s214 + $0x4] sm:$0xf] %v217
                %v219 = vld [vmem:[%s213 + $0x10] sm:$0xf]
                %220 = vst [vmem:[%s214 + $0x8] sm:$0xf] %v219
                %v221 = vld [vmem:[%s213 + $0x18] sm:$0xf]
                %222 = vst [vmem:[%s214 + $0xc] sm:$0xf] %v221
                %v223 = vld [vmem:[%s213 + $0x20] sm:$0xf]
                %224 = vst [vmem:[%s214 + $0x10] sm:$0xf] %v223
                %v225 = vld [vmem:[%s213 + $0x28] sm:$0xf]
                %226 = vst [vmem:[%s214 + $0x14] sm:$0xf] %v225
                %v227 = vld [vmem:[%s213 + $0x30] sm:$0xf]
                %228 = vst [vmem:[%s214 + $0x18] sm:$0xf] %v227
                %v229 = vld [vmem:[%s213 + $0x38] sm:$0xf]
                %230 = vst [vmem:[%s214 + $0x1c] sm:$0xf] %v229
                %v231 = vld [vmem:[%s213 + $0x40] sm:$0xf]
                %232 = vst [vmem:[%s214 + $0x20] sm:$0xf] %v231
                %v233 = vld [vmem:[%s213 + $0x48] sm:$0xf]
                %234 = vst [vmem:[%s214 + $0x24] sm:$0xf] %v233
                %v235 = vld [vmem:[%s213 + $0x50] sm:$0xf]
                %236 = vst [vmem:[%s214 + $0x28] sm:$0xf] %v235
                %v237 = vld [vmem:[%s213 + $0x58] sm:$0xf]
                %238 = vst [vmem:[%s214 + $0x2c] sm:$0xf] %v237
                %v239 = vld [vmem:[%s213 + $0x60] sm:$0xf]
                %240 = vst [vmem:[%s214 + $0x30] sm:$0xf] %v239
                %v241 = vld [vmem:[%s213 + $0x68] sm:$0xf]
                %242 = vst [vmem:[%s214 + $0x34] sm:$0xf] %v241
                %v243 = vld [vmem:[%s213 + $0x70] sm:$0xf]
                %244 = vst [vmem:[%s214 + $0x38] sm:$0xf] %v243
                %v245 = vld [vmem:[%s213 + $0x78] sm:$0xf]
                %246 = vst [vmem:[%s214 + $0x3c] sm:$0xf] %v245
              $region49: #{gcnk_forward.4} parent=43 // loop_footer
                %s212 = sadd.s32 1, %s208
              $region50: #{gcnk_forward.4} parent=43 // loop_footer_branch
                %207 = sbr.rel target = $region46
              $region51: #{gcnk_forward.4} parent=43 // loop_exit
                _
            $region44: #{gcnk_forward.4} parent=35 // pred_fallthru
              _
          $region36: #{gcnk_forward.4} parent=31 // pred_fallthru
            _
          %298 = vnop
        $region32: #{gcnk_forward.4} parent=27 // pred_fallthru
          _
      $region28: #{gcnk_forward.4} parent=5 // pred_fallthru
        _
      %p299 = scmp.le.s32.totalorder 1, %s22
      %p300 = scmp.lt.s32.totalorder %s22, 5
      %p301 = pnand %p299, %p300
      %p302 = pneg %p301
      // Predicated region
      $region70: #{gcnk_forward.4} parent=5 // pred_check
        _
      $region71: #{gcnk_forward.4} parent=5 // pred_check_branch
        %304 = sbr.rel (%p301) target = $region73
      $region72: #{gcnk_forward.4} parent=5 // pred_region
        %s305 = ssub.s32 %s22, 1
        %s306 = sand.u32 %s55, 1
        %s307 = sand.u32 %s55, 1
        %s308 = smul.addr %s307, 64
        %s309 = scalar_lea.vmem [#allocation6], %s308
        // Predicated region
        $region74: #{gcnk_forward.4} parent=72 // pred_check
          %p310 = pneg %p68
        $region75: #{gcnk_forward.4} parent=72 // pred_check_branch
          %312 = sbr.rel (%p310) target = $region77
        $region76: #{gcnk_forward.4} parent=72 // pred_region
          _
        $region77: #{gcnk_forward.4} parent=72 // pred_fallthru
          _
        %s313 = sand.u32 %s55, 1
        %s314 = sand.u32 %s55, 1
        %s315 = smul.addr %s314, 64
        %s316 = scalar_lea.vmem [#allocation6], %s315
        %p317 = pneg %p68
        %p318 = pneg %p65
        %p319 = pneg %p89
        %p320 = pneg %p86
        %p321 = pneg %p110
        %p322 = pneg %p107
        %p323 = pneg %p131
        %p324 = pneg %p128
        %p325 = pneg %p157
        %p326 = pneg %p154
        %s327 = smul.u32 16, %s31
        %p328 = scmp.lt.s32.totalorder %s327, 31
        %s329 = scalar_select %p328, %s327, 31
        %s330 = smul.addr %s329, 4
        %s331 = scalar_lea.vmem %s6, %s330
        %s332 = smul.u32 %s31, 2
        %s333 = sadd.s32 %s332, %s32
        %s334 = sld [smem:[#allocation4 + %s333]]
        %s335 = smul.u32 16, %s31
        %s336 = smul.u32 16, %s31
        %p337 = scmp.lt.s32.totalorder %s336, 31
        %s338 = scalar_select %p337, %s336, 31
        %s339 = smul.addr %s338, 4
        %s340 = scalar_lea.vmem %s6, %s339
        %s341 = smul.u32 16, %s31
        %p343 = scmp.eq.s32.totalorder %s32, 0
        // Predicated region
        $region78: #{gcnk_forward.4} parent=72 // pred_check
          %p344 = pneg %p343
        $region79: #{gcnk_forward.4} parent=72 // pred_check_branch
          %346 = sbr.rel (%p344) target = $region81
        $region80: #{gcnk_forward.4} parent=72 // pred_region
          %347 = vst [vmem:[#allocation2] sm:$0xff] 0.0
          %348 = vst [vmem:[#allocation2 + $0x8] sm:$0xff] 0.0
          %349 = vst [vmem:[#allocation2 + $0x10] sm:$0xff] 0.0
          %350 = vst [vmem:[#allocation2 + $0x18] sm:$0xff] 0.0
          %351 = vst [vmem:[#allocation2 + $0x20] sm:$0xff] 0.0
          %352 = vst [vmem:[#allocation2 + $0x28] sm:$0xff] 0.0
          %353 = vst [vmem:[#allocation2 + $0x30] sm:$0xff] 0.0
          %354 = vst [vmem:[#allocation2 + $0x38] sm:$0xff] 0.0
          %355 = vst [vmem:[#allocation2 + $0x40] sm:$0xff] 0.0
          %356 = vst [vmem:[#allocation2 + $0x48] sm:$0xff] 0.0
          %357 = vst [vmem:[#allocation2 + $0x50] sm:$0xff] 0.0
          %358 = vst [vmem:[#allocation2 + $0x58] sm:$0xff] 0.0
          %359 = vst [vmem:[#allocation2 + $0x60] sm:$0xff] 0.0
          %360 = vst [vmem:[#allocation2 + $0x68] sm:$0xff] 0.0
          %361 = vst [vmem:[#allocation2 + $0x70] sm:$0xff] 0.0
          %362 = vst [vmem:[#allocation2 + $0x78] sm:$0xff] 0.0
        $region81: #{gcnk_forward.4} parent=72 // pred_fallthru
          _
        %s363 = sld [smem:[#allocation5 + %s31]]
        %p364 = scmp.lt.s32.totalorder %s32, %s363
        // Predicated region
        $region82: #{gcnk_forward.4} parent=72 // pred_check
          %p365 = pneg %p364
        $region83: #{gcnk_forward.4} parent=72 // pred_check_branch
          %367 = sbr.rel (%p365) target = $region85
        $region84: #{gcnk_forward.4} parent=72 // pred_region
          %s368 = smul.u32 %s31, 2
          %s369 = sadd.s32 %s368, %s32
          %s370 = sld [smem:[#allocation4 + %s369]]
          %s371 = smul.u32 %s370, 128
          %s372 = sshra.s32 %s371, 3
          %s373 = sand.u32 %s371, 7
          %s374 = smul.addr %s372, 4
          %s375 = scalar_lea.vmem %s3, %s374
          %v376 = vld [vmem:[%s375] sm:$0xf]
          %v377 = vld [vmem:[%s375 + $0x4] sm:$0xf]
          %v378 = vld [vmem:[%s375 + $0x8] sm:$0xf]
          %v379 = vld [vmem:[%s375 + $0xc] sm:$0xf]
          %v380 = vld [vmem:[%s375 + $0x10] sm:$0xf]
          %v381 = vld [vmem:[%s375 + $0x14] sm:$0xf]
          %v382 = vld [vmem:[%s375 + $0x18] sm:$0xf]
          %v383 = vld [vmem:[%s375 + $0x1c] sm:$0xf]
          %v384 = vld [vmem:[%s375 + $0x20] sm:$0xf]
          %v385 = vld [vmem:[%s375 + $0x24] sm:$0xf]
          %v386 = vld [vmem:[%s375 + $0x28] sm:$0xf]
          %v387 = vld [vmem:[%s375 + $0x2c] sm:$0xf]
          %v388 = vld [vmem:[%s375 + $0x30] sm:$0xf]
          %v389 = vld [vmem:[%s375 + $0x34] sm:$0xf]
          %v390 = vld [vmem:[%s375 + $0x38] sm:$0xf]
          %v391 = vld [vmem:[%s375 + $0x3c] sm:$0xf]
          %v392 = vld [vmem:[#allocation2] sm:$0xff]
          %v393 = vld [vmem:[#allocation2 + $0x8] sm:$0xff]
          %v394 = vld [vmem:[#allocation2 + $0x10] sm:$0xff]
          %v395 = vld [vmem:[#allocation2 + $0x18] sm:$0xff]
          %v396 = vld [vmem:[#allocation2 + $0x20] sm:$0xff]
          %v397 = vld [vmem:[#allocation2 + $0x28] sm:$0xff]
          %v398 = vld [vmem:[#allocation2 + $0x30] sm:$0xff]
          %v399 = vld [vmem:[#allocation2 + $0x38] sm:$0xff]
          %v400 = vld [vmem:[#allocation2 + $0x40] sm:$0xff]
          %v401 = vld [vmem:[#allocation2 + $0x48] sm:$0xff]
          %v402 = vld [vmem:[#allocation2 + $0x50] sm:$0xff]
          %v403 = vld [vmem:[#allocation2 + $0x58] sm:$0xff]
          %v404 = vld [vmem:[#allocation2 + $0x60] sm:$0xff]
          %v405 = vld [vmem:[#allocation2 + $0x68] sm:$0xff]
          %v406 = vld [vmem:[#allocation2 + $0x70] sm:$0xff]
          %v407 = vld [vmem:[#allocation2 + $0x78] sm:$0xff]
          %v408 = vld [vmem:[%s309] sm:$0xf]
          %v409 = vld [vmem:[%s309 + $0x4] sm:$0xf]
          %v410 = vld [vmem:[%s309 + $0x8] sm:$0xf]
          %v411 = vld [vmem:[%s309 + $0xc] sm:$0xf]
          %v412 = vld [vmem:[%s309 + $0x10] sm:$0xf]
          %v413 = vld [vmem:[%s309 + $0x14] sm:$0xf]
          %v414 = vld [vmem:[%s309 + $0x18] sm:$0xf]
          %v415 = vld [vmem:[%s309 + $0x1c] sm:$0xf]
          %v416 = vld [vmem:[%s309 + $0x20] sm:$0xf]
          %v417 = vld [vmem:[%s309 + $0x24] sm:$0xf]
          %v418 = vld [vmem:[%s309 + $0x28] sm:$0xf]
          %v419 = vld [vmem:[%s309 + $0x2c] sm:$0xf]
          %v420 = vld [vmem:[%s309 + $0x30] sm:$0xf]
          %v421 = vld [vmem:[%s309 + $0x34] sm:$0xf]
          %v422 = vld [vmem:[%s309 + $0x38] sm:$0xf]
          %v423 = vld [vmem:[%s309 + $0x3c] sm:$0xf]
          %v440 = vunpack.c.l.b16 %v408
          %v441 = vunpack.c.l.b16 %v409
          %v442 = vunpack.c.l.b16 %v410
          %v443 = vunpack.c.l.b16 %v411
          %v444 = vunpack.c.l.b16 %v412
          %v445 = vunpack.c.l.b16 %v413
          %v446 = vunpack.c.l.b16 %v414
          %v447 = vunpack.c.l.b16 %v415
          %v448 = vunpack.c.l.b16 %v416
          %v449 = vunpack.c.l.b16 %v417
          %v450 = vunpack.c.l.b16 %v418
          %v451 = vunpack.c.l.b16 %v419
          %v452 = vunpack.c.l.b16 %v420
          %v453 = vunpack.c.l.b16 %v421
          %v454 = vunpack.c.l.b16 %v422
          %v455 = vunpack.c.l.b16 %v423
          %v456 = vpack.c.b16 %v441, %v440
          %v457 = vpack.c.b16 %v443, %v442
          %v458 = vpack.c.b16 %v445, %v444
          %v459 = vpack.c.b16 %v447, %v446
          %v460 = vpack.c.b16 %v449, %v448
          %v461 = vpack.c.b16 %v451, %v450
          %v462 = vpack.c.b16 %v453, %v452
          %v463 = vpack.c.b16 %v455, %v454
          %v488 = vunpack.c.l.b16 %v376
          %v489 = vunpack.c.l.b16 %v377
          %v490 = vunpack.c.l.b16 %v378
          %v491 = vunpack.c.l.b16 %v379
          %v492 = vunpack.c.l.b16 %v380
          %v493 = vunpack.c.l.b16 %v381
          %v494 = vunpack.c.l.b16 %v382
          %v495 = vunpack.c.l.b16 %v383
          %v496 = vunpack.c.l.b16 %v384
          %v497 = vunpack.c.l.b16 %v385
          %v498 = vunpack.c.l.b16 %v386
          %v499 = vunpack.c.l.b16 %v387
          %v500 = vunpack.c.l.b16 %v388
          %v501 = vunpack.c.l.b16 %v389
          %v502 = vunpack.c.l.b16 %v390
          %v503 = vunpack.c.l.b16 %v391
          %v504 = vpack.c.b16 %v489, %v488
          %v505 = vpack.c.b16 %v491, %v490
          %v506 = vpack.c.b16 %v493, %v492
          %v507 = vpack.c.b16 %v495, %v494
          %v508 = vpack.c.b16 %v497, %v496
          %v509 = vpack.c.b16 %v499, %v498
          %v510 = vpack.c.b16 %v501, %v500
          %v511 = vpack.c.b16 %v503, %v502
          %520 = vmatprep.subr.bf16.mxu0 0
          %521 = vmatpush1.bf16.msra.mxu0 %v504
          %522 = vmatprep.subr.bf16.mxu0 0
          %523 = vmatpush1.bf16.msra.mxu0 %v505
          %524 = vmatprep.subr.bf16.mxu0 0
          %525 = vmatpush1.bf16.msra.mxu0 %v506
          %526 = vmatprep.subr.bf16.mxu0 0
          %527 = vmatpush1.bf16.msra.mxu0 %v507
          %528 = vmatprep.subr.bf16.mxu0 0
          %529 = vmatpush1.bf16.msra.mxu0 %v508
          %530 = vmatprep.subr.bf16.mxu0 0
          %531 = vmatpush1.bf16.msra.mxu0 %v509
          %532 = vmatprep.subr.bf16.mxu0 0
          %533 = vmatpush1.bf16.msra.mxu0 %v510
          %534 = vmatprep.subr.bf16.mxu0 0
          %535 = vmatpush1.bf16.msra.mxu0 %v511
          %536 = vmatprep.subr.bf16.mxu0 0
          %537 = vmatpush1.bf16.msra.mxu0 0
          %538 = vmatprep.subr.bf16.mxu0 0
          %539 = vmatpush1.bf16.msra.mxu0 0
          %540 = vmatprep.subr.bf16.mxu0 0
          %541 = vmatpush1.bf16.msra.mxu0 0
          %542 = vmatprep.subr.bf16.mxu0 0
          %543 = vmatpush1.bf16.msra.mxu0 0
          %544 = vmatprep.subr.bf16.mxu0 0
          %545 = vmatpush1.bf16.msra.mxu0 0
          %546 = vmatprep.subr.bf16.mxu0 0
          %547 = vmatpush1.bf16.msra.mxu0 0
          %548 = vmatprep.subr.bf16.mxu0 0
          %549 = vmatpush1.bf16.msra.mxu0 0
          %550 = vmatprep.subr.bf16.mxu0 0
          %551 = vmatpush1.bf16.msra.mxu0 0
          %552 = vmatprep.mubr.bf16.mxu0 0
          %553 = vmatmul.mubr.bf16.gmra.mrb[0].mxu0 %v456
          %v554 = vpop.f32.mrb[0].mxu0
          %v555 = vadd.f32 0.0, %v554
          %v556 = vpop.f32.mrb[0].mxu0
          %v557 = vpop.f32.mrb[0].mxu0
          %v558 = vadd.f32 0.0, %v557
          %v559 = vpop.f32.mrb[0].mxu0
          %560 = vmatprep.mubr.bf16.mxu0 0
          %561 = vmatmul.mubr.bf16.gmra.mrb[0].mxu0 %v457
          %v562 = vpop.f32.mrb[0].mxu0
          %v563 = vadd.f32 0.0, %v562
          %v564 = vpop.f32.mrb[0].mxu0
          %v565 = vpop.f32.mrb[0].mxu0
          %v566 = vadd.f32 0.0, %v565
          %v567 = vpop.f32.mrb[0].mxu0
          %568 = vmatprep.mubr.bf16.mxu0 0
          %569 = vmatmul.mubr.bf16.gmra.mrb[0].mxu0 %v458
          %v570 = vpop.f32.mrb[0].mxu0
          %v571 = vadd.f32 0.0, %v570
          %v572 = vpop.f32.mrb[0].mxu0
          %v573 = vpop.f32.mrb[0].mxu0
          %v574 = vadd.f32 0.0, %v573
          %v575 = vpop.f32.mrb[0].mxu0
          %576 = vmatprep.mubr.bf16.mxu0 0
          %577 = vmatmul.mubr.bf16.gmra.mrb[0].mxu0 %v459
          %v578 = vpop.f32.mrb[0].mxu0
          %v579 = vadd.f32 0.0, %v578
          %v580 = vpop.f32.mrb[0].mxu0
          %v581 = vpop.f32.mrb[0].mxu0
          %v582 = vadd.f32 0.0, %v581
          %v583 = vpop.f32.mrb[0].mxu0
          %584 = vmatprep.mubr.bf16.mxu0 0
          %585 = vmatmul.mubr.bf16.gmra.mrb[0].mxu0 %v460
          %v586 = vpop.f32.mrb[0].mxu0
          %v587 = vadd.f32 0.0, %v586
          %v588 = vpop.f32.mrb[0].mxu0
          %v589 = vpop.f32.mrb[0].mxu0
          %v590 = vadd.f32 0.0, %v589
          %v591 = vpop.f32.mrb[0].mxu0
          %592 = vmatprep.mubr.bf16.mxu0 0
          %593 = vmatmul.mubr.bf16.gmra.mrb[0].mxu0 %v461
          %v594 = vpop.f32.mrb[0].mxu0
          %v595 = vadd.f32 0.0, %v594
          %v596 = vpop.f32.mrb[0].mxu0
          %v597 = vpop.f32.mrb[0].mxu0
          %v598 = vadd.f32 0.0, %v597
          %v599 = vpop.f32.mrb[0].mxu0
          %600 = vmatprep.mubr.bf16.mxu0 0
          %601 = vmatmul.mubr.bf16.gmra.mrb[0].mxu0 %v462
          %v602 = vpop.f32.mrb[0].mxu0
          %v603 = vadd.f32 0.0, %v602
          %v604 = vpop.f32.mrb[0].mxu0
          %v605 = vpop.f32.mrb[0].mxu0
          %v606 = vadd.f32 0.0, %v605
          %v607 = vpop.f32.mrb[0].mxu0
          %608 = vmatprep.mubr.bf16.mxu0 0
          %609 = vmatmul.mubr.bf16.gmra.mrb[0].mxu0 %v463
          %v610 = vpop.f32.mrb[0].mxu0
          %v611 = vadd.f32 0.0, %v610
          %v612 = vpop.f32.mrb[0].mxu0
          %v613 = vpop.f32.mrb[0].mxu0
          %v614 = vadd.f32 0.0, %v613
          %v615 = vpop.f32.mrb[0].mxu0
          %616 = vdwg.mxu0
          %v617 = vadd.f32 %v392, %v555
          %v618 = vadd.f32 %v393, %v558
          %v619 = vadd.f32 %v394, %v563
          %v620 = vadd.f32 %v395, %v566
          %v621 = vadd.f32 %v396, %v571
          %v622 = vadd.f32 %v397, %v574
          %v623 = vadd.f32 %v398, %v579
          %v624 = vadd.f32 %v399, %v582
          %v625 = vadd.f32 %v400, %v587
          %v626 = vadd.f32 %v401, %v590
          %v627 = vadd.f32 %v402, %v595
          %v628 = vadd.f32 %v403, %v598
          %v629 = vadd.f32 %v404, %v603
          %v630 = vadd.f32 %v405, %v606
          %v631 = vadd.f32 %v406, %v611
          %v632 = vadd.f32 %v407, %v614
          %633 = vst [vmem:[#allocation2] sm:$0xff] %v617
          %634 = vst [vmem:[#allocation2 + $0x8] sm:$0xff] %v618
          %635 = vst [vmem:[#allocation2 + $0x10] sm:$0xff] %v619
          %636 = vst [vmem:[#allocation2 + $0x18] sm:$0xff] %v620
          %637 = vst [vmem:[#allocation2 + $0x20] sm:$0xff] %v621
          %638 = vst [vmem:[#allocation2 + $0x28] sm:$0xff] %v622
          %639 = vst [vmem:[#allocation2 + $0x30] sm:$0xff] %v623
          %640 = vst [vmem:[#allocation2 + $0x38] sm:$0xff] %v624
          %641 = vst [vmem:[#allocation2 + $0x40] sm:$0xff] %v625
          %642 = vst [vmem:[#allocation2 + $0x48] sm:$0xff] %v626
          %643 = vst [vmem:[#allocation2 + $0x50] sm:$0xff] %v627
          %644 = vst [vmem:[#allocation2 + $0x58] sm:$0xff] %v628
          %645 = vst [vmem:[#allocation2 + $0x60] sm:$0xff] %v629
          %646 = vst [vmem:[#allocation2 + $0x68] sm:$0xff] %v630
          %647 = vst [vmem:[#allocation2 + $0x70] sm:$0xff] %v631
          %648 = vst [vmem:[#allocation2 + $0x78] sm:$0xff] %v632
        $region85: #{gcnk_forward.4} parent=72 // pred_fallthru
          _
        %p649 = scmp.eq.s32.totalorder %s32, 1
        // Predicated region
        $region86: #{gcnk_forward.4} parent=72 // pred_check
          %p650 = pneg %p649
        $region87: #{gcnk_forward.4} parent=72 // pred_check_branch
          %652 = sbr.rel (%p650) target = $region89
        $region88: #{gcnk_forward.4} parent=72 // pred_region
          %v653 = vld [vmem:[#allocation2] sm:$0xff]
          %v654 = vld [vmem:[#allocation2 + $0x8] sm:$0xff]
          %v655 = vld [vmem:[#allocation2 + $0x10] sm:$0xff]
          %v656 = vld [vmem:[#allocation2 + $0x18] sm:$0xff]
          %v657 = vld [vmem:[#allocation2 + $0x20] sm:$0xff]
          %v658 = vld [vmem:[#allocation2 + $0x28] sm:$0xff]
          %v659 = vld [vmem:[#allocation2 + $0x30] sm:$0xff]
          %v660 = vld [vmem:[#allocation2 + $0x38] sm:$0xff]
          %v661 = vld [vmem:[#allocation2 + $0x40] sm:$0xff]
          %v662 = vld [vmem:[#allocation2 + $0x48] sm:$0xff]
          %v663 = vld [vmem:[#allocation2 + $0x50] sm:$0xff]
          %v664 = vld [vmem:[#allocation2 + $0x58] sm:$0xff]
          %v665 = vld [vmem:[#allocation2 + $0x60] sm:$0xff]
          %v666 = vld [vmem:[#allocation2 + $0x68] sm:$0xff]
          %v667 = vld [vmem:[#allocation2 + $0x70] sm:$0xff]
          %v668 = vld [vmem:[#allocation2 + $0x78] sm:$0xff]
          %v669 = vld [vmem:[%s4] sm:$0x1]
          %v671 = vlaneseq
          %v672 = vshrl.u32 %v671, 7
          %v673 = vsub.s32 0, %v672
          %v674 = vrot.slane %v669, %v673
          %v676 = vadd.f32 %v653, %v674
          %v677 = vadd.f32 %v654, %v674
          %v678 = vadd.f32 %v655, %v674
          %v679 = vadd.f32 %v656, %v674
          %v680 = vadd.f32 %v657, %v674
          %v681 = vadd.f32 %v658, %v674
          %v682 = vadd.f32 %v659, %v674
          %v683 = vadd.f32 %v660, %v674
          %v684 = vadd.f32 %v661, %v674
          %v685 = vadd.f32 %v662, %v674
          %v686 = vadd.f32 %v663, %v674
          %v687 = vadd.f32 %v664, %v674
          %v688 = vadd.f32 %v665, %v674
          %v689 = vadd.f32 %v666, %v674
          %v690 = vadd.f32 %v667, %v674
          %v691 = vadd.f32 %v668, %v674
          %v692 = vmax.f32 %v676, 0.0
          %v693 = vmax.f32 %v677, 0.0
          %v694 = vmax.f32 %v678, 0.0
          %v695 = vmax.f32 %v679, 0.0
          %v696 = vmax.f32 %v680, 0.0
          %v697 = vmax.f32 %v681, 0.0
          %v698 = vmax.f32 %v682, 0.0
          %v699 = vmax.f32 %v683, 0.0
          %v700 = vmax.f32 %v684, 0.0
          %v701 = vmax.f32 %v685, 0.0
          %v702 = vmax.f32 %v686, 0.0
          %v703 = vmax.f32 %v687, 0.0
          %v704 = vmax.f32 %v688, 0.0
          %v705 = vmax.f32 %v689, 0.0
          %v706 = vmax.f32 %v690, 0.0
          %v707 = vmax.f32 %v691, 0.0
          %v708 = vpack.c.bf16 %v693, %v692
          %v709 = vpack.c.bf16 %v695, %v694
          %v710 = vpack.c.bf16 %v697, %v696
          %v711 = vpack.c.bf16 %v699, %v698
          %v712 = vpack.c.bf16 %v701, %v700
          %v713 = vpack.c.bf16 %v703, %v702
          %v714 = vpack.c.bf16 %v705, %v704
          %v715 = vpack.c.bf16 %v707, %v706
          %v716 = vld [vmem:[%s5] sm:$0xf]
          %v717 = vld [vmem:[%s5 + $0x4] sm:$0xf]
          %v718 = vld [vmem:[%s5 + $0x8] sm:$0xf]
          %v719 = vld [vmem:[%s5 + $0xc] sm:$0xf]
          %v720 = vld [vmem:[%s5 + $0x10] sm:$0xf]
          %v721 = vld [vmem:[%s5 + $0x14] sm:$0xf]
          %v722 = vld [vmem:[%s5 + $0x18] sm:$0xf]
          %v723 = vld [vmem:[%s5 + $0x1c] sm:$0xf]
          %v724 = vld [vmem:[%s5 + $0x20] sm:$0xf]
          %v725 = vld [vmem:[%s5 + $0x24] sm:$0xf]
          %v726 = vld [vmem:[%s5 + $0x28] sm:$0xf]
          %v727 = vld [vmem:[%s5 + $0x2c] sm:$0xf]
          %v728 = vld [vmem:[%s5 + $0x30] sm:$0xf]
          %v729 = vld [vmem:[%s5 + $0x34] sm:$0xf]
          %v730 = vld [vmem:[%s5 + $0x38] sm:$0xf]
          %v731 = vld [vmem:[%s5 + $0x3c] sm:$0xf]
          %v748 = vunpack.c.l.b16 %v716
          %v749 = vunpack.c.l.b16 %v717
          %v750 = vunpack.c.l.b16 %v718
          %v751 = vunpack.c.l.b16 %v719
          %v752 = vunpack.c.l.b16 %v720
          %v753 = vunpack.c.l.b16 %v721
          %v754 = vunpack.c.l.b16 %v722
          %v755 = vunpack.c.l.b16 %v723
          %v756 = vunpack.c.l.b16 %v724
          %v757 = vunpack.c.l.b16 %v725
          %v758 = vunpack.c.l.b16 %v726
          %v759 = vunpack.c.l.b16 %v727
          %v760 = vunpack.c.l.b16 %v728
          %v761 = vunpack.c.l.b16 %v729
          %v762 = vunpack.c.l.b16 %v730
          %v763 = vunpack.c.l.b16 %v731
          %v764 = vpack.c.b16 %v749, %v748
          %v765 = vpack.c.b16 %v751, %v750
          %v766 = vpack.c.b16 %v753, %v752
          %v767 = vpack.c.b16 %v755, %v754
          %v768 = vpack.c.b16 %v757, %v756
          %v769 = vpack.c.b16 %v759, %v758
          %v770 = vpack.c.b16 %v761, %v760
          %v771 = vpack.c.b16 %v763, %v762
          %780 = vmatprep.subr.bf16.mxu0 0
          %781 = vmatpush1.bf16.msra.mxu0 %v764
          %782 = vmatprep.subr.bf16.mxu0 0
          %783 = vmatpush1.bf16.msra.mxu0 %v765
          %784 = vmatprep.subr.bf16.mxu0 0
          %785 = vmatpush1.bf16.msra.mxu0 %v766
          %786 = vmatprep.subr.bf16.mxu0 0
          %787 = vmatpush1.bf16.msra.mxu0 %v767
          %788 = vmatprep.subr.bf16.mxu0 0
          %789 = vmatpush1.bf16.msra.mxu0 %v768
          %790 = vmatprep.subr.bf16.mxu0 0
          %791 = vmatpush1.bf16.msra.mxu0 %v769
          %792 = vmatprep.subr.bf16.mxu0 0
          %793 = vmatpush1.bf16.msra.mxu0 %v770
          %794 = vmatprep.subr.bf16.mxu0 0
          %795 = vmatpush1.bf16.msra.mxu0 %v771
          %796 = vmatprep.subr.bf16.mxu0 0
          %797 = vmatpush1.bf16.msra.mxu0 0
          %798 = vmatprep.subr.bf16.mxu0 0
          %799 = vmatpush1.bf16.msra.mxu0 0
          %800 = vmatprep.subr.bf16.mxu0 0
          %801 = vmatpush1.bf16.msra.mxu0 0
          %802 = vmatprep.subr.bf16.mxu0 0
          %803 = vmatpush1.bf16.msra.mxu0 0
          %804 = vmatprep.subr.bf16.mxu0 0
          %805 = vmatpush1.bf16.msra.mxu0 0
          %806 = vmatprep.subr.bf16.mxu0 0
          %807 = vmatpush1.bf16.msra.mxu0 0
          %808 = vmatprep.subr.bf16.mxu0 0
          %809 = vmatpush1.bf16.msra.mxu0 0
          %810 = vmatprep.subr.bf16.mxu0 0
          %811 = vmatpush1.bf16.msra.mxu0 0
          %812 = vmatprep.mubr.bf16.mxu0 0
          %813 = vmatmul.mubr.bf16.gmra.mrb[0].mxu0 %v708
          %v814 = vpop.f32.mrb[0].mxu0
          %v815 = vadd.f32 0.0, %v814
          %v816 = vpop.f32.mrb[0].mxu0
          %v817 = vpop.f32.mrb[0].mxu0
          %v818 = vadd.f32 0.0, %v817
          %v819 = vpop.f32.mrb[0].mxu0
          %820 = vmatprep.mubr.bf16.mxu0 0
          %821 = vmatmul.mubr.bf16.gmra.mrb[0].mxu0 %v709
          %v822 = vpop.f32.mrb[0].mxu0
          %v823 = vadd.f32 0.0, %v822
          %v824 = vpop.f32.mrb[0].mxu0
          %v825 = vpop.f32.mrb[0].mxu0
          %v826 = vadd.f32 0.0, %v825
          %v827 = vpop.f32.mrb[0].mxu0
          %828 = vmatprep.mubr.bf16.mxu0 0
          %829 = vmatmul.mubr.bf16.gmra.mrb[0].mxu0 %v710
          %v830 = vpop.f32.mrb[0].mxu0
          %v831 = vadd.f32 0.0, %v830
          %v832 = vpop.f32.mrb[0].mxu0
          %v833 = vpop.f32.mrb[0].mxu0
          %v834 = vadd.f32 0.0, %v833
          %v835 = vpop.f32.mrb[0].mxu0
          %836 = vmatprep.mubr.bf16.mxu0 0
          %837 = vmatmul.mubr.bf16.gmra.mrb[0].mxu0 %v711
          %v838 = vpop.f32.mrb[0].mxu0
          %v839 = vadd.f32 0.0, %v838
          %v840 = vpop.f32.mrb[0].mxu0
          %v841 = vpop.f32.mrb[0].mxu0
          %v842 = vadd.f32 0.0, %v841
          %v843 = vpop.f32.mrb[0].mxu0
          %844 = vmatprep.mubr.bf16.mxu0 0
          %845 = vmatmul.mubr.bf16.gmra.mrb[0].mxu0 %v712
          %v846 = vpop.f32.mrb[0].mxu0
          %v847 = vadd.f32 0.0, %v846
          %v848 = vpop.f32.mrb[0].mxu0
          %v849 = vpop.f32.mrb[0].mxu0
          %v850 = vadd.f32 0.0, %v849
          %v851 = vpop.f32.mrb[0].mxu0
          %852 = vmatprep.mubr.bf16.mxu0 0
          %853 = vmatmul.mubr.bf16.gmra.mrb[0].mxu0 %v713
          %v854 = vpop.f32.mrb[0].mxu0
          %v855 = vadd.f32 0.0, %v854
          %v856 = vpop.f32.mrb[0].mxu0
          %v857 = vpop.f32.mrb[0].mxu0
          %v858 = vadd.f32 0.0, %v857
          %v859 = vpop.f32.mrb[0].mxu0
          %860 = vmatprep.mubr.bf16.mxu0 0
          %861 = vmatmul.mubr.bf16.gmra.mrb[0].mxu0 %v714
          %v862 = vpop.f32.mrb[0].mxu0
          %v863 = vadd.f32 0.0, %v862
          %v864 = vpop.f32.mrb[0].mxu0
          %v865 = vpop.f32.mrb[0].mxu0
          %v866 = vadd.f32 0.0, %v865
          %v867 = vpop.f32.mrb[0].mxu0
          %868 = vmatprep.mubr.bf16.mxu0 0
          %869 = vmatmul.mubr.bf16.gmra.mrb[0].mxu0 %v715
          %v870 = vpop.f32.mrb[0].mxu0
          %v871 = vadd.f32 0.0, %v870
          %v872 = vpop.f32.mrb[0].mxu0
          %v873 = vpop.f32.mrb[0].mxu0
          %v874 = vadd.f32 0.0, %v873
          %v875 = vpop.f32.mrb[0].mxu0
          %876 = vdwg.mxu0
          %v877 = vpack.c.bf16 %v818, %v815
          %v878 = vpack.c.bf16 %v826, %v823
          %v879 = vpack.c.bf16 %v834, %v831
          %v880 = vpack.c.bf16 %v842, %v839
          %v881 = vpack.c.bf16 %v850, %v847
          %v882 = vpack.c.bf16 %v858, %v855
          %v883 = vpack.c.bf16 %v866, %v863
          %v884 = vpack.c.bf16 %v874, %v871
          %v893 = vunpack.c.l.b16 %v877
          %v894 = vunpack.c.h.b16 %v877
          %v895 = vunpack.c.l.b16 %v878
          %v896 = vunpack.c.h.b16 %v878
          %v897 = vunpack.c.l.b16 %v879
          %v898 = vunpack.c.h.b16 %v879
          %v899 = vunpack.c.l.b16 %v880
          %v900 = vunpack.c.h.b16 %v880
          %v901 = vunpack.c.l.b16 %v881
          %v902 = vunpack.c.h.b16 %v881
          %v903 = vunpack.c.l.b16 %v882
          %v904 = vunpack.c.h.b16 %v882
          %v905 = vunpack.c.l.b16 %v883
          %v906 = vunpack.c.h.b16 %v883
          %v907 = vunpack.c.l.b16 %v884
          %v908 = vunpack.c.h.b16 %v884
          %v909 = vpack.c.b16 %v893, %v893
          %v910 = vpack.c.b16 %v894, %v894
          %v911 = vpack.c.b16 %v895, %v895
          %v912 = vpack.c.b16 %v896, %v896
          %v913 = vpack.c.b16 %v897, %v897
          %v914 = vpack.c.b16 %v898, %v898
          %v915 = vpack.c.b16 %v899, %v899
          %v916 = vpack.c.b16 %v900, %v900
          %v917 = vpack.c.b16 %v901, %v901
          %v918 = vpack.c.b16 %v902, %v902
          %v919 = vpack.c.b16 %v903, %v903
          %v920 = vpack.c.b16 %v904, %v904
          %v921 = vpack.c.b16 %v905, %v905
          %v922 = vpack.c.b16 %v906, %v906
          %v923 = vpack.c.b16 %v907, %v907
          %v924 = vpack.c.b16 %v908, %v908
          %941 = vst [vmem:[%s340] sm:$0xf] %v909
          %942 = vst [vmem:[%s340 + $0x4] sm:$0xf] %v910
          %943 = vst [vmem:[%s340 + $0x8] sm:$0xf] %v911
          %944 = vst [vmem:[%s340 + $0xc] sm:$0xf] %v912
          %945 = vst [vmem:[%s340 + $0x10] sm:$0xf] %v913
          %946 = vst [vmem:[%s340 + $0x14] sm:$0xf] %v914
          %947 = vst [vmem:[%s340 + $0x18] sm:$0xf] %v915
          %948 = vst [vmem:[%s340 + $0x1c] sm:$0xf] %v916
          %949 = vst [vmem:[%s340 + $0x20] sm:$0xf] %v917
          %950 = vst [vmem:[%s340 + $0x24] sm:$0xf] %v918
          %951 = vst [vmem:[%s340 + $0x28] sm:$0xf] %v919
          %952 = vst [vmem:[%s340 + $0x2c] sm:$0xf] %v920
          %953 = vst [vmem:[%s340 + $0x30] sm:$0xf] %v921
          %954 = vst [vmem:[%s340 + $0x34] sm:$0xf] %v922
          %955 = vst [vmem:[%s340 + $0x38] sm:$0xf] %v923
          %956 = vst [vmem:[%s340 + $0x3c] sm:$0xf] %v924
        $region89: #{gcnk_forward.4} parent=72 // pred_fallthru
          _
        %s957 = smul.u32 16, %s31
        %p958 = scmp.lt.s32.totalorder %s957, 31
        %s959 = scalar_select %p958, %s957, 31
        %s960 = smul.addr %s959, 4
        %s961 = scalar_lea.vmem %s6, %s960
        // Predicated region
        $region90: #{gcnk_forward.4} parent=72 // pred_check
          %p962 = pneg %p154
        $region91: #{gcnk_forward.4} parent=72 // pred_check_branch
          %964 = sbr.rel (%p962) target = $region93
        $region92: #{gcnk_forward.4} parent=72 // pred_region
          %s965 = smul.u32 16, %s31
        $region93: #{gcnk_forward.4} parent=72 // pred_fallthru
          _
      $region73: #{gcnk_forward.4} parent=5 // pred_fallthru
        _
      %p966 = scmp.le.s32.totalorder 2, %s22
      // Predicated region
      $region94: #{gcnk_forward.4} parent=5 // pred_check
        %p967 = pneg %p966
      $region95: #{gcnk_forward.4} parent=5 // pred_check_branch
        %969 = sbr.rel (%p967) target = $region97
      $region96: #{gcnk_forward.4} parent=5 // pred_region
        %s970 = ssub.s32 %s22, 2
        // Predicated region
        $region98: #{gcnk_forward.4} parent=96 // pred_check
          %p971 = pneg %p160
        $region99: #{gcnk_forward.4} parent=96 // pred_check_branch
          %973 = sbr.rel (%p971) target = $region101
        $region100: #{gcnk_forward.4} parent=96 // pred_region
          %s974 = smul.u32 16, %s33
          %p975 = scmp.lt.s32.totalorder %s974, 31
          %s976 = scalar_select %p975, %s974, 31
          %s977 = smul.addr %s976, 4
          %s978 = scalar_lea.vmem %s6, %s977
        $region101: #{gcnk_forward.4} parent=96 // pred_fallthru
          _
      $region97: #{gcnk_forward.4} parent=5 // pred_fallthru
        _
    $region6: #{gcnk_forward.4} parent=1 // loop_footer
      %s26 = sadd.s32 1, %s22
    $region7: #{gcnk_forward.4} parent=1 // loop_footer_branch
      %21 = sbr.rel target = $region3
    $region8: #{gcnk_forward.4} parent=1 // loop_exit
      _

// kernel: gcnk_forward.5
$region0: #{gcnk_forward.5}
  #allocation0 [shape = 'u32[]', space=smem, size = 0x4, offset = 0x4, fixed_abs, tag = 'smem constant byte address 0x4 - core index']
  #allocation1 [shape = 'u32[144,128]{1,0:T(1,128)}', space=vmem, size = 0x12000, scoped, tag = 'internal scratch']
  #allocation2 [shape = 'f32[128,128]{1,0:T(8,128)}', space=vmem, size = 0x10000, scoped, tag = 'scratch operand']
  #allocation3 [shape = 's32[1]{0}', space=sflag, size = 0x4, scoped, tag = 'scoped memory for gcnk_forward.5']
  #allocation4 [shape = 'u8[512]{0}', space=smem, size = 0x200, scoped, tag = 'prefetched SMEM operand 0']
  #allocation5 [shape = 'u8[512]{0}', space=smem, size = 0x200, scoped, tag = 'prefetched SMEM operand 1']
  %s0 = inlined_call_operand.vmem [shape: s32[4], index: 0, kind: input, shape index: {}]
  %s1 = inlined_call_operand.vmem [shape: s32[2], index: 1, kind: input, shape index: {}]
  %s2 = inlined_call_operand.vmem [shape: bf16[256,256], index: 2, kind: input, shape index: {}]
  %s3 = inlined_call_operand.vmem [shape: bf16[256,128], index: 3, kind: input, shape index: {}]
  %s4 = inlined_call_operand.vmem [shape: f32[1,128], index: 4, kind: input, shape index: {}]
  %s5 = inlined_call_operand.vmem [shape: bf16[128,128], index: 5, kind: input, shape index: {}]
  %s6 = inlined_call_operand.vmem [shape: f32[1,128], index: 6, kind: input, shape index: {}]
  %s7 = inlined_call_operand.vmem [shape: f32[256,128], index: 7, kind: output, shape index: {}]
  %s8 = sld [smem:[#allocation0]]
  $region106: #{gcnk_forward.5} parent=0
    _
  %s10 = ssub.s32 1, %s8
  %s11 = scalar_select 0, %s10, %s8
  %s12 = sshll.u32 %s0, 4
  %s13 = int_to_ptr.vmem [resolvable:$true] %s12
  %15 = dma.vmem_to_smem %s13, 16, [#allocation4], [#allocation3]
  %s16 = sshll.u32 %s1, 4
  %s17 = int_to_ptr.vmem [resolvable:$true] %s16
  %19 = dma.vmem_to_smem %s17, 16, [#allocation5], [#allocation3]
  %20 = dma.done [#allocation3], 32
  %21 = sfence
  $region1: #{gcnk_forward.5} parent=0
    #allocation6 [shape = 'u8[65536]{0}', space=vmem, size = 0x10000, scoped, tag = 'input window, operand 2']
    loop: start=0, step=1, limit=6
    $region2: #{gcnk_forward.5} parent=1 // loop_pre_header
      _
    $region3: #{gcnk_forward.5} parent=1 // loop_header
      %s23 = sphi 0, %s27
      %p24 = scmp.ge.s32.totalorder %s23, 6
      %s30 = sphi 0, %s42
      %s31 = sphi 0, %s38
      %s32 = sphi 0, %s30
      %s33 = sphi 0, %s31
      %s34 = sphi 0, %s32
      %s35 = sphi 0, %s33
      %s53 = sphi 0, %s55
      %s56 = sphi 0, %s53
      %s57 = sphi 0, %s56
      %s73 = sphi 0, %s57
      %s77 = sphi 0, %s77
      %s79 = sphi 0, %s77
      %s80 = sphi 0, %s79
      %s94 = sphi 0, %s80
      %s98 = sphi 0, %s98
      %s100 = sphi 0, %s98
      %s101 = sphi 0, %s100
      %s115 = sphi 0, %s101
      %s119 = sphi 0, %s119
      %s121 = sphi 0, %s119
      %s122 = sphi 0, %s121
      %s136 = sphi 0, %s122
      %s140 = sphi 0, %s140
      %s142 = sphi 0, %s140
      %s143 = sphi 0, %s142
      %s157 = sphi 0, %s143
      %s163 = sphi 0, %s165
      %s166 = sphi 0, %s163
      %s167 = sphi 0, %s166
      %s183 = sphi 0, %s167
    $region4: #{gcnk_forward.5} parent=1 // loop_header_branch
      %26 = sbr.rel (%p24) target = $region8
    $region5: #{gcnk_forward.5} parent=1 // loop_body
      %s28 = ssub.s32 %s23, 1
      %s29 = ssub.s32 %s23, 2
      %s36 = sadd.s32 1, %s31
      %p37 = scmp.ge.s32.totalorder %s36, 2
      %s38 = scalar_select %p37, 0, %s36
      %s39 = sadd.s32 1, %s30
      %s40 = scalar_select %p37, %s39, %s30
      %p41 = scmp.ge.s32.totalorder %s40, 2
      %s42 = scalar_select %p41, 0, %s40
      %s43 = smul.u32 %s30, 2
      %s44 = sadd.s32 %s43, %s31
      %s45 = sld [smem:[#allocation4 + %s44]]
      %s46 = smul.u32 %s42, 2
      %s47 = sadd.s32 %s46, %s38
      %s48 = sld [smem:[#allocation4 + %s47]]
      %s49 = ssub.s32 %s30, %s42
      %s50 = ssub.s32 %s45, %s48
      %s51 = sor.u32 %s49, %s50
      %p52 = scmp.eq.s32.totalorder %s51, 0
      %s54 = sadd.s32 %s53, 1
      %s55 = scalar_select %p52, %s53, %s54
      %p58 = pneg %p52
      %p59 = scmp.eq.s32.totalorder %s23, 3
      %p60 = por %p58, %p59
      %p61 = scmp.ne.s32.totalorder %s53, %s56
      %p62 = scmp.eq.s32.totalorder %s23, 0
      %p63 = por %p61, %p62
      %p64 = scmp.ne.s32.totalorder %s53, %s56
      %p65 = scmp.eq.s32.totalorder %s28, 3
      %p66 = por %p64, %p65
      %p67 = scmp.ne.s32.totalorder %s56, %s57
      %p68 = scmp.eq.s32.totalorder %s28, 0
      %p69 = por %p67, %p68
      %p70 = scmp.ne.s32.totalorder %s56, %s57
      %p71 = scmp.eq.s32.totalorder %s29, 3
      %p72 = por %p70, %p71
      %p74 = scmp.ne.s32.totalorder %s57, %s73
      %p75 = scmp.eq.s32.totalorder %s29, 0
      %p76 = por %p74, %p75
      %s78 = sadd.s32 %s77, 1
      %p81 = scmp.eq.s32.totalorder %s23, 3
      %p82 = scmp.ne.s32.totalorder %s77, %s79
      %p83 = scmp.eq.s32.totalorder %s23, 0
      %p84 = por %p82, %p83
      %p85 = scmp.ne.s32.totalorder %s77, %s79
      %p86 = scmp.eq.s32.totalorder %s28, 3
      %p87 = por %p85, %p86
      %p88 = scmp.ne.s32.totalorder %s79, %s80
      %p89 = scmp.eq.s32.totalorder %s28, 0
      %p90 = por %p88, %p89
      %p91 = scmp.ne.s32.totalorder %s79, %s80
      %p92 = scmp.eq.s32.totalorder %s29, 3
      %p93 = por %p91, %p92
      %p95 = scmp.ne.s32.totalorder %s80, %s94
      %p96 = scmp.eq.s32.totalorder %s29, 0
      %p97 = por %p95, %p96
      %s99 = sadd.s32 %s98, 1
      %p102 = scmp.eq.s32.totalorder %s23, 3
      %p103 = scmp.ne.s32.totalorder %s98, %s100
      %p104 = scmp.eq.s32.totalorder %s23, 0
      %p105 = por %p103, %p104
      %p106 = scmp.ne.s32.totalorder %s98, %s100
      %p107 = scmp.eq.s32.totalorder %s28, 3
      %p108 = por %p106, %p107
      %p109 = scmp.ne.s32.totalorder %s100, %s101
      %p110 = scmp.eq.s32.totalorder %s28, 0
      %p111 = por %p109, %p110
      %p112 = scmp.ne.s32.totalorder %s100, %s101
      %p113 = scmp.eq.s32.totalorder %s29, 3
      %p114 = por %p112, %p113
      %p116 = scmp.ne.s32.totalorder %s101, %s115
      %p117 = scmp.eq.s32.totalorder %s29, 0
      %p118 = por %p116, %p117
      %s120 = sadd.s32 %s119, 1
      %p123 = scmp.eq.s32.totalorder %s23, 3
      %p124 = scmp.ne.s32.totalorder %s119, %s121
      %p125 = scmp.eq.s32.totalorder %s23, 0
      %p126 = por %p124, %p125
      %p127 = scmp.ne.s32.totalorder %s119, %s121
      %p128 = scmp.eq.s32.totalorder %s28, 3
      %p129 = por %p127, %p128
      %p130 = scmp.ne.s32.totalorder %s121, %s122
      %p131 = scmp.eq.s32.totalorder %s28, 0
      %p132 = por %p130, %p131
      %p133 = scmp.ne.s32.totalorder %s121, %s122
      %p134 = scmp.eq.s32.totalorder %s29, 3
      %p135 = por %p133, %p134
      %p137 = scmp.ne.s32.totalorder %s122, %s136
      %p138 = scmp.eq.s32.totalorder %s29, 0
      %p139 = por %p137, %p138
      %s141 = sadd.s32 %s140, 1
      %p144 = scmp.eq.s32.totalorder %s23, 3
      %p145 = scmp.ne.s32.totalorder %s140, %s142
      %p146 = scmp.eq.s32.totalorder %s23, 0
      %p147 = por %p145, %p146
      %p148 = scmp.ne.s32.totalorder %s140, %s142
      %p149 = scmp.eq.s32.totalorder %s28, 3
      %p150 = por %p148, %p149
      %p151 = scmp.ne.s32.totalorder %s142, %s143
      %p152 = scmp.eq.s32.totalorder %s28, 0
      %p153 = por %p151, %p152
      %p154 = scmp.ne.s32.totalorder %s142, %s143
      %p155 = scmp.eq.s32.totalorder %s29, 3
      %p156 = por %p154, %p155
      %p158 = scmp.ne.s32.totalorder %s143, %s157
      %p159 = scmp.eq.s32.totalorder %s29, 0
      %p160 = por %p158, %p159
      %s161 = ssub.s32 %s30, %s42
      %p162 = scmp.eq.s32.totalorder %s161, 0
      %s164 = sadd.s32 %s163, 1
      %s165 = scalar_select %p162, %s163, %s164
      %p168 = pneg %p162
      %p169 = scmp.eq.s32.totalorder %s23, 3
      %p170 = por %p168, %p169
      %p171 = scmp.ne.s32.totalorder %s163, %s166
      %p172 = scmp.eq.s32.totalorder %s23, 0
      %p173 = por %p171, %p172
      %p174 = scmp.ne.s32.totalorder %s163, %s166
      %p175 = scmp.eq.s32.totalorder %s28, 3
      %p176 = por %p174, %p175
      %p177 = scmp.ne.s32.totalorder %s166, %s167
      %p178 = scmp.eq.s32.totalorder %s28, 0
      %p179 = por %p177, %p178
      %p180 = scmp.ne.s32.totalorder %s166, %s167
      %p181 = scmp.eq.s32.totalorder %s29, 3
      %p182 = por %p180, %p181
      %p184 = scmp.ne.s32.totalorder %s167, %s183
      %p185 = scmp.eq.s32.totalorder %s29, 0
      %p186 = por %p184, %p185
      %p187 = scmp.le.s32.totalorder 1, %s23
      %p188 = scmp.lt.s32.totalorder %s23, 5
      %p189 = pnand %p187, %p188
      %p190 = pneg %p189
      // Predicated region
      $region9: #{gcnk_forward.5} parent=5 // pred_check
        _
      $region10: #{gcnk_forward.5} parent=5 // pred_check_branch
        %192 = sbr.rel (%p189) target = $region12
      $region11: #{gcnk_forward.5} parent=5 // pred_region
        %s193 = ssub.s32 %s23, 1
        // Predicated region
        $region13: #{gcnk_forward.5} parent=11 // pred_check
          %p194 = pneg %p90
        $region14: #{gcnk_forward.5} parent=11 // pred_check_branch
          %196 = sbr.rel (%p194) target = $region16
        $region15: #{gcnk_forward.5} parent=11 // pred_region
          _
        $region16: #{gcnk_forward.5} parent=11 // pred_fallthru
          _
        // Predicated region
        $region17: #{gcnk_forward.5} parent=11 // pred_check
          %p197 = pneg %p111
        $region18: #{gcnk_forward.5} parent=11 // pred_check_branch
          %199 = sbr.rel (%p197) target = $region20
        $region19: #{gcnk_forward.5} parent=11 // pred_region
          _
        $region20: #{gcnk_forward.5} parent=11 // pred_fallthru
          _
        // Predicated region
        $region21: #{gcnk_forward.5} parent=11 // pred_check
          %p200 = pneg %p132
        $region22: #{gcnk_forward.5} parent=11 // pred_check_branch
          %202 = sbr.rel (%p200) target = $region24
        $region23: #{gcnk_forward.5} parent=11 // pred_region
          _
        $region24: #{gcnk_forward.5} parent=11 // pred_fallthru
          _
        // Predicated region
        $region25: #{gcnk_forward.5} parent=11 // pred_check
          %p203 = pneg %p153
        $region26: #{gcnk_forward.5} parent=11 // pred_check_branch
          %205 = sbr.rel (%p203) target = $region28
        $region27: #{gcnk_forward.5} parent=11 // pred_region
          _
        $region28: #{gcnk_forward.5} parent=11 // pred_fallthru
          _
      $region12: #{gcnk_forward.5} parent=5 // pred_fallthru
        _
      %p206 = scmp.lt.s32.totalorder %s23, 4
      // Predicated region
      $region29: #{gcnk_forward.5} parent=5 // pred_check
        %p207 = pneg %p206
      $region30: #{gcnk_forward.5} parent=5 // pred_check_branch
        %209 = sbr.rel (%p207) target = $region32
      $region31: #{gcnk_forward.5} parent=5 // pred_region
        // Predicated region
        $region33: #{gcnk_forward.5} parent=31 // pred_check
          %p210 = pneg %p63
        $region34: #{gcnk_forward.5} parent=31 // pred_check_branch
          %212 = sbr.rel (%p210) target = $region36
        $region35: #{gcnk_forward.5} parent=31 // pred_region
          %s213 = sand.u32 %s53, 1
          %s214 = sand.u32 %s53, 1
          %s215 = smul.addr %s214, 64
          %s216 = scalar_lea.vmem [#allocation6], %s215
          %s217 = smul.u32 %s30, 2
          %s218 = sadd.s32 %s217, %s31
          %s219 = sld [smem:[#allocation4 + %s218]]
          %s220 = smul.u32 16, %s30
          %s221 = smul.addr %s220, 2
          %s222 = sadd.s32 %s219, %s221
          %s223 = smul.addr %s222, 4
          %s224 = scalar_lea.vmem %s2, %s223
          // Predicated region
          $region37: #{gcnk_forward.5} parent=35 // pred_check
            _
          $region38: #{gcnk_forward.5} parent=35 // pred_check_branch
            %226 = sbr.rel (0) target = $region40
          $region39: #{gcnk_forward.5} parent=35 // pred_region
            // Predicated region
            $region41: #{gcnk_forward.5} parent=39 // pred_check
              _
            $region42: #{gcnk_forward.5} parent=39 // pred_check_branch
              %228 = sbr.rel target = $region44
            $region43: #{gcnk_forward.5} parent=39 // pred_region
              // Predicated region
              $region56: #{gcnk_forward.5} parent=43 // pred_check
                _
              $region57: #{gcnk_forward.5} parent=43 // pred_check_branch
                %273 = sbr.rel (0) target = $region59
              $region58: #{gcnk_forward.5} parent=43 // pred_region
                loop: start=0, step=1, limit=1
                $region60: #{gcnk_forward.5} parent=58 // loop_pre_header
                  _
                $region61: #{gcnk_forward.5} parent=58 // loop_header
                  %s275 = sphi 0, %s279
                  %p276 = scmp.ge.s32.totalorder %s275, 1
                  %s280 = sphi %s224, %s224
                  %s281 = sphi %s216, %s216
                $region62: #{gcnk_forward.5} parent=58 // loop_header_branch
                  %278 = sbr.rel (%p276) target = $region66
                $region63: #{gcnk_forward.5} parent=58 // loop_body
                  _
                $region64: #{gcnk_forward.5} parent=58 // loop_footer
                  %s279 = sadd.s32 1, %s275
                $region65: #{gcnk_forward.5} parent=58 // loop_footer_branch
                  %274 = sbr.rel target = $region61
                $region66: #{gcnk_forward.5} parent=58 // loop_exit
                  _
                loop: start=0, step=1, limit=1
                $region67: #{gcnk_forward.5} parent=58 // loop_pre_header
                  _
                $region68: #{gcnk_forward.5} parent=58 // loop_header
                  %s284 = sphi 0, %s288
                  %p285 = scmp.ge.s32.totalorder %s284, 1
                  %s289 = sphi %s224, %s224
                  %s290 = sphi %s216, %s216
                $region69: #{gcnk_forward.5} parent=58 // loop_header_branch
                  %287 = sbr.rel (%p285) target = $region73
                $region70: #{gcnk_forward.5} parent=58 // loop_body
                  %v291 = vld [vmem:[%s289] sm:$0xf]
                  %292 = vst [vmem:[%s290] sm:$0xf] %v291
                  %v293 = vld [vmem:[%s289 + $0x8] sm:$0xf]
                  %294 = vst [vmem:[%s290 + $0x4] sm:$0xf] %v293
                  %v295 = vld [vmem:[%s289 + $0x10] sm:$0xf]
                  %296 = vst [vmem:[%s290 + $0x8] sm:$0xf] %v295
                  %v297 = vld [vmem:[%s289 + $0x18] sm:$0xf]
                  %298 = vst [vmem:[%s290 + $0xc] sm:$0xf] %v297
                  %v299 = vld [vmem:[%s289 + $0x20] sm:$0xf]
                  %300 = vst [vmem:[%s290 + $0x10] sm:$0xf] %v299
                  %v301 = vld [vmem:[%s289 + $0x28] sm:$0xf]
                  %302 = vst [vmem:[%s290 + $0x14] sm:$0xf] %v301
                  %v303 = vld [vmem:[%s289 + $0x30] sm:$0xf]
                  %304 = vst [vmem:[%s290 + $0x18] sm:$0xf] %v303
                  %v305 = vld [vmem:[%s289 + $0x38] sm:$0xf]
                  %306 = vst [vmem:[%s290 + $0x1c] sm:$0xf] %v305
                  %v307 = vld [vmem:[%s289 + $0x40] sm:$0xf]
                  %308 = vst [vmem:[%s290 + $0x20] sm:$0xf] %v307
                  %v309 = vld [vmem:[%s289 + $0x48] sm:$0xf]
                  %310 = vst [vmem:[%s290 + $0x24] sm:$0xf] %v309
                  %v311 = vld [vmem:[%s289 + $0x50] sm:$0xf]
                  %312 = vst [vmem:[%s290 + $0x28] sm:$0xf] %v311
                  %v313 = vld [vmem:[%s289 + $0x58] sm:$0xf]
                  %314 = vst [vmem:[%s290 + $0x2c] sm:$0xf] %v313
                  %v315 = vld [vmem:[%s289 + $0x60] sm:$0xf]
                  %316 = vst [vmem:[%s290 + $0x30] sm:$0xf] %v315
                  %v317 = vld [vmem:[%s289 + $0x68] sm:$0xf]
                  %318 = vst [vmem:[%s290 + $0x34] sm:$0xf] %v317
                  %v319 = vld [vmem:[%s289 + $0x70] sm:$0xf]
                  %320 = vst [vmem:[%s290 + $0x38] sm:$0xf] %v319
                  %v321 = vld [vmem:[%s289 + $0x78] sm:$0xf]
                  %322 = vst [vmem:[%s290 + $0x3c] sm:$0xf] %v321
                $region71: #{gcnk_forward.5} parent=58 // loop_footer
                  %s288 = sadd.s32 1, %s284
                $region72: #{gcnk_forward.5} parent=58 // loop_footer_branch
                  %283 = sbr.rel target = $region68
                $region73: #{gcnk_forward.5} parent=58 // loop_exit
                  _
              $region59: #{gcnk_forward.5} parent=43 // pred_fallthru
                _
            $region44: #{gcnk_forward.5} parent=39 // pred_fallthru
              _
            // Predicated region
            $region45: #{gcnk_forward.5} parent=39 // pred_check
              _
            $region46: #{gcnk_forward.5} parent=39 // pred_check_branch
              %230 = sbr.rel (0) target = $region48
            $region47: #{gcnk_forward.5} parent=39 // pred_region
              loop: start=0, step=1, limit=1
              $region49: #{gcnk_forward.5} parent=47 // loop_pre_header
                _
              $region50: #{gcnk_forward.5} parent=47 // loop_header
                %s233 = sphi 0, %s237
                %p234 = scmp.ge.s32.totalorder %s233, 1
                %s238 = sphi %s224, %s224
                %s239 = sphi %s216, %s216
              $region51: #{gcnk_forward.5} parent=47 // loop_header_branch
                %236 = sbr.rel (%p234) target = $region55
              $region52: #{gcnk_forward.5} parent=47 // loop_body
                %v240 = vld [vmem:[%s238] sm:$0xf]
                %241 = vst [vmem:[%s239] sm:$0xf] %v240
                %v242 = vld [vmem:[%s238 + $0x8] sm:$0xf]
                %243 = vst [vmem:[%s239 + $0x4] sm:$0xf] %v242
                %v244 = vld [vmem:[%s238 + $0x10] sm:$0xf]
                %245 = vst [vmem:[%s239 + $0x8] sm:$0xf] %v244
                %v246 = vld [vmem:[%s238 + $0x18] sm:$0xf]
                %247 = vst [vmem:[%s239 + $0xc] sm:$0xf] %v246
                %v248 = vld [vmem:[%s238 + $0x20] sm:$0xf]
                %249 = vst [vmem:[%s239 + $0x10] sm:$0xf] %v248
                %v250 = vld [vmem:[%s238 + $0x28] sm:$0xf]
                %251 = vst [vmem:[%s239 + $0x14] sm:$0xf] %v250
                %v252 = vld [vmem:[%s238 + $0x30] sm:$0xf]
                %253 = vst [vmem:[%s239 + $0x18] sm:$0xf] %v252
                %v254 = vld [vmem:[%s238 + $0x38] sm:$0xf]
                %255 = vst [vmem:[%s239 + $0x1c] sm:$0xf] %v254
                %v256 = vld [vmem:[%s238 + $0x40] sm:$0xf]
                %257 = vst [vmem:[%s239 + $0x20] sm:$0xf] %v256
                %v258 = vld [vmem:[%s238 + $0x48] sm:$0xf]
                %259 = vst [vmem:[%s239 + $0x24] sm:$0xf] %v258
                %v260 = vld [vmem:[%s238 + $0x50] sm:$0xf]
                %261 = vst [vmem:[%s239 + $0x28] sm:$0xf] %v260
                %v262 = vld [vmem:[%s238 + $0x58] sm:$0xf]
                %263 = vst [vmem:[%s239 + $0x2c] sm:$0xf] %v262
                %v264 = vld [vmem:[%s238 + $0x60] sm:$0xf]
                %265 = vst [vmem:[%s239 + $0x30] sm:$0xf] %v264
                %v266 = vld [vmem:[%s238 + $0x68] sm:$0xf]
                %267 = vst [vmem:[%s239 + $0x34] sm:$0xf] %v266
                %v268 = vld [vmem:[%s238 + $0x70] sm:$0xf]
                %269 = vst [vmem:[%s239 + $0x38] sm:$0xf] %v268
                %v270 = vld [vmem:[%s238 + $0x78] sm:$0xf]
                %271 = vst [vmem:[%s239 + $0x3c] sm:$0xf] %v270
              $region53: #{gcnk_forward.5} parent=47 // loop_footer
                %s237 = sadd.s32 1, %s233
              $region54: #{gcnk_forward.5} parent=47 // loop_footer_branch
                %232 = sbr.rel target = $region50
              $region55: #{gcnk_forward.5} parent=47 // loop_exit
                _
            $region48: #{gcnk_forward.5} parent=39 // pred_fallthru
              _
          $region40: #{gcnk_forward.5} parent=35 // pred_fallthru
            _
          %323 = vnop
        $region36: #{gcnk_forward.5} parent=31 // pred_fallthru
          _
      $region32: #{gcnk_forward.5} parent=5 // pred_fallthru
        _
      %p324 = scmp.le.s32.totalorder 1, %s23
      %p325 = scmp.lt.s32.totalorder %s23, 5
      %p326 = pnand %p324, %p325
      %p327 = pneg %p326
      // Predicated region
      $region74: #{gcnk_forward.5} parent=5 // pred_check
        _
      $region75: #{gcnk_forward.5} parent=5 // pred_check_branch
        %329 = sbr.rel (%p326) target = $region77
      $region76: #{gcnk_forward.5} parent=5 // pred_region
        %s330 = ssub.s32 %s23, 1
        %s331 = sand.u32 %s56, 1
        %s332 = sand.u32 %s56, 1
        %s333 = smul.addr %s332, 64
        %s334 = scalar_lea.vmem [#allocation6], %s333
        // Predicated region
        $region78: #{gcnk_forward.5} parent=76 // pred_check
          %p335 = pneg %p69
        $region79: #{gcnk_forward.5} parent=76 // pred_check_branch
          %337 = sbr.rel (%p335) target = $region81
        $region80: #{gcnk_forward.5} parent=76 // pred_region
          _
        $region81: #{gcnk_forward.5} parent=76 // pred_fallthru
          _
        %s338 = sand.u32 %s56, 1
        %s339 = sand.u32 %s56, 1
        %s340 = smul.addr %s339, 64
        %s341 = scalar_lea.vmem [#allocation6], %s340
        %p342 = pneg %p69
        %p343 = pneg %p66
        %p344 = pneg %p90
        %p345 = pneg %p87
        %p346 = pneg %p111
        %p347 = pneg %p108
        %p348 = pneg %p132
        %p349 = pneg %p129
        %p350 = pneg %p153
        %p351 = pneg %p150
        %p352 = pneg %p179
        %p353 = pneg %p176
        %s354 = smul.u32 16, %s32
        %p355 = scmp.lt.s32.totalorder %s354, 31
        %s356 = scalar_select %p355, %s354, 31
        %s357 = smul.addr %s356, 8
        %s358 = scalar_lea.vmem %s7, %s357
        %s359 = smul.u32 %s32, 2
        %s360 = sadd.s32 %s359, %s33
        %s361 = sld [smem:[#allocation4 + %s360]]
        %s362 = smul.u32 16, %s32
        %s363 = smul.u32 16, %s32
        %p364 = scmp.lt.s32.totalorder %s363, 31
        %s365 = scalar_select %p364, %s363, 31
        %s366 = smul.addr %s365, 8
        %s367 = scalar_lea.vmem %s7, %s366
        %s368 = smul.u32 16, %s32
        %p370 = scmp.eq.s32.totalorder %s33, 0
        // Predicated region
        $region82: #{gcnk_forward.5} parent=76 // pred_check
          %p371 = pneg %p370
        $region83: #{gcnk_forward.5} parent=76 // pred_check_branch
          %373 = sbr.rel (%p371) target = $region85
        $region84: #{gcnk_forward.5} parent=76 // pred_region
          %374 = vst [vmem:[#allocation2] sm:$0xff] 0.0
          %375 = vst [vmem:[#allocation2 + $0x8] sm:$0xff] 0.0
          %376 = vst [vmem:[#allocation2 + $0x10] sm:$0xff] 0.0
          %377 = vst [vmem:[#allocation2 + $0x18] sm:$0xff] 0.0
          %378 = vst [vmem:[#allocation2 + $0x20] sm:$0xff] 0.0
          %379 = vst [vmem:[#allocation2 + $0x28] sm:$0xff] 0.0
          %380 = vst [vmem:[#allocation2 + $0x30] sm:$0xff] 0.0
          %381 = vst [vmem:[#allocation2 + $0x38] sm:$0xff] 0.0
          %382 = vst [vmem:[#allocation2 + $0x40] sm:$0xff] 0.0
          %383 = vst [vmem:[#allocation2 + $0x48] sm:$0xff] 0.0
          %384 = vst [vmem:[#allocation2 + $0x50] sm:$0xff] 0.0
          %385 = vst [vmem:[#allocation2 + $0x58] sm:$0xff] 0.0
          %386 = vst [vmem:[#allocation2 + $0x60] sm:$0xff] 0.0
          %387 = vst [vmem:[#allocation2 + $0x68] sm:$0xff] 0.0
          %388 = vst [vmem:[#allocation2 + $0x70] sm:$0xff] 0.0
          %389 = vst [vmem:[#allocation2 + $0x78] sm:$0xff] 0.0
        $region85: #{gcnk_forward.5} parent=76 // pred_fallthru
          _
        %s390 = sld [smem:[#allocation5 + %s32]]
        %p391 = scmp.lt.s32.totalorder %s33, %s390
        // Predicated region
        $region86: #{gcnk_forward.5} parent=76 // pred_check
          %p392 = pneg %p391
        $region87: #{gcnk_forward.5} parent=76 // pred_check_branch
          %394 = sbr.rel (%p392) target = $region89
        $region88: #{gcnk_forward.5} parent=76 // pred_region
          %s395 = smul.u32 %s32, 2
          %s396 = sadd.s32 %s395, %s33
          %s397 = sld [smem:[#allocation4 + %s396]]
          %s398 = smul.u32 %s397, 128
          %s399 = sshra.s32 %s398, 3
          %s400 = sand.u32 %s398, 7
          %s401 = smul.addr %s399, 4
          %s402 = scalar_lea.vmem %s3, %s401
          %v403 = vld [vmem:[%s402] sm:$0xf]
          %v404 = vld [vmem:[%s402 + $0x4] sm:$0xf]
          %v405 = vld [vmem:[%s402 + $0x8] sm:$0xf]
          %v406 = vld [vmem:[%s402 + $0xc] sm:$0xf]
          %v407 = vld [vmem:[%s402 + $0x10] sm:$0xf]
          %v408 = vld [vmem:[%s402 + $0x14] sm:$0xf]
          %v409 = vld [vmem:[%s402 + $0x18] sm:$0xf]
          %v410 = vld [vmem:[%s402 + $0x1c] sm:$0xf]
          %v411 = vld [vmem:[%s402 + $0x20] sm:$0xf]
          %v412 = vld [vmem:[%s402 + $0x24] sm:$0xf]
          %v413 = vld [vmem:[%s402 + $0x28] sm:$0xf]
          %v414 = vld [vmem:[%s402 + $0x2c] sm:$0xf]
          %v415 = vld [vmem:[%s402 + $0x30] sm:$0xf]
          %v416 = vld [vmem:[%s402 + $0x34] sm:$0xf]
          %v417 = vld [vmem:[%s402 + $0x38] sm:$0xf]
          %v418 = vld [vmem:[%s402 + $0x3c] sm:$0xf]
          %v419 = vld [vmem:[#allocation2] sm:$0xff]
          %v420 = vld [vmem:[#allocation2 + $0x8] sm:$0xff]
          %v421 = vld [vmem:[#allocation2 + $0x10] sm:$0xff]
          %v422 = vld [vmem:[#allocation2 + $0x18] sm:$0xff]
          %v423 = vld [vmem:[#allocation2 + $0x20] sm:$0xff]
          %v424 = vld [vmem:[#allocation2 + $0x28] sm:$0xff]
          %v425 = vld [vmem:[#allocation2 + $0x30] sm:$0xff]
          %v426 = vld [vmem:[#allocation2 + $0x38] sm:$0xff]
          %v427 = vld [vmem:[#allocation2 + $0x40] sm:$0xff]
          %v428 = vld [vmem:[#allocation2 + $0x48] sm:$0xff]
          %v429 = vld [vmem:[#allocation2 + $0x50] sm:$0xff]
          %v430 = vld [vmem:[#allocation2 + $0x58] sm:$0xff]
          %v431 = vld [vmem:[#allocation2 + $0x60] sm:$0xff]
          %v432 = vld [vmem:[#allocation2 + $0x68] sm:$0xff]
          %v433 = vld [vmem:[#allocation2 + $0x70] sm:$0xff]
          %v434 = vld [vmem:[#allocation2 + $0x78] sm:$0xff]
          %v435 = vld [vmem:[%s334] sm:$0xf]
          %v436 = vld [vmem:[%s334 + $0x4] sm:$0xf]
          %v437 = vld [vmem:[%s334 + $0x8] sm:$0xf]
          %v438 = vld [vmem:[%s334 + $0xc] sm:$0xf]
          %v439 = vld [vmem:[%s334 + $0x10] sm:$0xf]
          %v440 = vld [vmem:[%s334 + $0x14] sm:$0xf]
          %v441 = vld [vmem:[%s334 + $0x18] sm:$0xf]
          %v442 = vld [vmem:[%s334 + $0x1c] sm:$0xf]
          %v443 = vld [vmem:[%s334 + $0x20] sm:$0xf]
          %v444 = vld [vmem:[%s334 + $0x24] sm:$0xf]
          %v445 = vld [vmem:[%s334 + $0x28] sm:$0xf]
          %v446 = vld [vmem:[%s334 + $0x2c] sm:$0xf]
          %v447 = vld [vmem:[%s334 + $0x30] sm:$0xf]
          %v448 = vld [vmem:[%s334 + $0x34] sm:$0xf]
          %v449 = vld [vmem:[%s334 + $0x38] sm:$0xf]
          %v450 = vld [vmem:[%s334 + $0x3c] sm:$0xf]
          %v467 = vunpack.c.l.b16 %v435
          %v468 = vunpack.c.l.b16 %v436
          %v469 = vunpack.c.l.b16 %v437
          %v470 = vunpack.c.l.b16 %v438
          %v471 = vunpack.c.l.b16 %v439
          %v472 = vunpack.c.l.b16 %v440
          %v473 = vunpack.c.l.b16 %v441
          %v474 = vunpack.c.l.b16 %v442
          %v475 = vunpack.c.l.b16 %v443
          %v476 = vunpack.c.l.b16 %v444
          %v477 = vunpack.c.l.b16 %v445
          %v478 = vunpack.c.l.b16 %v446
          %v479 = vunpack.c.l.b16 %v447
          %v480 = vunpack.c.l.b16 %v448
          %v481 = vunpack.c.l.b16 %v449
          %v482 = vunpack.c.l.b16 %v450
          %v483 = vpack.c.b16 %v468, %v467
          %v484 = vpack.c.b16 %v470, %v469
          %v485 = vpack.c.b16 %v472, %v471
          %v486 = vpack.c.b16 %v474, %v473
          %v487 = vpack.c.b16 %v476, %v475
          %v488 = vpack.c.b16 %v478, %v477
          %v489 = vpack.c.b16 %v480, %v479
          %v490 = vpack.c.b16 %v482, %v481
          %v515 = vunpack.c.l.b16 %v403
          %v516 = vunpack.c.l.b16 %v404
          %v517 = vunpack.c.l.b16 %v405
          %v518 = vunpack.c.l.b16 %v406
          %v519 = vunpack.c.l.b16 %v407
          %v520 = vunpack.c.l.b16 %v408
          %v521 = vunpack.c.l.b16 %v409
          %v522 = vunpack.c.l.b16 %v410
          %v523 = vunpack.c.l.b16 %v411
          %v524 = vunpack.c.l.b16 %v412
          %v525 = vunpack.c.l.b16 %v413
          %v526 = vunpack.c.l.b16 %v414
          %v527 = vunpack.c.l.b16 %v415
          %v528 = vunpack.c.l.b16 %v416
          %v529 = vunpack.c.l.b16 %v417
          %v530 = vunpack.c.l.b16 %v418
          %v531 = vpack.c.b16 %v516, %v515
          %v532 = vpack.c.b16 %v518, %v517
          %v533 = vpack.c.b16 %v520, %v519
          %v534 = vpack.c.b16 %v522, %v521
          %v535 = vpack.c.b16 %v524, %v523
          %v536 = vpack.c.b16 %v526, %v525
          %v537 = vpack.c.b16 %v528, %v527
          %v538 = vpack.c.b16 %v530, %v529
          %547 = vmatprep.subr.bf16.mxu0 0
          %548 = vmatpush1.bf16.msra.mxu0 %v531
          %549 = vmatprep.subr.bf16.mxu0 0
          %550 = vmatpush1.bf16.msra.mxu0 %v532
          %551 = vmatprep.subr.bf16.mxu0 0
          %552 = vmatpush1.bf16.msra.mxu0 %v533
          %553 = vmatprep.subr.bf16.mxu0 0
          %554 = vmatpush1.bf16.msra.mxu0 %v534
          %555 = vmatprep.subr.bf16.mxu0 0
          %556 = vmatpush1.bf16.msra.mxu0 %v535
          %557 = vmatprep.subr.bf16.mxu0 0
          %558 = vmatpush1.bf16.msra.mxu0 %v536
          %559 = vmatprep.subr.bf16.mxu0 0
          %560 = vmatpush1.bf16.msra.mxu0 %v537
          %561 = vmatprep.subr.bf16.mxu0 0
          %562 = vmatpush1.bf16.msra.mxu0 %v538
          %563 = vmatprep.subr.bf16.mxu0 0
          %564 = vmatpush1.bf16.msra.mxu0 0
          %565 = vmatprep.subr.bf16.mxu0 0
          %566 = vmatpush1.bf16.msra.mxu0 0
          %567 = vmatprep.subr.bf16.mxu0 0
          %568 = vmatpush1.bf16.msra.mxu0 0
          %569 = vmatprep.subr.bf16.mxu0 0
          %570 = vmatpush1.bf16.msra.mxu0 0
          %571 = vmatprep.subr.bf16.mxu0 0
          %572 = vmatpush1.bf16.msra.mxu0 0
          %573 = vmatprep.subr.bf16.mxu0 0
          %574 = vmatpush1.bf16.msra.mxu0 0
          %575 = vmatprep.subr.bf16.mxu0 0
          %576 = vmatpush1.bf16.msra.mxu0 0
          %577 = vmatprep.subr.bf16.mxu0 0
          %578 = vmatpush1.bf16.msra.mxu0 0
          %579 = vmatprep.mubr.bf16.mxu0 0
          %580 = vmatmul.mubr.bf16.gmra.mrb[0].mxu0 %v483
          %v581 = vpop.f32.mrb[0].mxu0
          %v582 = vadd.f32 0.0, %v581
          %v583 = vpop.f32.mrb[0].mxu0
          %v584 = vpop.f32.mrb[0].mxu0
          %v585 = vadd.f32 0.0, %v584
          %v586 = vpop.f32.mrb[0].mxu0
          %587 = vmatprep.mubr.bf16.mxu0 0
          %588 = vmatmul.mubr.bf16.gmra.mrb[0].mxu0 %v484
          %v589 = vpop.f32.mrb[0].mxu0
          %v590 = vadd.f32 0.0, %v589
          %v591 = vpop.f32.mrb[0].mxu0
          %v592 = vpop.f32.mrb[0].mxu0
          %v593 = vadd.f32 0.0, %v592
          %v594 = vpop.f32.mrb[0].mxu0
          %595 = vmatprep.mubr.bf16.mxu0 0
          %596 = vmatmul.mubr.bf16.gmra.mrb[0].mxu0 %v485
          %v597 = vpop.f32.mrb[0].mxu0
          %v598 = vadd.f32 0.0, %v597
          %v599 = vpop.f32.mrb[0].mxu0
          %v600 = vpop.f32.mrb[0].mxu0
          %v601 = vadd.f32 0.0, %v600
          %v602 = vpop.f32.mrb[0].mxu0
          %603 = vmatprep.mubr.bf16.mxu0 0
          %604 = vmatmul.mubr.bf16.gmra.mrb[0].mxu0 %v486
          %v605 = vpop.f32.mrb[0].mxu0
          %v606 = vadd.f32 0.0, %v605
          %v607 = vpop.f32.mrb[0].mxu0
          %v608 = vpop.f32.mrb[0].mxu0
          %v609 = vadd.f32 0.0, %v608
          %v610 = vpop.f32.mrb[0].mxu0
          %611 = vmatprep.mubr.bf16.mxu0 0
          %612 = vmatmul.mubr.bf16.gmra.mrb[0].mxu0 %v487
          %v613 = vpop.f32.mrb[0].mxu0
          %v614 = vadd.f32 0.0, %v613
          %v615 = vpop.f32.mrb[0].mxu0
          %v616 = vpop.f32.mrb[0].mxu0
          %v617 = vadd.f32 0.0, %v616
          %v618 = vpop.f32.mrb[0].mxu0
          %619 = vmatprep.mubr.bf16.mxu0 0
          %620 = vmatmul.mubr.bf16.gmra.mrb[0].mxu0 %v488
          %v621 = vpop.f32.mrb[0].mxu0
          %v622 = vadd.f32 0.0, %v621
          %v623 = vpop.f32.mrb[0].mxu0
          %v624 = vpop.f32.mrb[0].mxu0
          %v625 = vadd.f32 0.0, %v624
          %v626 = vpop.f32.mrb[0].mxu0
          %627 = vmatprep.mubr.bf16.mxu0 0
          %628 = vmatmul.mubr.bf16.gmra.mrb[0].mxu0 %v489
          %v629 = vpop.f32.mrb[0].mxu0
          %v630 = vadd.f32 0.0, %v629
          %v631 = vpop.f32.mrb[0].mxu0
          %v632 = vpop.f32.mrb[0].mxu0
          %v633 = vadd.f32 0.0, %v632
          %v634 = vpop.f32.mrb[0].mxu0
          %635 = vmatprep.mubr.bf16.mxu0 0
          %636 = vmatmul.mubr.bf16.gmra.mrb[0].mxu0 %v490
          %v637 = vpop.f32.mrb[0].mxu0
          %v638 = vadd.f32 0.0, %v637
          %v639 = vpop.f32.mrb[0].mxu0
          %v640 = vpop.f32.mrb[0].mxu0
          %v641 = vadd.f32 0.0, %v640
          %v642 = vpop.f32.mrb[0].mxu0
          %643 = vdwg.mxu0
          %v644 = vadd.f32 %v419, %v582
          %v645 = vadd.f32 %v420, %v585
          %v646 = vadd.f32 %v421, %v590
          %v647 = vadd.f32 %v422, %v593
          %v648 = vadd.f32 %v423, %v598
          %v649 = vadd.f32 %v424, %v601
          %v650 = vadd.f32 %v425, %v606
          %v651 = vadd.f32 %v426, %v609
          %v652 = vadd.f32 %v427, %v614
          %v653 = vadd.f32 %v428, %v617
          %v654 = vadd.f32 %v429, %v622
          %v655 = vadd.f32 %v430, %v625
          %v656 = vadd.f32 %v431, %v630
          %v657 = vadd.f32 %v432, %v633
          %v658 = vadd.f32 %v433, %v638
          %v659 = vadd.f32 %v434, %v641
          %660 = vst [vmem:[#allocation2] sm:$0xff] %v644
          %661 = vst [vmem:[#allocation2 + $0x8] sm:$0xff] %v645
          %662 = vst [vmem:[#allocation2 + $0x10] sm:$0xff] %v646
          %663 = vst [vmem:[#allocation2 + $0x18] sm:$0xff] %v647
          %664 = vst [vmem:[#allocation2 + $0x20] sm:$0xff] %v648
          %665 = vst [vmem:[#allocation2 + $0x28] sm:$0xff] %v649
          %666 = vst [vmem:[#allocation2 + $0x30] sm:$0xff] %v650
          %667 = vst [vmem:[#allocation2 + $0x38] sm:$0xff] %v651
          %668 = vst [vmem:[#allocation2 + $0x40] sm:$0xff] %v652
          %669 = vst [vmem:[#allocation2 + $0x48] sm:$0xff] %v653
          %670 = vst [vmem:[#allocation2 + $0x50] sm:$0xff] %v654
          %671 = vst [vmem:[#allocation2 + $0x58] sm:$0xff] %v655
          %672 = vst [vmem:[#allocation2 + $0x60] sm:$0xff] %v656
          %673 = vst [vmem:[#allocation2 + $0x68] sm:$0xff] %v657
          %674 = vst [vmem:[#allocation2 + $0x70] sm:$0xff] %v658
          %675 = vst [vmem:[#allocation2 + $0x78] sm:$0xff] %v659
        $region89: #{gcnk_forward.5} parent=76 // pred_fallthru
          _
        %p676 = scmp.eq.s32.totalorder %s33, 1
        // Predicated region
        $region90: #{gcnk_forward.5} parent=76 // pred_check
          %p677 = pneg %p676
        $region91: #{gcnk_forward.5} parent=76 // pred_check_branch
          %679 = sbr.rel (%p677) target = $region93
        $region92: #{gcnk_forward.5} parent=76 // pred_region
          %v680 = vld [vmem:[#allocation2] sm:$0xff]
          %v681 = vld [vmem:[#allocation2 + $0x8] sm:$0xff]
          %v682 = vld [vmem:[#allocation2 + $0x10] sm:$0xff]
          %v683 = vld [vmem:[#allocation2 + $0x18] sm:$0xff]
          %v684 = vld [vmem:[#allocation2 + $0x20] sm:$0xff]
          %v685 = vld [vmem:[#allocation2 + $0x28] sm:$0xff]
          %v686 = vld [vmem:[#allocation2 + $0x30] sm:$0xff]
          %v687 = vld [vmem:[#allocation2 + $0x38] sm:$0xff]
          %v688 = vld [vmem:[#allocation2 + $0x40] sm:$0xff]
          %v689 = vld [vmem:[#allocation2 + $0x48] sm:$0xff]
          %v690 = vld [vmem:[#allocation2 + $0x50] sm:$0xff]
          %v691 = vld [vmem:[#allocation2 + $0x58] sm:$0xff]
          %v692 = vld [vmem:[#allocation2 + $0x60] sm:$0xff]
          %v693 = vld [vmem:[#allocation2 + $0x68] sm:$0xff]
          %v694 = vld [vmem:[#allocation2 + $0x70] sm:$0xff]
          %v695 = vld [vmem:[#allocation2 + $0x78] sm:$0xff]
          %v696 = vld [vmem:[%s4] sm:$0x1]
          %v698 = vlaneseq
          %v699 = vshrl.u32 %v698, 7
          %v700 = vsub.s32 0, %v699
          %v701 = vrot.slane %v696, %v700
          %v703 = vadd.f32 %v680, %v701
          %v704 = vadd.f32 %v681, %v701
          %v705 = vadd.f32 %v682, %v701
          %v706 = vadd.f32 %v683, %v701
          %v707 = vadd.f32 %v684, %v701
          %v708 = vadd.f32 %v685, %v701
          %v709 = vadd.f32 %v686, %v701
          %v710 = vadd.f32 %v687, %v701
          %v711 = vadd.f32 %v688, %v701
          %v712 = vadd.f32 %v689, %v701
          %v713 = vadd.f32 %v690, %v701
          %v714 = vadd.f32 %v691, %v701
          %v715 = vadd.f32 %v692, %v701
          %v716 = vadd.f32 %v693, %v701
          %v717 = vadd.f32 %v694, %v701
          %v718 = vadd.f32 %v695, %v701
          %v719 = vmax.f32 %v703, 0.0
          %v720 = vmax.f32 %v704, 0.0
          %v721 = vmax.f32 %v705, 0.0
          %v722 = vmax.f32 %v706, 0.0
          %v723 = vmax.f32 %v707, 0.0
          %v724 = vmax.f32 %v708, 0.0
          %v725 = vmax.f32 %v709, 0.0
          %v726 = vmax.f32 %v710, 0.0
          %v727 = vmax.f32 %v711, 0.0
          %v728 = vmax.f32 %v712, 0.0
          %v729 = vmax.f32 %v713, 0.0
          %v730 = vmax.f32 %v714, 0.0
          %v731 = vmax.f32 %v715, 0.0
          %v732 = vmax.f32 %v716, 0.0
          %v733 = vmax.f32 %v717, 0.0
          %v734 = vmax.f32 %v718, 0.0
          %v735 = vpack.c.bf16 %v720, %v719
          %v736 = vpack.c.bf16 %v722, %v721
          %v737 = vpack.c.bf16 %v724, %v723
          %v738 = vpack.c.bf16 %v726, %v725
          %v739 = vpack.c.bf16 %v728, %v727
          %v740 = vpack.c.bf16 %v730, %v729
          %v741 = vpack.c.bf16 %v732, %v731
          %v742 = vpack.c.bf16 %v734, %v733
          %v743 = vld [vmem:[%s5] sm:$0xf]
          %v744 = vld [vmem:[%s5 + $0x4] sm:$0xf]
          %v745 = vld [vmem:[%s5 + $0x8] sm:$0xf]
          %v746 = vld [vmem:[%s5 + $0xc] sm:$0xf]
          %v747 = vld [vmem:[%s5 + $0x10] sm:$0xf]
          %v748 = vld [vmem:[%s5 + $0x14] sm:$0xf]
          %v749 = vld [vmem:[%s5 + $0x18] sm:$0xf]
          %v750 = vld [vmem:[%s5 + $0x1c] sm:$0xf]
          %v751 = vld [vmem:[%s5 + $0x20] sm:$0xf]
          %v752 = vld [vmem:[%s5 + $0x24] sm:$0xf]
          %v753 = vld [vmem:[%s5 + $0x28] sm:$0xf]
          %v754 = vld [vmem:[%s5 + $0x2c] sm:$0xf]
          %v755 = vld [vmem:[%s5 + $0x30] sm:$0xf]
          %v756 = vld [vmem:[%s5 + $0x34] sm:$0xf]
          %v757 = vld [vmem:[%s5 + $0x38] sm:$0xf]
          %v758 = vld [vmem:[%s5 + $0x3c] sm:$0xf]
          %v759 = vld [vmem:[%s6] sm:$0x1]
          %v761 = vlaneseq
          %v762 = vshrl.u32 %v761, 7
          %v763 = vsub.s32 0, %v762
          %v764 = vrot.slane %v759, %v763
          %v782 = vunpack.c.l.b16 %v743
          %v783 = vunpack.c.l.b16 %v744
          %v784 = vunpack.c.l.b16 %v745
          %v785 = vunpack.c.l.b16 %v746
          %v786 = vunpack.c.l.b16 %v747
          %v787 = vunpack.c.l.b16 %v748
          %v788 = vunpack.c.l.b16 %v749
          %v789 = vunpack.c.l.b16 %v750
          %v790 = vunpack.c.l.b16 %v751
          %v791 = vunpack.c.l.b16 %v752
          %v792 = vunpack.c.l.b16 %v753
          %v793 = vunpack.c.l.b16 %v754
          %v794 = vunpack.c.l.b16 %v755
          %v795 = vunpack.c.l.b16 %v756
          %v796 = vunpack.c.l.b16 %v757
          %v797 = vunpack.c.l.b16 %v758
          %v798 = vpack.c.b16 %v783, %v782
          %v799 = vpack.c.b16 %v785, %v784
          %v800 = vpack.c.b16 %v787, %v786
          %v801 = vpack.c.b16 %v789, %v788
          %v802 = vpack.c.b16 %v791, %v790
          %v803 = vpack.c.b16 %v793, %v792
          %v804 = vpack.c.b16 %v795, %v794
          %v805 = vpack.c.b16 %v797, %v796
          %814 = vmatprep.subr.bf16.mxu0 0
          %815 = vmatpush1.bf16.msra.mxu0 %v798
          %816 = vmatprep.subr.bf16.mxu0 0
          %817 = vmatpush1.bf16.msra.mxu0 %v799
          %818 = vmatprep.subr.bf16.mxu0 0
          %819 = vmatpush1.bf16.msra.mxu0 %v800
          %820 = vmatprep.subr.bf16.mxu0 0
          %821 = vmatpush1.bf16.msra.mxu0 %v801
          %822 = vmatprep.subr.bf16.mxu0 0
          %823 = vmatpush1.bf16.msra.mxu0 %v802
          %824 = vmatprep.subr.bf16.mxu0 0
          %825 = vmatpush1.bf16.msra.mxu0 %v803
          %826 = vmatprep.subr.bf16.mxu0 0
          %827 = vmatpush1.bf16.msra.mxu0 %v804
          %828 = vmatprep.subr.bf16.mxu0 0
          %829 = vmatpush1.bf16.msra.mxu0 %v805
          %830 = vmatprep.subr.bf16.mxu0 0
          %831 = vmatpush1.bf16.msra.mxu0 0
          %832 = vmatprep.subr.bf16.mxu0 0
          %833 = vmatpush1.bf16.msra.mxu0 0
          %834 = vmatprep.subr.bf16.mxu0 0
          %835 = vmatpush1.bf16.msra.mxu0 0
          %836 = vmatprep.subr.bf16.mxu0 0
          %837 = vmatpush1.bf16.msra.mxu0 0
          %838 = vmatprep.subr.bf16.mxu0 0
          %839 = vmatpush1.bf16.msra.mxu0 0
          %840 = vmatprep.subr.bf16.mxu0 0
          %841 = vmatpush1.bf16.msra.mxu0 0
          %842 = vmatprep.subr.bf16.mxu0 0
          %843 = vmatpush1.bf16.msra.mxu0 0
          %844 = vmatprep.subr.bf16.mxu0 0
          %845 = vmatpush1.bf16.msra.mxu0 0
          %846 = vmatprep.mubr.bf16.mxu0 0
          %847 = vmatmul.mubr.bf16.gmra.mrb[0].mxu0 %v735
          %v848 = vpop.f32.mrb[0].mxu0
          %v849 = vadd.f32 %v764, %v848
          %v850 = vpop.f32.mrb[0].mxu0
          %v851 = vpop.f32.mrb[0].mxu0
          %v852 = vadd.f32 %v764, %v851
          %v853 = vpop.f32.mrb[0].mxu0
          %854 = vmatprep.mubr.bf16.mxu0 0
          %855 = vmatmul.mubr.bf16.gmra.mrb[0].mxu0 %v736
          %v856 = vpop.f32.mrb[0].mxu0
          %v857 = vadd.f32 %v764, %v856
          %v858 = vpop.f32.mrb[0].mxu0
          %v859 = vpop.f32.mrb[0].mxu0
          %v860 = vadd.f32 %v764, %v859
          %v861 = vpop.f32.mrb[0].mxu0
          %862 = vmatprep.mubr.bf16.mxu0 0
          %863 = vmatmul.mubr.bf16.gmra.mrb[0].mxu0 %v737
          %v864 = vpop.f32.mrb[0].mxu0
          %v865 = vadd.f32 %v764, %v864
          %v866 = vpop.f32.mrb[0].mxu0
          %v867 = vpop.f32.mrb[0].mxu0
          %v868 = vadd.f32 %v764, %v867
          %v869 = vpop.f32.mrb[0].mxu0
          %870 = vmatprep.mubr.bf16.mxu0 0
          %871 = vmatmul.mubr.bf16.gmra.mrb[0].mxu0 %v738
          %v872 = vpop.f32.mrb[0].mxu0
          %v873 = vadd.f32 %v764, %v872
          %v874 = vpop.f32.mrb[0].mxu0
          %v875 = vpop.f32.mrb[0].mxu0
          %v876 = vadd.f32 %v764, %v875
          %v877 = vpop.f32.mrb[0].mxu0
          %878 = vmatprep.mubr.bf16.mxu0 0
          %879 = vmatmul.mubr.bf16.gmra.mrb[0].mxu0 %v739
          %v880 = vpop.f32.mrb[0].mxu0
          %v881 = vadd.f32 %v764, %v880
          %v882 = vpop.f32.mrb[0].mxu0
          %v883 = vpop.f32.mrb[0].mxu0
          %v884 = vadd.f32 %v764, %v883
          %v885 = vpop.f32.mrb[0].mxu0
          %886 = vmatprep.mubr.bf16.mxu0 0
          %887 = vmatmul.mubr.bf16.gmra.mrb[0].mxu0 %v740
          %v888 = vpop.f32.mrb[0].mxu0
          %v889 = vadd.f32 %v764, %v888
          %v890 = vpop.f32.mrb[0].mxu0
          %v891 = vpop.f32.mrb[0].mxu0
          %v892 = vadd.f32 %v764, %v891
          %v893 = vpop.f32.mrb[0].mxu0
          %894 = vmatprep.mubr.bf16.mxu0 0
          %895 = vmatmul.mubr.bf16.gmra.mrb[0].mxu0 %v741
          %v896 = vpop.f32.mrb[0].mxu0
          %v897 = vadd.f32 %v764, %v896
          %v898 = vpop.f32.mrb[0].mxu0
          %v899 = vpop.f32.mrb[0].mxu0
          %v900 = vadd.f32 %v764, %v899
          %v901 = vpop.f32.mrb[0].mxu0
          %902 = vmatprep.mubr.bf16.mxu0 0
          %903 = vmatmul.mubr.bf16.gmra.mrb[0].mxu0 %v742
          %v904 = vpop.f32.mrb[0].mxu0
          %v905 = vadd.f32 %v764, %v904
          %v906 = vpop.f32.mrb[0].mxu0
          %v907 = vpop.f32.mrb[0].mxu0
          %v908 = vadd.f32 %v764, %v907
          %v909 = vpop.f32.mrb[0].mxu0
          %910 = vdwg.mxu0
          %v911 = vlaneseq
          %v912 = vand.u32 %v911, 127
          %vm913 = vcmp.lt.s32.totalorder %v912, 8
          %v914 = vsel %vm913, %v849, -1e+30
          %v915 = vsel %vm913, %v852, -1e+30
          %v916 = vsel %vm913, %v857, -1e+30
          %v917 = vsel %vm913, %v860, -1e+30
          %v918 = vsel %vm913, %v865, -1e+30
          %v919 = vsel %vm913, %v868, -1e+30
          %v920 = vsel %vm913, %v873, -1e+30
          %v921 = vsel %vm913, %v876, -1e+30
          %v922 = vsel %vm913, %v881, -1e+30
          %v923 = vsel %vm913, %v884, -1e+30
          %v924 = vsel %vm913, %v889, -1e+30
          %v925 = vsel %vm913, %v892, -1e+30
          %v926 = vsel %vm913, %v897, -1e+30
          %v927 = vsel %vm913, %v900, -1e+30
          %v928 = vsel %vm913, %v905, -1e+30
          %v929 = vsel %vm913, %v908, -1e+30
          %930 = vmax.xlane.f32.xlu0 %v914
          %v931 = vpop.xlane.xlu0 %930
          %932 = vmax.xlane.f32.xlu0 %v915
          %v933 = vpop.xlane.xlu0 %932
          %934 = vmax.xlane.f32.xlu0 %v916
          %v935 = vpop.xlane.xlu0 %934
          %936 = vmax.xlane.f32.xlu0 %v917
          %v937 = vpop.xlane.xlu0 %936
          %938 = vmax.xlane.f32.xlu0 %v918
          %v939 = vpop.xlane.xlu0 %938
          %940 = vmax.xlane.f32.xlu0 %v919
          %v941 = vpop.xlane.xlu0 %940
          %942 = vmax.xlane.f32.xlu0 %v920
          %v943 = vpop.xlane.xlu0 %942
          %944 = vmax.xlane.f32.xlu0 %v921
          %v945 = vpop.xlane.xlu0 %944
          %946 = vmax.xlane.f32.xlu0 %v922
          %v947 = vpop.xlane.xlu0 %946
          %948 = vmax.xlane.f32.xlu0 %v923
          %v949 = vpop.xlane.xlu0 %948
          %950 = vmax.xlane.f32.xlu0 %v924
          %v951 = vpop.xlane.xlu0 %950
          %952 = vmax.xlane.f32.xlu0 %v925
          %v953 = vpop.xlane.xlu0 %952
          %954 = vmax.xlane.f32.xlu0 %v926
          %v955 = vpop.xlane.xlu0 %954
          %956 = vmax.xlane.f32.xlu0 %v927
          %v957 = vpop.xlane.xlu0 %956
          %958 = vmax.xlane.f32.xlu0 %v928
          %v959 = vpop.xlane.xlu0 %958
          %960 = vmax.xlane.f32.xlu0 %v929
          %v961 = vpop.xlane.xlu0 %960
          %v962 = vsub.f32 %v914, %v931
          %v963 = vsub.f32 %v915, %v933
          %v964 = vsub.f32 %v916, %v935
          %v965 = vsub.f32 %v917, %v937
          %v966 = vsub.f32 %v918, %v939
          %v967 = vsub.f32 %v919, %v941
          %v968 = vsub.f32 %v920, %v943
          %v969 = vsub.f32 %v921, %v945
          %v970 = vsub.f32 %v922, %v947
          %v971 = vsub.f32 %v923, %v949
          %v972 = vsub.f32 %v924, %v951
          %v973 = vsub.f32 %v925, %v953
          %v974 = vsub.f32 %v926, %v955
          %v975 = vsub.f32 %v927, %v957
          %v976 = vsub.f32 %v928, %v959
          %v977 = vsub.f32 %v929, %v961
          %v978 = vmul.f32 %v962, 1.442695
          %v979 = vpow.pop %v978
          %v980 = vmul.f32 %v963, 1.442695
          %v981 = vpow.pop %v980
          %v982 = vmul.f32 %v964, 1.442695
          %v983 = vpow.pop %v982
          %v984 = vmul.f32 %v965, 1.442695
          %v985 = vpow.pop %v984
          %v986 = vmul.f32 %v966, 1.442695
          %v987 = vpow.pop %v986
          %v988 = vmul.f32 %v967, 1.442695
          %v989 = vpow.pop %v988
          %v990 = vmul.f32 %v968, 1.442695
          %v991 = vpow.pop %v990
          %v992 = vmul.f32 %v969, 1.442695
          %v993 = vpow.pop %v992
          %v994 = vmul.f32 %v970, 1.442695
          %v995 = vpow.pop %v994
          %v996 = vmul.f32 %v971, 1.442695
          %v997 = vpow.pop %v996
          %v998 = vmul.f32 %v972, 1.442695
          %v999 = vpow.pop %v998
          %v1000 = vmul.f32 %v973, 1.442695
          %v1001 = vpow.pop %v1000
          %v1002 = vmul.f32 %v974, 1.442695
          %v1003 = vpow.pop %v1002
          %v1004 = vmul.f32 %v975, 1.442695
          %v1005 = vpow.pop %v1004
          %v1006 = vmul.f32 %v976, 1.442695
          %v1007 = vpow.pop %v1006
          %v1008 = vmul.f32 %v977, 1.442695
          %v1009 = vpow.pop %v1008
          %1010 = vadd.xlane.f32.xlu0 %v979
          %v1011 = vpop.xlane.xlu0 %1010
          %1012 = vadd.xlane.f32.xlu0 %v981
          %v1013 = vpop.xlane.xlu0 %1012
          %1014 = vadd.xlane.f32.xlu0 %v983
          %v1015 = vpop.xlane.xlu0 %1014
          %1016 = vadd.xlane.f32.xlu0 %v985
          %v1017 = vpop.xlane.xlu0 %1016
          %1018 = vadd.xlane.f32.xlu0 %v987
          %v1019 = vpop.xlane.xlu0 %1018
          %1020 = vadd.xlane.f32.xlu0 %v989
          %v1021 = vpop.xlane.xlu0 %1020
          %1022 = vadd.xlane.f32.xlu0 %v991
          %v1023 = vpop.xlane.xlu0 %1022
          %1024 = vadd.xlane.f32.xlu0 %v993
          %v1025 = vpop.xlane.xlu0 %1024
          %1026 = vadd.xlane.f32.xlu0 %v995
          %v1027 = vpop.xlane.xlu0 %1026
          %1028 = vadd.xlane.f32.xlu0 %v997
          %v1029 = vpop.xlane.xlu0 %1028
          %1030 = vadd.xlane.f32.xlu0 %v999
          %v1031 = vpop.xlane.xlu0 %1030
          %1032 = vadd.xlane.f32.xlu0 %v1001
          %v1033 = vpop.xlane.xlu0 %1032
          %1034 = vadd.xlane.f32.xlu0 %v1003
          %v1035 = vpop.xlane.xlu0 %1034
          %1036 = vadd.xlane.f32.xlu0 %v1005
          %v1037 = vpop.xlane.xlu0 %1036
          %1038 = vadd.xlane.f32.xlu0 %v1007
          %v1039 = vpop.xlane.xlu0 %1038
          %1040 = vadd.xlane.f32.xlu0 %v1009
          %v1041 = vpop.xlane.xlu0 %1040
          %v1042 = vlog2.pop %v1011
          %v1043 = vmul.f32 %v1042, 0.6931472
          %v1044 = vlog2.pop %v1013
          %v1045 = vmul.f32 %v1044, 0.6931472
          %v1046 = vlog2.pop %v1015
          %v1047 = vmul.f32 %v1046, 0.6931472
          %v1048 = vlog2.pop %v1017
          %v1049 = vmul.f32 %v1048, 0.6931472
          %v1050 = vlog2.pop %v1019
          %v1051 = vmul.f32 %v1050, 0.6931472
          %v1052 = vlog2.pop %v1021
          %v1053 = vmul.f32 %v1052, 0.6931472
          %v1054 = vlog2.pop %v1023
          %v1055 = vmul.f32 %v1054, 0.6931472
          %v1056 = vlog2.pop %v1025
          %v1057 = vmul.f32 %v1056, 0.6931472
          %v1058 = vlog2.pop %v1027
          %v1059 = vmul.f32 %v1058, 0.6931472
          %v1060 = vlog2.pop %v1029
          %v1061 = vmul.f32 %v1060, 0.6931472
          %v1062 = vlog2.pop %v1031
          %v1063 = vmul.f32 %v1062, 0.6931472
          %v1064 = vlog2.pop %v1033
          %v1065 = vmul.f32 %v1064, 0.6931472
          %v1066 = vlog2.pop %v1035
          %v1067 = vmul.f32 %v1066, 0.6931472
          %v1068 = vlog2.pop %v1037
          %v1069 = vmul.f32 %v1068, 0.6931472
          %v1070 = vlog2.pop %v1039
          %v1071 = vmul.f32 %v1070, 0.6931472
          %v1072 = vlog2.pop %v1041
          %v1073 = vmul.f32 %v1072, 0.6931472
          %v1074 = vadd.f32 %v1043, %v931
          %v1075 = vadd.f32 %v1045, %v933
          %v1076 = vadd.f32 %v1047, %v935
          %v1077 = vadd.f32 %v1049, %v937
          %v1078 = vadd.f32 %v1051, %v939
          %v1079 = vadd.f32 %v1053, %v941
          %v1080 = vadd.f32 %v1055, %v943
          %v1081 = vadd.f32 %v1057, %v945
          %v1082 = vadd.f32 %v1059, %v947
          %v1083 = vadd.f32 %v1061, %v949
          %v1084 = vadd.f32 %v1063, %v951
          %v1085 = vadd.f32 %v1065, %v953
          %v1086 = vadd.f32 %v1067, %v955
          %v1087 = vadd.f32 %v1069, %v957
          %v1088 = vadd.f32 %v1071, %v959
          %v1089 = vadd.f32 %v1073, %v961
          %v1090 = vsub.f32 %v849, %v1074
          %v1091 = vsub.f32 %v852, %v1075
          %v1092 = vsub.f32 %v857, %v1076
          %v1093 = vsub.f32 %v860, %v1077
          %v1094 = vsub.f32 %v865, %v1078
          %v1095 = vsub.f32 %v868, %v1079
          %v1096 = vsub.f32 %v873, %v1080
          %v1097 = vsub.f32 %v876, %v1081
          %v1098 = vsub.f32 %v881, %v1082
          %v1099 = vsub.f32 %v884, %v1083
          %v1100 = vsub.f32 %v889, %v1084
          %v1101 = vsub.f32 %v892, %v1085
          %v1102 = vsub.f32 %v897, %v1086
          %v1103 = vsub.f32 %v900, %v1087
          %v1104 = vsub.f32 %v905, %v1088
          %v1105 = vsub.f32 %v908, %v1089
          %1106 = vst [vmem:[%s367] sm:$0xff] %v1090
          %1107 = vst [vmem:[%s367 + $0x8] sm:$0xff] %v1091
          %1108 = vst [vmem:[%s367 + $0x10] sm:$0xff] %v1092
          %1109 = vst [vmem:[%s367 + $0x18] sm:$0xff] %v1093
          %1110 = vst [vmem:[%s367 + $0x20] sm:$0xff] %v1094
          %1111 = vst [vmem:[%s367 + $0x28] sm:$0xff] %v1095
          %1112 = vst [vmem:[%s367 + $0x30] sm:$0xff] %v1096
          %1113 = vst [vmem:[%s367 + $0x38] sm:$0xff] %v1097
          %1114 = vst [vmem:[%s367 + $0x40] sm:$0xff] %v1098
          %1115 = vst [vmem:[%s367 + $0x48] sm:$0xff] %v1099
          %1116 = vst [vmem:[%s367 + $0x50] sm:$0xff] %v1100
          %1117 = vst [vmem:[%s367 + $0x58] sm:$0xff] %v1101
          %1118 = vst [vmem:[%s367 + $0x60] sm:$0xff] %v1102
          %1119 = vst [vmem:[%s367 + $0x68] sm:$0xff] %v1103
          %1120 = vst [vmem:[%s367 + $0x70] sm:$0xff] %v1104
          %1121 = vst [vmem:[%s367 + $0x78] sm:$0xff] %v1105
        $region93: #{gcnk_forward.5} parent=76 // pred_fallthru
          _
        %s1122 = smul.u32 16, %s32
        %p1123 = scmp.lt.s32.totalorder %s1122, 31
        %s1124 = scalar_select %p1123, %s1122, 31
        %s1125 = smul.addr %s1124, 8
        %s1126 = scalar_lea.vmem %s7, %s1125
        // Predicated region
        $region94: #{gcnk_forward.5} parent=76 // pred_check
          %p1127 = pneg %p176
        $region95: #{gcnk_forward.5} parent=76 // pred_check_branch
          %1129 = sbr.rel (%p1127) target = $region97
        $region96: #{gcnk_forward.5} parent=76 // pred_region
          %s1130 = smul.u32 16, %s32
        $region97: #{gcnk_forward.5} parent=76 // pred_fallthru
          _
      $region77: #{gcnk_forward.5} parent=5 // pred_fallthru
        _
      %p1131 = scmp.le.s32.totalorder 2, %s23
      // Predicated region
      $region98: #{gcnk_forward.5} parent=5 // pred_check
        %p1132 = pneg %p1131
      $region99: #{gcnk_forward.5} parent=5 // pred_check_branch
        %1134 = sbr.rel (%p1132) target = $region101
      $region100: #{gcnk_forward.5} parent=5 // pred_region
        %s1135 = ssub.s32 %s23, 2
        // Predicated region
        $region102: #{gcnk_forward.5} parent=100 // pred_check
          %p1136 = pneg %p182
        $region103: #{gcnk_forward.5} parent=100 // pred_check_branch
          %1138 = sbr.rel (%p1136) target = $region105
        $region104: #{gcnk_forward.5} parent=100 // pred_region
          %s1139 = smul.u32 16, %s34
          %p1140 = scmp.lt.s32.totalorder %s1139, 31
          %s1141 = scalar_select %p1140, %s1139, 31
          %s1142 = smul.addr %s1141, 8
          %s1143 = scalar_lea.vmem %s7, %s1142
        $region105: #{gcnk_forward.5} parent=100 // pred_fallthru
          _
      $region101: #{gcnk_forward.5} parent=5 // pred_fallthru
        _
    $region6: #{gcnk_forward.5} parent=1 // loop_footer
      %s27 = sadd.s32 1, %s23
    $region7: #{gcnk_forward.5} parent=1 // loop_footer_branch
      %22 = sbr.rel target = $region3
    $region8: #{gcnk_forward.5} parent=1 // loop_exit
      _

</llo_original>
